<compile_context>
chip_gen: v6e
topology: v6e:2x2x1
jax: 0.10.0
libtpu: 0.0.40
codegen_flags: <defaults>
</compile_context>

<pallas_src>
import functools

import jax
import jax.numpy as jnp
from jax.experimental import pallas as pl
from jax.experimental.pallas import tpu as pltpu


# ================================ fused kernel ================================
def _lstm_cell(gx, h_prev, c_prev, whh, H):
    """One LSTM step. gx = x_t @ W_ih^T + (b_ih + b_hh); gate order i, f, o, g."""
    gates = gx + jnp.dot(h_prev, whh, preferred_element_type=jnp.float32)   # (B, 4H)
    sg = jax.nn.sigmoid(gates[:, :3 * H])          # one contiguous EUP pass: i | f | o
    i = sg[:, 0:H]
    f = sg[:, H:2 * H]
    o = sg[:, 2 * H:3 * H]
    g = jnp.tanh(gates[:, 3 * H:])                 # second EUP pass: g
    c = f * c_prev + i * g
    h = o * jnp.tanh(c)
    return h, c


def fused_net_kernel(x_ref,                        # (T*B, D)    time-major, flattened
                     wih0_ref, whh0_ref, b0_ref,   # (D, 8H),  (2, H, 4H), (1, 8H)
                     wih1_ref, whh1_ref, b1_ref,   # (2H, 8H), (2, H, 4H), (1, 8H)
                     lw_ref, lb_ref,               # (2H, O), (1, O)
                     out_ref,                      # (B, O)
                     l0_scr,                       # VMEM scratch (T*B, 2H)
                     *, T, B, H):
    x = x_ref[...]
    zeros = jnp.zeros((B, H), jnp.float32)
    G = 4 * H                                      # per-direction gate width (lane-aligned)

    # ------------------- layer 0 (D -> 2H), both directions -------------------
    # Single hoisted input-projection matmul covering both directions & all T steps.
    gx0 = jnp.dot(x, wih0_ref[...], preferred_element_type=jnp.float32) + b0_ref[...]   # (T*B, 8H)
    whh_f = whh0_ref[0]
    whh_b = whh0_ref[1]

    # forward: positions 0 .. T-1; write lanes [0:H] of the shared buffer.
    h, c = zeros, zeros
    for t in range(T):
        h, c = _lstm_cell(gx0[t * B:(t + 1) * B, 0:G], h, c, whh_f, H)
        l0_scr[t * B:(t + 1) * B, 0:H] = h

    # backward: positions T-1 .. 0 via reversed indexing (no reversed copies);
    # write lanes [H:2H].
    h, c = zeros, zeros
    for k in range(T):
        s = T - 1 - k
        h, c = _lstm_cell(gx0[s * B:(s + 1) * B, G:2 * G], h, c, whh_b, H)
        l0_scr[s * B:(s + 1) * B, H:2 * H] = h

    l0 = l0_scr[...]                                            # (T*B, 2H)

    # ------------------------- layer 1 (2H -> 2H) ------------------------------
    # Single input-projection matmul for both directions.
    gx1 = jnp.dot(l0, wih1_ref[...], preferred_element_type=jnp.float32) + b1_ref[...]   # (T*B, 8H)

    # Forward: full recurrence; only the final hidden state feeds the head.
    whh1f = whh1_ref[0]
    h, c = zeros, zeros
    for t in range(T):
        h, c = _lstm_cell(gx1[t * B:(t + 1) * B, 0:G], h, c, whh1f, H)
    h1f_last = h                                                # (B, H)

    # Backward: lstm_out[:, -1, H:2H] depends only on the backward direction's FIRST
    # step (it has only seen x_{T-1}), so one cell step suffices.
    h1b_last, _ = _lstm_cell(gx1[(T - 1) * B:T * B, G:2 * G], zeros, zeros, whh1_ref[1], H)

    # ---------------------- head: Linear(2H -> O) + sigmoid --------------------
    # TODO(synk): nn.Dropout(p=0.2) is identity in eval/inference mode, so it is omitted.
    y = (jnp.dot(h1f_last, lw_ref[0:H, :], preferred_element_type=jnp.float32)
         + jnp.dot(h1b_last, lw_ref[H:2 * H, :], preferred_element_type=jnp.float32)
         + lb_ref[...])
    out_ref[...] = jax.nn.sigmoid(y).astype(out_ref.dtype)


# ================================ wrapper =====================================
@jax.jit
def net_forward(x, kp):
    """x: (B, T, D) batch-first, like the PyTorch module. Returns (B, O)."""
    B, T, D = x.shape
    H = kp["l0_whh"].shape[1]
    O = kp["lin_w"].shape[1]
    x_flat = jnp.transpose(x, (1, 0, 2)).reshape(T * B, D)      # time-major, flattened

    vmem = pl.BlockSpec(memory_space=pltpu.MemorySpace.VMEM)
    return pl.pallas_call(
        functools.partial(fused_net_kernel, T=T, B=B, H=H),
        out_shape=jax.ShapeDtypeStruct((B, O), jnp.float32),
        in_specs=[vmem] * 9,
        out_specs=vmem,
        scratch_shapes=[pltpu.VMEM((T * B, 2 * H), jnp.float32)],   # layer-0 output buffer
    )(x_flat, kp["l0_wih"], kp["l0_whh"], kp["l0_b"],
      kp["l1_wih"], kp["l1_whh"], kp["l1_b"],
      kp["lin_w"], kp["lin_b"])


# ======================= parameter init / preparation =========================
def init_params(key, input_size=6, hidden_size=32, output_size=1):
    """PyTorch-layout parameters (W_ih (4H, D_in), W_hh (4H, H), b_ih, b_hh; gate order i,f,g,o)."""
    k = hidden_size ** -0.5

    def uni(key, shape, scale):
        return jax.random.uniform(key, shape, jnp.float32, -scale, scale)

    keys = iter(jax.random.split(key, 32))
    params = {}
    for name, d_in in (("l0", input_size), ("l1", 2 * hidden_size)):
        for suffix in ("fwd", "bwd"):
            params[f"{name}_{suffix}"] = (
                uni(next(keys), (4 * hidden_size, d_in), k),          # W_ih
                uni(next(keys), (4 * hidden_size, hidden_size), k),   # W_hh
                uni(next(keys), (4 * hidden_size,), k),               # b_ih
                uni(next(keys), (4 * hidden_size,), k),               # b_hh
            )
    kl = (2 * hidden_size) ** -0.5
    params["lin_w"] = uni(next(keys), (output_size, 2 * hidden_size), kl)
    params["lin_b"] = uni(next(keys), (output_size,), kl)
    return params


def _permute_gates(w, axis=-1):
    """Reorder gate blocks from PyTorch order (i, f, g, o) to kernel order (i, f, o, g)."""
    i, f, g, o = jnp.split(w, 4, axis=axis)
    return jnp.concatenate([i, f, o, g], axis=axis)


def prepare_params(raw):
    """One-time host-side conversion to kernel layout: transpose weights to (in, 4H),
    fold b_ih + b_hh, permute gate columns, and column-concatenate fwd|bwd directions
    so each layer's input projection is a single (rows, D_in) @ (D_in, 8H) matmul."""
    def prep(p):
        w_ih, w_hh, b_ih, b_hh = p
        return (_permute_gates(jnp.transpose(w_ih)),                 # (D_in, 4H)
                _permute_gates(jnp.transpose(w_hh)),                 # (H, 4H)
                _permute_gates((b_ih + b_hh).reshape(1, -1)))        # (1, 4H)

    kp = {}
    for layer in ("l0", "l1"):
        fw = prep(raw[f"{layer}_fwd"])
        bw = prep(raw[f"{layer}_bwd"])
        kp[f"{layer}_wih"] = jnp.concatenate([fw[0], bw[0]], axis=1)  # (D_in, 8H)
        kp[f"{layer}_whh"] = jnp.stack([fw[1], bw[1]])                # (2, H, 4H)
        kp[f"{layer}_b"] = jnp.concatenate([fw[2], bw[2]], axis=1)    # (1, 8H)
    kp["lin_w"] = jnp.transpose(raw["lin_w"])                         # (2H, O)
    kp["lin_b"] = raw["lin_b"].reshape(1, -1)                         # (1, O)
    return kp


# ======================= pure-JAX reference (sanity check) ====================
def _cell_ref(x_t, h, c, w_ih, w_hh, b_ih, b_hh):
    gates = x_t @ w_ih.T + h @ w_hh.T + b_ih + b_hh
    i, f, g, o = jnp.split(gates, 4, axis=-1)
    c = jax.nn.sigmoid(f) * c + jax.nn.sigmoid(i) * jnp.tanh(g)
    h = jax.nn.sigmoid(o) * jnp.tanh(c)
    return h, c


def _direction_ref(x_tbd, p, reverse):
    T, B, _ = x_tbd.shape
    H = p[1].shape[1]
    h = jnp.zeros((B, H), jnp.float32)
    c = jnp.zeros((B, H), jnp.float32)
    out = [None] * T
    order = range(T - 1, -1, -1) if reverse else range(T)
    for t in order:
        h, c = _cell_ref(x_tbd[t], h, c, *p)
        out[t] = h
    return jnp.stack(out)                                            # (T, B, H)


def net_reference(x, raw):
    h = jnp.transpose(x, (1, 0, 2))                                  # (T, B, D)
    for layer in ("l0", "l1"):
        fwd = _direction_ref(h, raw[f"{layer}_fwd"], reverse=False)
        bwd = _direction_ref(h, raw[f"{layer}_bwd"], reverse=True)
        h = jnp.concatenate([fwd, bwd], axis=-1)                     # (T, B, 2H)
    last = h[-1]                                                     # (B, 2H)
    return jax.nn.sigmoid(last @ raw["lin_w"].T + raw["lin_b"])


# ==================================== main ====================================
if __name__ == "__main__":
    key = jax.random.PRNGKey(0)
    pkey, xkey = jax.random.split(key)

    B, T, D, H, O = 2, 8, 6, 32, 1
    raw = init_params(pkey, input_size=D, hidden_size=H, output_size=O)
    kp = prepare_params(raw)
    x = jax.random.normal(xkey, (B, T, D), jnp.float32)

    out = net_forward(x, kp)
    jax.block_until_ready(out)
    assert out.shape == (B, O), out.shape

    # Sanity check against a pure-JAX reference (loose tolerance: XLA vs Pallas/MXU
    # f32 matmul precision defaults may differ slightly).
    ref = net_reference(x, raw)
    assert float(jnp.max(jnp.abs(out - ref))) < 5e-2, (out, ref)

    print("KERNEL_OK")
</pallas_src>

<mosaic_0001>
module attributes {stable_mosaic.version = 11 : i64} {
  func.func @fused_net_kernel(%arg0: memref<16x6xf32, #tpu.memory_space<vmem>>, %arg1: memref<6x256xf32, #tpu.memory_space<vmem>>, %arg2: memref<2x32x128xf32, #tpu.memory_space<vmem>>, %arg3: memref<1x256xf32, #tpu.memory_space<vmem>>, %arg4: memref<64x256xf32, #tpu.memory_space<vmem>>, %arg5: memref<2x32x128xf32, #tpu.memory_space<vmem>>, %arg6: memref<1x256xf32, #tpu.memory_space<vmem>>, %arg7: memref<64x1xf32, #tpu.memory_space<vmem>>, %arg8: memref<1x1xf32, #tpu.memory_space<vmem>>, %arg9: memref<2x1xf32, #tpu.memory_space<vmem>>, %arg10: memref<16x64xf32, #tpu.memory_space<vmem>>) attributes {dimension_semantics = [], scalar_prefetch = 0 : i64, scratch_operands = 1 : i64, tpu.core_type = #tpu.core_type<tc>} {
    %c0 = arith.constant 0 : index
    %c0_0 = arith.constant 0 : index
    %0 = vector.load %arg0[%c0, %c0_0] : memref<16x6xf32, #tpu.memory_space<vmem>>, vector<16x6xf32>
    %cst = arith.constant 0.000000e+00 : f32
    %1 = vector.broadcast %cst : f32 to vector<2x32xf32>
    %c0_1 = arith.constant 0 : index
    %c0_2 = arith.constant 0 : index
    %2 = vector.load %arg1[%c0_1, %c0_2] : memref<6x256xf32, #tpu.memory_space<vmem>>, vector<6x256xf32>
    %cst_3 = arith.constant dense<0.000000e+00> : vector<16x256xf32>
    %3 = tpu.matmul %0, %2, %cst_3 {dimension_numbers = #tpu.dot_dimension_numbers<[1], [0], [0], [1], [0, 0, 1, 1], [], []>} : vector<16x6xf32>, vector<6x256xf32>, vector<16x256xf32> -> vector<16x256xf32>
    %c0_4 = arith.constant 0 : index
    %c0_5 = arith.constant 0 : index
    %4 = vector.load %arg3[%c0_4, %c0_5] : memref<1x256xf32, #tpu.memory_space<vmem>>, vector<1x256xf32>
    %5 = vector.broadcast %4 : vector<1x256xf32> to vector<16x256xf32>
    %6 = arith.addf %3, %5 : vector<16x256xf32>
    %c0_6 = arith.constant 0 : index
    %c0_7 = arith.constant 0 : index
    %c0_8 = arith.constant 0 : index
    %7 = vector.load %arg2[%c0_6, %c0_7, %c0_8] : memref<2x32x128xf32, #tpu.memory_space<vmem>>, vector<1x32x128xf32>
    %8 = vector.shape_cast %7 : vector<1x32x128xf32> to vector<32x128xf32>
    %c1 = arith.constant 1 : index
    %c0_9 = arith.constant 0 : index
    %c0_10 = arith.constant 0 : index
    %9 = vector.load %arg2[%c1, %c0_9, %c0_10] : memref<2x32x128xf32, #tpu.memory_space<vmem>>, vector<1x32x128xf32>
    %10 = vector.shape_cast %9 : vector<1x32x128xf32> to vector<32x128xf32>
    %11 = vector.extract_strided_slice %6 {offsets = [0, 0], sizes = [2, 128], strides = [1, 1]} : vector<16x256xf32> to vector<2x128xf32>
    %cst_11 = arith.constant dense<0.000000e+00> : vector<2x128xf32>
    %12 = tpu.matmul %1, %8, %cst_11 {dimension_numbers = #tpu.dot_dimension_numbers<[1], [0], [0], [1], [0, 0, 1, 1], [], []>} : vector<2x32xf32>, vector<32x128xf32>, vector<2x128xf32> -> vector<2x128xf32>
    %13 = arith.addf %11, %12 : vector<2x128xf32>
    %14 = vector.extract_strided_slice %13 {offsets = [0, 0], sizes = [2, 96], strides = [1, 1]} : vector<2x128xf32> to vector<2x96xf32>
    %15 = arith.negf %14 : vector<2x96xf32>
    %16 = math.exp %15 : vector<2x96xf32>
    %cst_12 = arith.constant 1.000000e+00 : f32
    %17 = vector.broadcast %cst_12 : f32 to vector<2x96xf32>
    %18 = arith.addf %17, %16 : vector<2x96xf32>
    %19 = arith.divf %17, %18 : vector<2x96xf32>
    %20 = vector.extract_strided_slice %19 {offsets = [0, 0], sizes = [2, 32], strides = [1, 1]} : vector<2x96xf32> to vector<2x32xf32>
    %21 = vector.extract_strided_slice %19 {offsets = [0, 32], sizes = [2, 32], strides = [1, 1]} : vector<2x96xf32> to vector<2x32xf32>
    %22 = vector.extract_strided_slice %19 {offsets = [0, 64], sizes = [2, 32], strides = [1, 1]} : vector<2x96xf32> to vector<2x32xf32>
    %23 = vector.extract_strided_slice %13 {offsets = [0, 96], sizes = [2, 32], strides = [1, 1]} : vector<2x128xf32> to vector<2x32xf32>
    %24 = math.tanh %23 : vector<2x32xf32>
    %25 = arith.mulf %21, %1 : vector<2x32xf32>
    %26 = arith.mulf %20, %24 : vector<2x32xf32>
    %27 = arith.addf %25, %26 : vector<2x32xf32>
    %28 = math.tanh %27 : vector<2x32xf32>
    %29 = arith.mulf %22, %28 : vector<2x32xf32>
    %c0_13 = arith.constant 0 : index
    %c0_14 = arith.constant 0 : index
    %30 = vector.load %arg10[%c0_13, %c0_14] : memref<16x64xf32, #tpu.memory_space<vmem>>, vector<2x32xf32>
    tpu.vector_store %arg10[%c0_13, %c0_14], %29 {strides = array<i32>} : memref<16x64xf32, #tpu.memory_space<vmem>>, vector<2x32xf32>,
    %31 = vector.extract_strided_slice %6 {offsets = [2, 0], sizes = [2, 128], strides = [1, 1]} : vector<16x256xf32> to vector<2x128xf32>
    %cst_15 = arith.constant dense<0.000000e+00> : vector<2x128xf32>
    %32 = tpu.matmul %29, %8, %cst_15 {dimension_numbers = #tpu.dot_dimension_numbers<[1], [0], [0], [1], [0, 0, 1, 1], [], []>} : vector<2x32xf32>, vector<32x128xf32>, vector<2x128xf32> -> vector<2x128xf32>
    %33 = arith.addf %31, %32 : vector<2x128xf32>
    %34 = vector.extract_strided_slice %33 {offsets = [0, 0], sizes = [2, 96], strides = [1, 1]} : vector<2x128xf32> to vector<2x96xf32>
    %35 = arith.negf %34 : vector<2x96xf32>
    %36 = math.exp %35 : vector<2x96xf32>
    %cst_16 = arith.constant 1.000000e+00 : f32
    %37 = vector.broadcast %cst_16 : f32 to vector<2x96xf32>
    %38 = arith.addf %37, %36 : vector<2x96xf32>
    %39 = arith.divf %37, %38 : vector<2x96xf32>
    %40 = vector.extract_strided_slice %39 {offsets = [0, 0], sizes = [2, 32], strides = [1, 1]} : vector<2x96xf32> to vector<2x32xf32>
    %41 = vector.extract_strided_slice %39 {offsets = [0, 32], sizes = [2, 32], strides = [1, 1]} : vector<2x96xf32> to vector<2x32xf32>
    %42 = vector.extract_strided_slice %39 {offsets = [0, 64], sizes = [2, 32], strides = [1, 1]} : vector<2x96xf32> to vector<2x32xf32>
    %43 = vector.extract_strided_slice %33 {offsets = [0, 96], sizes = [2, 32], strides = [1, 1]} : vector<2x128xf32> to vector<2x32xf32>
    %44 = math.tanh %43 : vector<2x32xf32>
    %45 = arith.mulf %41, %27 : vector<2x32xf32>
    %46 = arith.mulf %40, %44 : vector<2x32xf32>
    %47 = arith.addf %45, %46 : vector<2x32xf32>
    %48 = math.tanh %47 : vector<2x32xf32>
    %49 = arith.mulf %42, %48 : vector<2x32xf32>
    %c2 = arith.constant 2 : index
    %c0_17 = arith.constant 0 : index
    %50 = vector.load %arg10[%c2, %c0_17] : memref<16x64xf32, #tpu.memory_space<vmem>>, vector<2x32xf32>
    tpu.vector_store %arg10[%c2, %c0_17], %49 {strides = array<i32>} : memref<16x64xf32, #tpu.memory_space<vmem>>, vector<2x32xf32>,
    %51 = vector.extract_strided_slice %6 {offsets = [4, 0], sizes = [2, 128], strides = [1, 1]} : vector<16x256xf32> to vector<2x128xf32>
    %cst_18 = arith.constant dense<0.000000e+00> : vector<2x128xf32>
    %52 = tpu.matmul %49, %8, %cst_18 {dimension_numbers = #tpu.dot_dimension_numbers<[1], [0], [0], [1], [0, 0, 1, 1], [], []>} : vector<2x32xf32>, vector<32x128xf32>, vector<2x128xf32> -> vector<2x128xf32>
    %53 = arith.addf %51, %52 : vector<2x128xf32>
    %54 = vector.extract_strided_slice %53 {offsets = [0, 0], sizes = [2, 96], strides = [1, 1]} : vector<2x128xf32> to vector<2x96xf32>
    %55 = arith.negf %54 : vector<2x96xf32>
    %56 = math.exp %55 : vector<2x96xf32>
    %cst_19 = arith.constant 1.000000e+00 : f32
    %57 = vector.broadcast %cst_19 : f32 to vector<2x96xf32>
    %58 = arith.addf %57, %56 : vector<2x96xf32>
    %59 = arith.divf %57, %58 : vector<2x96xf32>
    %60 = vector.extract_strided_slice %59 {offsets = [0, 0], sizes = [2, 32], strides = [1, 1]} : vector<2x96xf32> to vector<2x32xf32>
    %61 = vector.extract_strided_slice %59 {offsets = [0, 32], sizes = [2, 32], strides = [1, 1]} : vector<2x96xf32> to vector<2x32xf32>
    %62 = vector.extract_strided_slice %59 {offsets = [0, 64], sizes = [2, 32], strides = [1, 1]} : vector<2x96xf32> to vector<2x32xf32>
    %63 = vector.extract_strided_slice %53 {offsets = [0, 96], sizes = [2, 32], strides = [1, 1]} : vector<2x128xf32> to vector<2x32xf32>
    %64 = math.tanh %63 : vector<2x32xf32>
    %65 = arith.mulf %61, %47 : vector<2x32xf32>
    %66 = arith.mulf %60, %64 : vector<2x32xf32>
    %67 = arith.addf %65, %66 : vector<2x32xf32>
    %68 = math.tanh %67 : vector<2x32xf32>
    %69 = arith.mulf %62, %68 : vector<2x32xf32>
    %c4 = arith.constant 4 : index
    %c0_20 = arith.constant 0 : index
    %70 = vector.load %arg10[%c4, %c0_20] : memref<16x64xf32, #tpu.memory_space<vmem>>, vector<2x32xf32>
    tpu.vector_store %arg10[%c4, %c0_20], %69 {strides = array<i32>} : memref<16x64xf32, #tpu.memory_space<vmem>>, vector<2x32xf32>,
    %71 = vector.extract_strided_slice %6 {offsets = [6, 0], sizes = [2, 128], strides = [1, 1]} : vector<16x256xf32> to vector<2x128xf32>
    %cst_21 = arith.constant dense<0.000000e+00> : vector<2x128xf32>
    %72 = tpu.matmul %69, %8, %cst_21 {dimension_numbers = #tpu.dot_dimension_numbers<[1], [0], [0], [1], [0, 0, 1, 1], [], []>} : vector<2x32xf32>, vector<32x128xf32>, vector<2x128xf32> -> vector<2x128xf32>
    %73 = arith.addf %71, %72 : vector<2x128xf32>
    %74 = vector.extract_strided_slice %73 {offsets = [0, 0], sizes = [2, 96], strides = [1, 1]} : vector<2x128xf32> to vector<2x96xf32>
    %75 = arith.negf %74 : vector<2x96xf32>
    %76 = math.exp %75 : vector<2x96xf32>
    %cst_22 = arith.constant 1.000000e+00 : f32
    %77 = vector.broadcast %cst_22 : f32 to vector<2x96xf32>
    %78 = arith.addf %77, %76 : vector<2x96xf32>
    %79 = arith.divf %77, %78 : vector<2x96xf32>
    %80 = vector.extract_strided_slice %79 {offsets = [0, 0], sizes = [2, 32], strides = [1, 1]} : vector<2x96xf32> to vector<2x32xf32>
    %81 = vector.extract_strided_slice %79 {offsets = [0, 32], sizes = [2, 32], strides = [1, 1]} : vector<2x96xf32> to vector<2x32xf32>
    %82 = vector.extract_strided_slice %79 {offsets = [0, 64], sizes = [2, 32], strides = [1, 1]} : vector<2x96xf32> to vector<2x32xf32>
    %83 = vector.extract_strided_slice %73 {offsets = [0, 96], sizes = [2, 32], strides = [1, 1]} : vector<2x128xf32> to vector<2x32xf32>
    %84 = math.tanh %83 : vector<2x32xf32>
    %85 = arith.mulf %81, %67 : vector<2x32xf32>
    %86 = arith.mulf %80, %84 : vector<2x32xf32>
    %87 = arith.addf %85, %86 : vector<2x32xf32>
    %88 = math.tanh %87 : vector<2x32xf32>
    %89 = arith.mulf %82, %88 : vector<2x32xf32>
    %c6 = arith.constant 6 : index
    %c0_23 = arith.constant 0 : index
    %90 = vector.load %arg10[%c6, %c0_23] : memref<16x64xf32, #tpu.memory_space<vmem>>, vector<2x32xf32>
    tpu.vector_store %arg10[%c6, %c0_23], %89 {strides = array<i32>} : memref<16x64xf32, #tpu.memory_space<vmem>>, vector<2x32xf32>,
    %91 = vector.extract_strided_slice %6 {offsets = [8, 0], sizes = [2, 128], strides = [1, 1]} : vector<16x256xf32> to vector<2x128xf32>
    %cst_24 = arith.constant dense<0.000000e+00> : vector<2x128xf32>
    %92 = tpu.matmul %89, %8, %cst_24 {dimension_numbers = #tpu.dot_dimension_numbers<[1], [0], [0], [1], [0, 0, 1, 1], [], []>} : vector<2x32xf32>, vector<32x128xf32>, vector<2x128xf32> -> vector<2x128xf32>
    %93 = arith.addf %91, %92 : vector<2x128xf32>
    %94 = vector.extract_strided_slice %93 {offsets = [0, 0], sizes = [2, 96], strides = [1, 1]} : vector<2x128xf32> to vector<2x96xf32>
    %95 = arith.negf %94 : vector<2x96xf32>
    %96 = math.exp %95 : vector<2x96xf32>
    %cst_25 = arith.constant 1.000000e+00 : f32
    %97 = vector.broadcast %cst_25 : f32 to vector<2x96xf32>
    %98 = arith.addf %97, %96 : vector<2x96xf32>
    %99 = arith.divf %97, %98 : vector<2x96xf32>
    %100 = vector.extract_strided_slice %99 {offsets = [0, 0], sizes = [2, 32], strides = [1, 1]} : vector<2x96xf32> to vector<2x32xf32>
    %101 = vector.extract_strided_slice %99 {offsets = [0, 32], sizes = [2, 32], strides = [1, 1]} : vector<2x96xf32> to vector<2x32xf32>
    %102 = vector.extract_strided_slice %99 {offsets = [0, 64], sizes = [2, 32], strides = [1, 1]} : vector<2x96xf32> to vector<2x32xf32>
    %103 = vector.extract_strided_slice %93 {offsets = [0, 96], sizes = [2, 32], strides = [1, 1]} : vector<2x128xf32> to vector<2x32xf32>
    %104 = math.tanh %103 : vector<2x32xf32>
    %105 = arith.mulf %101, %87 : vector<2x32xf32>
    %106 = arith.mulf %100, %104 : vector<2x32xf32>
    %107 = arith.addf %105, %106 : vector<2x32xf32>
    %108 = math.tanh %107 : vector<2x32xf32>
    %109 = arith.mulf %102, %108 : vector<2x32xf32>
    %c8 = arith.constant 8 : index
    %c0_26 = arith.constant 0 : index
    %110 = vector.load %arg10[%c8, %c0_26] : memref<16x64xf32, #tpu.memory_space<vmem>>, vector<2x32xf32>
    tpu.vector_store %arg10[%c8, %c0_26], %109 {strides = array<i32>} : memref<16x64xf32, #tpu.memory_space<vmem>>, vector<2x32xf32>,
    %111 = vector.extract_strided_slice %6 {offsets = [10, 0], sizes = [2, 128], strides = [1, 1]} : vector<16x256xf32> to vector<2x128xf32>
    %cst_27 = arith.constant dense<0.000000e+00> : vector<2x128xf32>
    %112 = tpu.matmul %109, %8, %cst_27 {dimension_numbers = #tpu.dot_dimension_numbers<[1], [0], [0], [1], [0, 0, 1, 1], [], []>} : vector<2x32xf32>, vector<32x128xf32>, vector<2x128xf32> -> vector<2x128xf32>
    %113 = arith.addf %111, %112 : vector<2x128xf32>
    %114 = vector.extract_strided_slice %113 {offsets = [0, 0], sizes = [2, 96], strides = [1, 1]} : vector<2x128xf32> to vector<2x96xf32>
    %115 = arith.negf %114 : vector<2x96xf32>
    %116 = math.exp %115 : vector<2x96xf32>
    %cst_28 = arith.constant 1.000000e+00 : f32
    %117 = vector.broadcast %cst_28 : f32 to vector<2x96xf32>
    %118 = arith.addf %117, %116 : vector<2x96xf32>
    %119 = arith.divf %117, %118 : vector<2x96xf32>
    %120 = vector.extract_strided_slice %119 {offsets = [0, 0], sizes = [2, 32], strides = [1, 1]} : vector<2x96xf32> to vector<2x32xf32>
    %121 = vector.extract_strided_slice %119 {offsets = [0, 32], sizes = [2, 32], strides = [1, 1]} : vector<2x96xf32> to vector<2x32xf32>
    %122 = vector.extract_strided_slice %119 {offsets = [0, 64], sizes = [2, 32], strides = [1, 1]} : vector<2x96xf32> to vector<2x32xf32>
    %123 = vector.extract_strided_slice %113 {offsets = [0, 96], sizes = [2, 32], strides = [1, 1]} : vector<2x128xf32> to vector<2x32xf32>
    %124 = math.tanh %123 : vector<2x32xf32>
    %125 = arith.mulf %121, %107 : vector<2x32xf32>
    %126 = arith.mulf %120, %124 : vector<2x32xf32>
    %127 = arith.addf %125, %126 : vector<2x32xf32>
    %128 = math.tanh %127 : vector<2x32xf32>
    %129 = arith.mulf %122, %128 : vector<2x32xf32>
    %c10 = arith.constant 10 : index
    %c0_29 = arith.constant 0 : index
    %130 = vector.load %arg10[%c10, %c0_29] : memref<16x64xf32, #tpu.memory_space<vmem>>, vector<2x32xf32>
    tpu.vector_store %arg10[%c10, %c0_29], %129 {strides = array<i32>} : memref<16x64xf32, #tpu.memory_space<vmem>>, vector<2x32xf32>,
    %131 = vector.extract_strided_slice %6 {offsets = [12, 0], sizes = [2, 128], strides = [1, 1]} : vector<16x256xf32> to vector<2x128xf32>
    %cst_30 = arith.constant dense<0.000000e+00> : vector<2x128xf32>
    %132 = tpu.matmul %129, %8, %cst_30 {dimension_numbers = #tpu.dot_dimension_numbers<[1], [0], [0], [1], [0, 0, 1, 1], [], []>} : vector<2x32xf32>, vector<32x128xf32>, vector<2x128xf32> -> vector<2x128xf32>
    %133 = arith.addf %131, %132 : vector<2x128xf32>
    %134 = vector.extract_strided_slice %133 {offsets = [0, 0], sizes = [2, 96], strides = [1, 1]} : vector<2x128xf32> to vector<2x96xf32>
    %135 = arith.negf %134 : vector<2x96xf32>
    %136 = math.exp %135 : vector<2x96xf32>
    %cst_31 = arith.constant 1.000000e+00 : f32
    %137 = vector.broadcast %cst_31 : f32 to vector<2x96xf32>
    %138 = arith.addf %137, %136 : vector<2x96xf32>
    %139 = arith.divf %137, %138 : vector<2x96xf32>
    %140 = vector.extract_strided_slice %139 {offsets = [0, 0], sizes = [2, 32], strides = [1, 1]} : vector<2x96xf32> to vector<2x32xf32>
    %141 = vector.extract_strided_slice %139 {offsets = [0, 32], sizes = [2, 32], strides = [1, 1]} : vector<2x96xf32> to vector<2x32xf32>
    %142 = vector.extract_strided_slice %139 {offsets = [0, 64], sizes = [2, 32], strides = [1, 1]} : vector<2x96xf32> to vector<2x32xf32>
    %143 = vector.extract_strided_slice %133 {offsets = [0, 96], sizes = [2, 32], strides = [1, 1]} : vector<2x128xf32> to vector<2x32xf32>
    %144 = math.tanh %143 : vector<2x32xf32>
    %145 = arith.mulf %141, %127 : vector<2x32xf32>
    %146 = arith.mulf %140, %144 : vector<2x32xf32>
    %147 = arith.addf %145, %146 : vector<2x32xf32>
    %148 = math.tanh %147 : vector<2x32xf32>
    %149 = arith.mulf %142, %148 : vector<2x32xf32>
    %c12 = arith.constant 12 : index
    %c0_32 = arith.constant 0 : index
    %150 = vector.load %arg10[%c12, %c0_32] : memref<16x64xf32, #tpu.memory_space<vmem>>, vector<2x32xf32>
    tpu.vector_store %arg10[%c12, %c0_32], %149 {strides = array<i32>} : memref<16x64xf32, #tpu.memory_space<vmem>>, vector<2x32xf32>,
    %151 = vector.extract_strided_slice %6 {offsets = [14, 0], sizes = [2, 128], strides = [1, 1]} : vector<16x256xf32> to vector<2x128xf32>
    %cst_33 = arith.constant dense<0.000000e+00> : vector<2x128xf32>
    %152 = tpu.matmul %149, %8, %cst_33 {dimension_numbers = #tpu.dot_dimension_numbers<[1], [0], [0], [1], [0, 0, 1, 1], [], []>} : vector<2x32xf32>, vector<32x128xf32>, vector<2x128xf32> -> vector<2x128xf32>
    %153 = arith.addf %151, %152 : vector<2x128xf32>
    %154 = vector.extract_strided_slice %153 {offsets = [0, 0], sizes = [2, 96], strides = [1, 1]} : vector<2x128xf32> to vector<2x96xf32>
    %155 = arith.negf %154 : vector<2x96xf32>
    %156 = math.exp %155 : vector<2x96xf32>
    %cst_34 = arith.constant 1.000000e+00 : f32
    %157 = vector.broadcast %cst_34 : f32 to vector<2x96xf32>
    %158 = arith.addf %157, %156 : vector<2x96xf32>
    %159 = arith.divf %157, %158 : vector<2x96xf32>
    %160 = vector.extract_strided_slice %159 {offsets = [0, 0], sizes = [2, 32], strides = [1, 1]} : vector<2x96xf32> to vector<2x32xf32>
    %161 = vector.extract_strided_slice %159 {offsets = [0, 32], sizes = [2, 32], strides = [1, 1]} : vector<2x96xf32> to vector<2x32xf32>
    %162 = vector.extract_strided_slice %159 {offsets = [0, 64], sizes = [2, 32], strides = [1, 1]} : vector<2x96xf32> to vector<2x32xf32>
    %163 = vector.extract_strided_slice %153 {offsets = [0, 96], sizes = [2, 32], strides = [1, 1]} : vector<2x128xf32> to vector<2x32xf32>
    %164 = math.tanh %163 : vector<2x32xf32>
    %165 = arith.mulf %161, %147 : vector<2x32xf32>
    %166 = arith.mulf %160, %164 : vector<2x32xf32>
    %167 = arith.addf %165, %166 : vector<2x32xf32>
    %168 = math.tanh %167 : vector<2x32xf32>
    %169 = arith.mulf %162, %168 : vector<2x32xf32>
    %c14 = arith.constant 14 : index
    %c0_35 = arith.constant 0 : index
    %170 = vector.load %arg10[%c14, %c0_35] : memref<16x64xf32, #tpu.memory_space<vmem>>, vector<2x32xf32>
    tpu.vector_store %arg10[%c14, %c0_35], %169 {strides = array<i32>} : memref<16x64xf32, #tpu.memory_space<vmem>>, vector<2x32xf32>,
    %171 = vector.extract_strided_slice %6 {offsets = [14, 128], sizes = [2, 128], strides = [1, 1]} : vector<16x256xf32> to vector<2x128xf32>
    %cst_36 = arith.constant dense<0.000000e+00> : vector<2x128xf32>
    %172 = tpu.matmul %1, %10, %cst_36 {dimension_numbers = #tpu.dot_dimension_numbers<[1], [0], [0], [1], [0, 0, 1, 1], [], []>} : vector<2x32xf32>, vector<32x128xf32>, vector<2x128xf32> -> vector<2x128xf32>
    %173 = arith.addf %171, %172 : vector<2x128xf32>
    %174 = vector.extract_strided_slice %173 {offsets = [0, 0], sizes = [2, 96], strides = [1, 1]} : vector<2x128xf32> to vector<2x96xf32>
    %175 = arith.negf %174 : vector<2x96xf32>
    %176 = math.exp %175 : vector<2x96xf32>
    %cst_37 = arith.constant 1.000000e+00 : f32
    %177 = vector.broadcast %cst_37 : f32 to vector<2x96xf32>
    %178 = arith.addf %177, %176 : vector<2x96xf32>
    %179 = arith.divf %177, %178 : vector<2x96xf32>
    %180 = vector.extract_strided_slice %179 {offsets = [0, 0], sizes = [2, 32], strides = [1, 1]} : vector<2x96xf32> to vector<2x32xf32>
    %181 = vector.extract_strided_slice %179 {offsets = [0, 32], sizes = [2, 32], strides = [1, 1]} : vector<2x96xf32> to vector<2x32xf32>
    %182 = vector.extract_strided_slice %179 {offsets = [0, 64], sizes = [2, 32], strides = [1, 1]} : vector<2x96xf32> to vector<2x32xf32>
    %183 = vector.extract_strided_slice %173 {offsets = [0, 96], sizes = [2, 32], strides = [1, 1]} : vector<2x128xf32> to vector<2x32xf32>
    %184 = math.tanh %183 : vector<2x32xf32>
    %185 = arith.mulf %181, %1 : vector<2x32xf32>
    %186 = arith.mulf %180, %184 : vector<2x32xf32>
    %187 = arith.addf %185, %186 : vector<2x32xf32>
    %188 = math.tanh %187 : vector<2x32xf32>
    %189 = arith.mulf %182, %188 : vector<2x32xf32>
    %c14_38 = arith.constant 14 : index
    %c32 = arith.constant 32 : index
    %190 = vector.load %arg10[%c14_38, %c32] : memref<16x64xf32, #tpu.memory_space<vmem>>, vector<2x32xf32>
    tpu.vector_store %arg10[%c14_38, %c32], %189 {strides = array<i32>} : memref<16x64xf32, #tpu.memory_space<vmem>>, vector<2x32xf32>,
    %191 = vector.extract_strided_slice %6 {offsets = [12, 128], sizes = [2, 128], strides = [1, 1]} : vector<16x256xf32> to vector<2x128xf32>
    %cst_39 = arith.constant dense<0.000000e+00> : vector<2x128xf32>
    %192 = tpu.matmul %189, %10, %cst_39 {dimension_numbers = #tpu.dot_dimension_numbers<[1], [0], [0], [1], [0, 0, 1, 1], [], []>} : vector<2x32xf32>, vector<32x128xf32>, vector<2x128xf32> -> vector<2x128xf32>
    %193 = arith.addf %191, %192 : vector<2x128xf32>
    %194 = vector.extract_strided_slice %193 {offsets = [0, 0], sizes = [2, 96], strides = [1, 1]} : vector<2x128xf32> to vector<2x96xf32>
    %195 = arith.negf %194 : vector<2x96xf32>
    %196 = math.exp %195 : vector<2x96xf32>
    %cst_40 = arith.constant 1.000000e+00 : f32
    %197 = vector.broadcast %cst_40 : f32 to vector<2x96xf32>
    %198 = arith.addf %197, %196 : vector<2x96xf32>
    %199 = arith.divf %197, %198 : vector<2x96xf32>
    %200 = vector.extract_strided_slice %199 {offsets = [0, 0], sizes = [2, 32], strides = [1, 1]} : vector<2x96xf32> to vector<2x32xf32>
    %201 = vector.extract_strided_slice %199 {offsets = [0, 32], sizes = [2, 32], strides = [1, 1]} : vector<2x96xf32> to vector<2x32xf32>
    %202 = vector.extract_strided_slice %199 {offsets = [0, 64], sizes = [2, 32], strides = [1, 1]} : vector<2x96xf32> to vector<2x32xf32>
    %203 = vector.extract_strided_slice %193 {offsets = [0, 96], sizes = [2, 32], strides = [1, 1]} : vector<2x128xf32> to vector<2x32xf32>
    %204 = math.tanh %203 : vector<2x32xf32>
    %205 = arith.mulf %201, %187 : vector<2x32xf32>
    %206 = arith.mulf %200, %204 : vector<2x32xf32>
    %207 = arith.addf %205, %206 : vector<2x32xf32>
    %208 = math.tanh %207 : vector<2x32xf32>
    %209 = arith.mulf %202, %208 : vector<2x32xf32>
    %c12_41 = arith.constant 12 : index
    %c32_42 = arith.constant 32 : index
    %210 = vector.load %arg10[%c12_41, %c32_42] : memref<16x64xf32, #tpu.memory_space<vmem>>, vector<2x32xf32>
    tpu.vector_store %arg10[%c12_41, %c32_42], %209 {strides = array<i32>} : memref<16x64xf32, #tpu.memory_space<vmem>>, vector<2x32xf32>,
    %211 = vector.extract_strided_slice %6 {offsets = [10, 128], sizes = [2, 128], strides = [1, 1]} : vector<16x256xf32> to vector<2x128xf32>
    %cst_43 = arith.constant dense<0.000000e+00> : vector<2x128xf32>
    %212 = tpu.matmul %209, %10, %cst_43 {dimension_numbers = #tpu.dot_dimension_numbers<[1], [0], [0], [1], [0, 0, 1, 1], [], []>} : vector<2x32xf32>, vector<32x128xf32>, vector<2x128xf32> -> vector<2x128xf32>
    %213 = arith.addf %211, %212 : vector<2x128xf32>
    %214 = vector.extract_strided_slice %213 {offsets = [0, 0], sizes = [2, 96], strides = [1, 1]} : vector<2x128xf32> to vector<2x96xf32>
    %215 = arith.negf %214 : vector<2x96xf32>
    %216 = math.exp %215 : vector<2x96xf32>
    %cst_44 = arith.constant 1.000000e+00 : f32
    %217 = vector.broadcast %cst_44 : f32 to vector<2x96xf32>
    %218 = arith.addf %217, %216 : vector<2x96xf32>
    %219 = arith.divf %217, %218 : vector<2x96xf32>
    %220 = vector.extract_strided_slice %219 {offsets = [0, 0], sizes = [2, 32], strides = [1, 1]} : vector<2x96xf32> to vector<2x32xf32>
    %221 = vector.extract_strided_slice %219 {offsets = [0, 32], sizes = [2, 32], strides = [1, 1]} : vector<2x96xf32> to vector<2x32xf32>
    %222 = vector.extract_strided_slice %219 {offsets = [0, 64], sizes = [2, 32], strides = [1, 1]} : vector<2x96xf32> to vector<2x32xf32>
    %223 = vector.extract_strided_slice %213 {offsets = [0, 96], sizes = [2, 32], strides = [1, 1]} : vector<2x128xf32> to vector<2x32xf32>
    %224 = math.tanh %223 : vector<2x32xf32>
    %225 = arith.mulf %221, %207 : vector<2x32xf32>
    %226 = arith.mulf %220, %224 : vector<2x32xf32>
    %227 = arith.addf %225, %226 : vector<2x32xf32>
    %228 = math.tanh %227 : vector<2x32xf32>
    %229 = arith.mulf %222, %228 : vector<2x32xf32>
    %c10_45 = arith.constant 10 : index
    %c32_46 = arith.constant 32 : index
    %230 = vector.load %arg10[%c10_45, %c32_46] : memref<16x64xf32, #tpu.memory_space<vmem>>, vector<2x32xf32>
    tpu.vector_store %arg10[%c10_45, %c32_46], %229 {strides = array<i32>} : memref<16x64xf32, #tpu.memory_space<vmem>>, vector<2x32xf32>,
    %231 = vector.extract_strided_slice %6 {offsets = [8, 128], sizes = [2, 128], strides = [1, 1]} : vector<16x256xf32> to vector<2x128xf32>
    %cst_47 = arith.constant dense<0.000000e+00> : vector<2x128xf32>
    %232 = tpu.matmul %229, %10, %cst_47 {dimension_numbers = #tpu.dot_dimension_numbers<[1], [0], [0], [1], [0, 0, 1, 1], [], []>} : vector<2x32xf32>, vector<32x128xf32>, vector<2x128xf32> -> vector<2x128xf32>
    %233 = arith.addf %231, %232 : vector<2x128xf32>
    %234 = vector.extract_strided_slice %233 {offsets = [0, 0], sizes = [2, 96], strides = [1, 1]} : vector<2x128xf32> to vector<2x96xf32>
    %235 = arith.negf %234 : vector<2x96xf32>
    %236 = math.exp %235 : vector<2x96xf32>
    %cst_48 = arith.constant 1.000000e+00 : f32
    %237 = vector.broadcast %cst_48 : f32 to vector<2x96xf32>
    %238 = arith.addf %237, %236 : vector<2x96xf32>
    %239 = arith.divf %237, %238 : vector<2x96xf32>
    %240 = vector.extract_strided_slice %239 {offsets = [0, 0], sizes = [2, 32], strides = [1, 1]} : vector<2x96xf32> to vector<2x32xf32>
    %241 = vector.extract_strided_slice %239 {offsets = [0, 32], sizes = [2, 32], strides = [1, 1]} : vector<2x96xf32> to vector<2x32xf32>
    %242 = vector.extract_strided_slice %239 {offsets = [0, 64], sizes = [2, 32], strides = [1, 1]} : vector<2x96xf32> to vector<2x32xf32>
    %243 = vector.extract_strided_slice %233 {offsets = [0, 96], sizes = [2, 32], strides = [1, 1]} : vector<2x128xf32> to vector<2x32xf32>
    %244 = math.tanh %243 : vector<2x32xf32>
    %245 = arith.mulf %241, %227 : vector<2x32xf32>
    %246 = arith.mulf %240, %244 : vector<2x32xf32>
    %247 = arith.addf %245, %246 : vector<2x32xf32>
    %248 = math.tanh %247 : vector<2x32xf32>
    %249 = arith.mulf %242, %248 : vector<2x32xf32>
    %c8_49 = arith.constant 8 : index
    %c32_50 = arith.constant 32 : index
    %250 = vector.load %arg10[%c8_49, %c32_50] : memref<16x64xf32, #tpu.memory_space<vmem>>, vector<2x32xf32>
    tpu.vector_store %arg10[%c8_49, %c32_50], %249 {strides = array<i32>} : memref<16x64xf32, #tpu.memory_space<vmem>>, vector<2x32xf32>,
    %251 = vector.extract_strided_slice %6 {offsets = [6, 128], sizes = [2, 128], strides = [1, 1]} : vector<16x256xf32> to vector<2x128xf32>
    %cst_51 = arith.constant dense<0.000000e+00> : vector<2x128xf32>
    %252 = tpu.matmul %249, %10, %cst_51 {dimension_numbers = #tpu.dot_dimension_numbers<[1], [0], [0], [1], [0, 0, 1, 1], [], []>} : vector<2x32xf32>, vector<32x128xf32>, vector<2x128xf32> -> vector<2x128xf32>
    %253 = arith.addf %251, %252 : vector<2x128xf32>
    %254 = vector.extract_strided_slice %253 {offsets = [0, 0], sizes = [2, 96], strides = [1, 1]} : vector<2x128xf32> to vector<2x96xf32>
    %255 = arith.negf %254 : vector<2x96xf32>
    %256 = math.exp %255 : vector<2x96xf32>
    %cst_52 = arith.constant 1.000000e+00 : f32
    %257 = vector.broadcast %cst_52 : f32 to vector<2x96xf32>
    %258 = arith.addf %257, %256 : vector<2x96xf32>
    %259 = arith.divf %257, %258 : vector<2x96xf32>
    %260 = vector.extract_strided_slice %259 {offsets = [0, 0], sizes = [2, 32], strides = [1, 1]} : vector<2x96xf32> to vector<2x32xf32>
    %261 = vector.extract_strided_slice %259 {offsets = [0, 32], sizes = [2, 32], strides = [1, 1]} : vector<2x96xf32> to vector<2x32xf32>
    %262 = vector.extract_strided_slice %259 {offsets = [0, 64], sizes = [2, 32], strides = [1, 1]} : vector<2x96xf32> to vector<2x32xf32>
    %263 = vector.extract_strided_slice %253 {offsets = [0, 96], sizes = [2, 32], strides = [1, 1]} : vector<2x128xf32> to vector<2x32xf32>
    %264 = math.tanh %263 : vector<2x32xf32>
    %265 = arith.mulf %261, %247 : vector<2x32xf32>
    %266 = arith.mulf %260, %264 : vector<2x32xf32>
    %267 = arith.addf %265, %266 : vector<2x32xf32>
    %268 = math.tanh %267 : vector<2x32xf32>
    %269 = arith.mulf %262, %268 : vector<2x32xf32>
    %c6_53 = arith.constant 6 : index
    %c32_54 = arith.constant 32 : index
    %270 = vector.load %arg10[%c6_53, %c32_54] : memref<16x64xf32, #tpu.memory_space<vmem>>, vector<2x32xf32>
    tpu.vector_store %arg10[%c6_53, %c32_54], %269 {strides = array<i32>} : memref<16x64xf32, #tpu.memory_space<vmem>>, vector<2x32xf32>,
    %271 = vector.extract_strided_slice %6 {offsets = [4, 128], sizes = [2, 128], strides = [1, 1]} : vector<16x256xf32> to vector<2x128xf32>
    %cst_55 = arith.constant dense<0.000000e+00> : vector<2x128xf32>
    %272 = tpu.matmul %269, %10, %cst_55 {dimension_numbers = #tpu.dot_dimension_numbers<[1], [0], [0], [1], [0, 0, 1, 1], [], []>} : vector<2x32xf32>, vector<32x128xf32>, vector<2x128xf32> -> vector<2x128xf32>
    %273 = arith.addf %271, %272 : vector<2x128xf32>
    %274 = vector.extract_strided_slice %273 {offsets = [0, 0], sizes = [2, 96], strides = [1, 1]} : vector<2x128xf32> to vector<2x96xf32>
    %275 = arith.negf %274 : vector<2x96xf32>
    %276 = math.exp %275 : vector<2x96xf32>
    %cst_56 = arith.constant 1.000000e+00 : f32
    %277 = vector.broadcast %cst_56 : f32 to vector<2x96xf32>
    %278 = arith.addf %277, %276 : vector<2x96xf32>
    %279 = arith.divf %277, %278 : vector<2x96xf32>
    %280 = vector.extract_strided_slice %279 {offsets = [0, 0], sizes = [2, 32], strides = [1, 1]} : vector<2x96xf32> to vector<2x32xf32>
    %281 = vector.extract_strided_slice %279 {offsets = [0, 32], sizes = [2, 32], strides = [1, 1]} : vector<2x96xf32> to vector<2x32xf32>
    %282 = vector.extract_strided_slice %279 {offsets = [0, 64], sizes = [2, 32], strides = [1, 1]} : vector<2x96xf32> to vector<2x32xf32>
    %283 = vector.extract_strided_slice %273 {offsets = [0, 96], sizes = [2, 32], strides = [1, 1]} : vector<2x128xf32> to vector<2x32xf32>
    %284 = math.tanh %283 : vector<2x32xf32>
    %285 = arith.mulf %281, %267 : vector<2x32xf32>
    %286 = arith.mulf %280, %284 : vector<2x32xf32>
    %287 = arith.addf %285, %286 : vector<2x32xf32>
    %288 = math.tanh %287 : vector<2x32xf32>
    %289 = arith.mulf %282, %288 : vector<2x32xf32>
    %c4_57 = arith.constant 4 : index
    %c32_58 = arith.constant 32 : index
    %290 = vector.load %arg10[%c4_57, %c32_58] : memref<16x64xf32, #tpu.memory_space<vmem>>, vector<2x32xf32>
    tpu.vector_store %arg10[%c4_57, %c32_58], %289 {strides = array<i32>} : memref<16x64xf32, #tpu.memory_space<vmem>>, vector<2x32xf32>,
    %291 = vector.extract_strided_slice %6 {offsets = [2, 128], sizes = [2, 128], strides = [1, 1]} : vector<16x256xf32> to vector<2x128xf32>
    %cst_59 = arith.constant dense<0.000000e+00> : vector<2x128xf32>
    %292 = tpu.matmul %289, %10, %cst_59 {dimension_numbers = #tpu.dot_dimension_numbers<[1], [0], [0], [1], [0, 0, 1, 1], [], []>} : vector<2x32xf32>, vector<32x128xf32>, vector<2x128xf32> -> vector<2x128xf32>
    %293 = arith.addf %291, %292 : vector<2x128xf32>
    %294 = vector.extract_strided_slice %293 {offsets = [0, 0], sizes = [2, 96], strides = [1, 1]} : vector<2x128xf32> to vector<2x96xf32>
    %295 = arith.negf %294 : vector<2x96xf32>
    %296 = math.exp %295 : vector<2x96xf32>
    %cst_60 = arith.constant 1.000000e+00 : f32
    %297 = vector.broadcast %cst_60 : f32 to vector<2x96xf32>
    %298 = arith.addf %297, %296 : vector<2x96xf32>
    %299 = arith.divf %297, %298 : vector<2x96xf32>
    %300 = vector.extract_strided_slice %299 {offsets = [0, 0], sizes = [2, 32], strides = [1, 1]} : vector<2x96xf32> to vector<2x32xf32>
    %301 = vector.extract_strided_slice %299 {offsets = [0, 32], sizes = [2, 32], strides = [1, 1]} : vector<2x96xf32> to vector<2x32xf32>
    %302 = vector.extract_strided_slice %299 {offsets = [0, 64], sizes = [2, 32], strides = [1, 1]} : vector<2x96xf32> to vector<2x32xf32>
    %303 = vector.extract_strided_slice %293 {offsets = [0, 96], sizes = [2, 32], strides = [1, 1]} : vector<2x128xf32> to vector<2x32xf32>
    %304 = math.tanh %303 : vector<2x32xf32>
    %305 = arith.mulf %301, %287 : vector<2x32xf32>
    %306 = arith.mulf %300, %304 : vector<2x32xf32>
    %307 = arith.addf %305, %306 : vector<2x32xf32>
    %308 = math.tanh %307 : vector<2x32xf32>
    %309 = arith.mulf %302, %308 : vector<2x32xf32>
    %c2_61 = arith.constant 2 : index
    %c32_62 = arith.constant 32 : index
    %310 = vector.load %arg10[%c2_61, %c32_62] : memref<16x64xf32, #tpu.memory_space<vmem>>, vector<2x32xf32>
    tpu.vector_store %arg10[%c2_61, %c32_62], %309 {strides = array<i32>} : memref<16x64xf32, #tpu.memory_space<vmem>>, vector<2x32xf32>,
    %311 = vector.extract_strided_slice %6 {offsets = [0, 128], sizes = [2, 128], strides = [1, 1]} : vector<16x256xf32> to vector<2x128xf32>
    %cst_63 = arith.constant dense<0.000000e+00> : vector<2x128xf32>
    %312 = tpu.matmul %309, %10, %cst_63 {dimension_numbers = #tpu.dot_dimension_numbers<[1], [0], [0], [1], [0, 0, 1, 1], [], []>} : vector<2x32xf32>, vector<32x128xf32>, vector<2x128xf32> -> vector<2x128xf32>
    %313 = arith.addf %311, %312 : vector<2x128xf32>
    %314 = vector.extract_strided_slice %313 {offsets = [0, 0], sizes = [2, 96], strides = [1, 1]} : vector<2x128xf32> to vector<2x96xf32>
    %315 = arith.negf %314 : vector<2x96xf32>
    %316 = math.exp %315 : vector<2x96xf32>
    %cst_64 = arith.constant 1.000000e+00 : f32
    %317 = vector.broadcast %cst_64 : f32 to vector<2x96xf32>
    %318 = arith.addf %317, %316 : vector<2x96xf32>
    %319 = arith.divf %317, %318 : vector<2x96xf32>
    %320 = vector.extract_strided_slice %319 {offsets = [0, 0], sizes = [2, 32], strides = [1, 1]} : vector<2x96xf32> to vector<2x32xf32>
    %321 = vector.extract_strided_slice %319 {offsets = [0, 32], sizes = [2, 32], strides = [1, 1]} : vector<2x96xf32> to vector<2x32xf32>
    %322 = vector.extract_strided_slice %319 {offsets = [0, 64], sizes = [2, 32], strides = [1, 1]} : vector<2x96xf32> to vector<2x32xf32>
    %323 = vector.extract_strided_slice %313 {offsets = [0, 96], sizes = [2, 32], strides = [1, 1]} : vector<2x128xf32> to vector<2x32xf32>
    %324 = math.tanh %323 : vector<2x32xf32>
    %325 = arith.mulf %321, %307 : vector<2x32xf32>
    %326 = arith.mulf %320, %324 : vector<2x32xf32>
    %327 = arith.addf %325, %326 : vector<2x32xf32>
    %328 = math.tanh %327 : vector<2x32xf32>
    %329 = arith.mulf %322, %328 : vector<2x32xf32>
    %c0_65 = arith.constant 0 : index
    %c32_66 = arith.constant 32 : index
    %330 = vector.load %arg10[%c0_65, %c32_66] : memref<16x64xf32, #tpu.memory_space<vmem>>, vector<2x32xf32>
    tpu.vector_store %arg10[%c0_65, %c32_66], %329 {strides = array<i32>} : memref<16x64xf32, #tpu.memory_space<vmem>>, vector<2x32xf32>,
    %c0_67 = arith.constant 0 : index
    %c0_68 = arith.constant 0 : index
    %331 = vector.load %arg10[%c0_67, %c0_68] : memref<16x64xf32, #tpu.memory_space<vmem>>, vector<16x64xf32>
    %c0_69 = arith.constant 0 : index
    %c0_70 = arith.constant 0 : index
    %332 = vector.load %arg4[%c0_69, %c0_70] : memref<64x256xf32, #tpu.memory_space<vmem>>, vector<64x256xf32>
    %cst_71 = arith.constant dense<0.000000e+00> : vector<16x256xf32>
    %333 = tpu.matmul %331, %332, %cst_71 {dimension_numbers = #tpu.dot_dimension_numbers<[1], [0], [0], [1], [0, 0, 1, 1], [], []>} : vector<16x64xf32>, vector<64x256xf32>, vector<16x256xf32> -> vector<16x256xf32>
    %c0_72 = arith.constant 0 : index
    %c0_73 = arith.constant 0 : index
    %334 = vector.load %arg6[%c0_72, %c0_73] : memref<1x256xf32, #tpu.memory_space<vmem>>, vector<1x256xf32>
    %335 = vector.broadcast %334 : vector<1x256xf32> to vector<16x256xf32>
    %336 = arith.addf %333, %335 : vector<16x256xf32>
    %c0_74 = arith.constant 0 : index
    %c0_75 = arith.constant 0 : index
    %c0_76 = arith.constant 0 : index
    %337 = vector.load %arg5[%c0_74, %c0_75, %c0_76] : memref<2x32x128xf32, #tpu.memory_space<vmem>>, vector<1x32x128xf32>
    %338 = vector.shape_cast %337 : vector<1x32x128xf32> to vector<32x128xf32>
    %339 = vector.extract_strided_slice %336 {offsets = [0, 0], sizes = [2, 128], strides = [1, 1]} : vector<16x256xf32> to vector<2x128xf32>
    %cst_77 = arith.constant dense<0.000000e+00> : vector<2x128xf32>
    %340 = tpu.matmul %1, %338, %cst_77 {dimension_numbers = #tpu.dot_dimension_numbers<[1], [0], [0], [1], [0, 0, 1, 1], [], []>} : vector<2x32xf32>, vector<32x128xf32>, vector<2x128xf32> -> vector<2x128xf32>
    %341 = arith.addf %339, %340 : vector<2x128xf32>
    %342 = vector.extract_strided_slice %341 {offsets = [0, 0], sizes = [2, 96], strides = [1, 1]} : vector<2x128xf32> to vector<2x96xf32>
    %343 = arith.negf %342 : vector<2x96xf32>
    %344 = math.exp %343 : vector<2x96xf32>
    %cst_78 = arith.constant 1.000000e+00 : f32
    %345 = vector.broadcast %cst_78 : f32 to vector<2x96xf32>
    %346 = arith.addf %345, %344 : vector<2x96xf32>
    %347 = arith.divf %345, %346 : vector<2x96xf32>
    %348 = vector.extract_strided_slice %347 {offsets = [0, 0], sizes = [2, 32], strides = [1, 1]} : vector<2x96xf32> to vector<2x32xf32>
    %349 = vector.extract_strided_slice %347 {offsets = [0, 32], sizes = [2, 32], strides = [1, 1]} : vector<2x96xf32> to vector<2x32xf32>
    %350 = vector.extract_strided_slice %347 {offsets = [0, 64], sizes = [2, 32], strides = [1, 1]} : vector<2x96xf32> to vector<2x32xf32>
    %351 = vector.extract_strided_slice %341 {offsets = [0, 96], sizes = [2, 32], strides = [1, 1]} : vector<2x128xf32> to vector<2x32xf32>
    %352 = math.tanh %351 : vector<2x32xf32>
    %353 = arith.mulf %349, %1 : vector<2x32xf32>
    %354 = arith.mulf %348, %352 : vector<2x32xf32>
    %355 = arith.addf %353, %354 : vector<2x32xf32>
    %356 = math.tanh %355 : vector<2x32xf32>
    %357 = arith.mulf %350, %356 : vector<2x32xf32>
    %358 = vector.extract_strided_slice %336 {offsets = [2, 0], sizes = [2, 128], strides = [1, 1]} : vector<16x256xf32> to vector<2x128xf32>
    %cst_79 = arith.constant dense<0.000000e+00> : vector<2x128xf32>
    %359 = tpu.matmul %357, %338, %cst_79 {dimension_numbers = #tpu.dot_dimension_numbers<[1], [0], [0], [1], [0, 0, 1, 1], [], []>} : vector<2x32xf32>, vector<32x128xf32>, vector<2x128xf32> -> vector<2x128xf32>
    %360 = arith.addf %358, %359 : vector<2x128xf32>
    %361 = vector.extract_strided_slice %360 {offsets = [0, 0], sizes = [2, 96], strides = [1, 1]} : vector<2x128xf32> to vector<2x96xf32>
    %362 = arith.negf %361 : vector<2x96xf32>
    %363 = math.exp %362 : vector<2x96xf32>
    %cst_80 = arith.constant 1.000000e+00 : f32
    %364 = vector.broadcast %cst_80 : f32 to vector<2x96xf32>
    %365 = arith.addf %364, %363 : vector<2x96xf32>
    %366 = arith.divf %364, %365 : vector<2x96xf32>
    %367 = vector.extract_strided_slice %366 {offsets = [0, 0], sizes = [2, 32], strides = [1, 1]} : vector<2x96xf32> to vector<2x32xf32>
    %368 = vector.extract_strided_slice %366 {offsets = [0, 32], sizes = [2, 32], strides = [1, 1]} : vector<2x96xf32> to vector<2x32xf32>
    %369 = vector.extract_strided_slice %366 {offsets = [0, 64], sizes = [2, 32], strides = [1, 1]} : vector<2x96xf32> to vector<2x32xf32>
    %370 = vector.extract_strided_slice %360 {offsets = [0, 96], sizes = [2, 32], strides = [1, 1]} : vector<2x128xf32> to vector<2x32xf32>
    %371 = math.tanh %370 : vector<2x32xf32>
    %372 = arith.mulf %368, %355 : vector<2x32xf32>
    %373 = arith.mulf %367, %371 : vector<2x32xf32>
    %374 = arith.addf %372, %373 : vector<2x32xf32>
    %375 = math.tanh %374 : vector<2x32xf32>
    %376 = arith.mulf %369, %375 : vector<2x32xf32>
    %377 = vector.extract_strided_slice %336 {offsets = [4, 0], sizes = [2, 128], strides = [1, 1]} : vector<16x256xf32> to vector<2x128xf32>
    %cst_81 = arith.constant dense<0.000000e+00> : vector<2x128xf32>
    %378 = tpu.matmul %376, %338, %cst_81 {dimension_numbers = #tpu.dot_dimension_numbers<[1], [0], [0], [1], [0, 0, 1, 1], [], []>} : vector<2x32xf32>, vector<32x128xf32>, vector<2x128xf32> -> vector<2x128xf32>
    %379 = arith.addf %377, %378 : vector<2x128xf32>
    %380 = vector.extract_strided_slice %379 {offsets = [0, 0], sizes = [2, 96], strides = [1, 1]} : vector<2x128xf32> to vector<2x96xf32>
    %381 = arith.negf %380 : vector<2x96xf32>
    %382 = math.exp %381 : vector<2x96xf32>
    %cst_82 = arith.constant 1.000000e+00 : f32
    %383 = vector.broadcast %cst_82 : f32 to vector<2x96xf32>
    %384 = arith.addf %383, %382 : vector<2x96xf32>
    %385 = arith.divf %383, %384 : vector<2x96xf32>
    %386 = vector.extract_strided_slice %385 {offsets = [0, 0], sizes = [2, 32], strides = [1, 1]} : vector<2x96xf32> to vector<2x32xf32>
    %387 = vector.extract_strided_slice %385 {offsets = [0, 32], sizes = [2, 32], strides = [1, 1]} : vector<2x96xf32> to vector<2x32xf32>
    %388 = vector.extract_strided_slice %385 {offsets = [0, 64], sizes = [2, 32], strides = [1, 1]} : vector<2x96xf32> to vector<2x32xf32>
    %389 = vector.extract_strided_slice %379 {offsets = [0, 96], sizes = [2, 32], strides = [1, 1]} : vector<2x128xf32> to vector<2x32xf32>
    %390 = math.tanh %389 : vector<2x32xf32>
    %391 = arith.mulf %387, %374 : vector<2x32xf32>
    %392 = arith.mulf %386, %390 : vector<2x32xf32>
    %393 = arith.addf %391, %392 : vector<2x32xf32>
    %394 = math.tanh %393 : vector<2x32xf32>
    %395 = arith.mulf %388, %394 : vector<2x32xf32>
    %396 = vector.extract_strided_slice %336 {offsets = [6, 0], sizes = [2, 128], strides = [1, 1]} : vector<16x256xf32> to vector<2x128xf32>
    %cst_83 = arith.constant dense<0.000000e+00> : vector<2x128xf32>
    %397 = tpu.matmul %395, %338, %cst_83 {dimension_numbers = #tpu.dot_dimension_numbers<[1], [0], [0], [1], [0, 0, 1, 1], [], []>} : vector<2x32xf32>, vector<32x128xf32>, vector<2x128xf32> -> vector<2x128xf32>
    %398 = arith.addf %396, %397 : vector<2x128xf32>
    %399 = vector.extract_strided_slice %398 {offsets = [0, 0], sizes = [2, 96], strides = [1, 1]} : vector<2x128xf32> to vector<2x96xf32>
    %400 = arith.negf %399 : vector<2x96xf32>
    %401 = math.exp %400 : vector<2x96xf32>
    %cst_84 = arith.constant 1.000000e+00 : f32
    %402 = vector.broadcast %cst_84 : f32 to vector<2x96xf32>
    %403 = arith.addf %402, %401 : vector<2x96xf32>
    %404 = arith.divf %402, %403 : vector<2x96xf32>
    %405 = vector.extract_strided_slice %404 {offsets = [0, 0], sizes = [2, 32], strides = [1, 1]} : vector<2x96xf32> to vector<2x32xf32>
    %406 = vector.extract_strided_slice %404 {offsets = [0, 32], sizes = [2, 32], strides = [1, 1]} : vector<2x96xf32> to vector<2x32xf32>
    %407 = vector.extract_strided_slice %404 {offsets = [0, 64], sizes = [2, 32], strides = [1, 1]} : vector<2x96xf32> to vector<2x32xf32>
    %408 = vector.extract_strided_slice %398 {offsets = [0, 96], sizes = [2, 32], strides = [1, 1]} : vector<2x128xf32> to vector<2x32xf32>
    %409 = math.tanh %408 : vector<2x32xf32>
    %410 = arith.mulf %406, %393 : vector<2x32xf32>
    %411 = arith.mulf %405, %409 : vector<2x32xf32>
    %412 = arith.addf %410, %411 : vector<2x32xf32>
    %413 = math.tanh %412 : vector<2x32xf32>
    %414 = arith.mulf %407, %413 : vector<2x32xf32>
    %415 = vector.extract_strided_slice %336 {offsets = [8, 0], sizes = [2, 128], strides = [1, 1]} : vector<16x256xf32> to vector<2x128xf32>
    %cst_85 = arith.constant dense<0.000000e+00> : vector<2x128xf32>
    %416 = tpu.matmul %414, %338, %cst_85 {dimension_numbers = #tpu.dot_dimension_numbers<[1], [0], [0], [1], [0, 0, 1, 1], [], []>} : vector<2x32xf32>, vector<32x128xf32>, vector<2x128xf32> -> vector<2x128xf32>
    %417 = arith.addf %415, %416 : vector<2x128xf32>
    %418 = vector.extract_strided_slice %417 {offsets = [0, 0], sizes = [2, 96], strides = [1, 1]} : vector<2x128xf32> to vector<2x96xf32>
    %419 = arith.negf %418 : vector<2x96xf32>
    %420 = math.exp %419 : vector<2x96xf32>
    %cst_86 = arith.constant 1.000000e+00 : f32
    %421 = vector.broadcast %cst_86 : f32 to vector<2x96xf32>
    %422 = arith.addf %421, %420 : vector<2x96xf32>
    %423 = arith.divf %421, %422 : vector<2x96xf32>
    %424 = vector.extract_strided_slice %423 {offsets = [0, 0], sizes = [2, 32], strides = [1, 1]} : vector<2x96xf32> to vector<2x32xf32>
    %425 = vector.extract_strided_slice %423 {offsets = [0, 32], sizes = [2, 32], strides = [1, 1]} : vector<2x96xf32> to vector<2x32xf32>
    %426 = vector.extract_strided_slice %423 {offsets = [0, 64], sizes = [2, 32], strides = [1, 1]} : vector<2x96xf32> to vector<2x32xf32>
    %427 = vector.extract_strided_slice %417 {offsets = [0, 96], sizes = [2, 32], strides = [1, 1]} : vector<2x128xf32> to vector<2x32xf32>
    %428 = math.tanh %427 : vector<2x32xf32>
    %429 = arith.mulf %425, %412 : vector<2x32xf32>
    %430 = arith.mulf %424, %428 : vector<2x32xf32>
    %431 = arith.addf %429, %430 : vector<2x32xf32>
    %432 = math.tanh %431 : vector<2x32xf32>
    %433 = arith.mulf %426, %432 : vector<2x32xf32>
    %434 = vector.extract_strided_slice %336 {offsets = [10, 0], sizes = [2, 128], strides = [1, 1]} : vector<16x256xf32> to vector<2x128xf32>
    %cst_87 = arith.constant dense<0.000000e+00> : vector<2x128xf32>
    %435 = tpu.matmul %433, %338, %cst_87 {dimension_numbers = #tpu.dot_dimension_numbers<[1], [0], [0], [1], [0, 0, 1, 1], [], []>} : vector<2x32xf32>, vector<32x128xf32>, vector<2x128xf32> -> vector<2x128xf32>
    %436 = arith.addf %434, %435 : vector<2x128xf32>
    %437 = vector.extract_strided_slice %436 {offsets = [0, 0], sizes = [2, 96], strides = [1, 1]} : vector<2x128xf32> to vector<2x96xf32>
    %438 = arith.negf %437 : vector<2x96xf32>
    %439 = math.exp %438 : vector<2x96xf32>
    %cst_88 = arith.constant 1.000000e+00 : f32
    %440 = vector.broadcast %cst_88 : f32 to vector<2x96xf32>
    %441 = arith.addf %440, %439 : vector<2x96xf32>
    %442 = arith.divf %440, %441 : vector<2x96xf32>
    %443 = vector.extract_strided_slice %442 {offsets = [0, 0], sizes = [2, 32], strides = [1, 1]} : vector<2x96xf32> to vector<2x32xf32>
    %444 = vector.extract_strided_slice %442 {offsets = [0, 32], sizes = [2, 32], strides = [1, 1]} : vector<2x96xf32> to vector<2x32xf32>
    %445 = vector.extract_strided_slice %442 {offsets = [0, 64], sizes = [2, 32], strides = [1, 1]} : vector<2x96xf32> to vector<2x32xf32>
    %446 = vector.extract_strided_slice %436 {offsets = [0, 96], sizes = [2, 32], strides = [1, 1]} : vector<2x128xf32> to vector<2x32xf32>
    %447 = math.tanh %446 : vector<2x32xf32>
    %448 = arith.mulf %444, %431 : vector<2x32xf32>
    %449 = arith.mulf %443, %447 : vector<2x32xf32>
    %450 = arith.addf %448, %449 : vector<2x32xf32>
    %451 = math.tanh %450 : vector<2x32xf32>
    %452 = arith.mulf %445, %451 : vector<2x32xf32>
    %453 = vector.extract_strided_slice %336 {offsets = [12, 0], sizes = [2, 128], strides = [1, 1]} : vector<16x256xf32> to vector<2x128xf32>
    %cst_89 = arith.constant dense<0.000000e+00> : vector<2x128xf32>
    %454 = tpu.matmul %452, %338, %cst_89 {dimension_numbers = #tpu.dot_dimension_numbers<[1], [0], [0], [1], [0, 0, 1, 1], [], []>} : vector<2x32xf32>, vector<32x128xf32>, vector<2x128xf32> -> vector<2x128xf32>
    %455 = arith.addf %453, %454 : vector<2x128xf32>
    %456 = vector.extract_strided_slice %455 {offsets = [0, 0], sizes = [2, 96], strides = [1, 1]} : vector<2x128xf32> to vector<2x96xf32>
    %457 = arith.negf %456 : vector<2x96xf32>
    %458 = math.exp %457 : vector<2x96xf32>
    %cst_90 = arith.constant 1.000000e+00 : f32
    %459 = vector.broadcast %cst_90 : f32 to vector<2x96xf32>
    %460 = arith.addf %459, %458 : vector<2x96xf32>
    %461 = arith.divf %459, %460 : vector<2x96xf32>
    %462 = vector.extract_strided_slice %461 {offsets = [0, 0], sizes = [2, 32], strides = [1, 1]} : vector<2x96xf32> to vector<2x32xf32>
    %463 = vector.extract_strided_slice %461 {offsets = [0, 32], sizes = [2, 32], strides = [1, 1]} : vector<2x96xf32> to vector<2x32xf32>
    %464 = vector.extract_strided_slice %461 {offsets = [0, 64], sizes = [2, 32], strides = [1, 1]} : vector<2x96xf32> to vector<2x32xf32>
    %465 = vector.extract_strided_slice %455 {offsets = [0, 96], sizes = [2, 32], strides = [1, 1]} : vector<2x128xf32> to vector<2x32xf32>
    %466 = math.tanh %465 : vector<2x32xf32>
    %467 = arith.mulf %463, %450 : vector<2x32xf32>
    %468 = arith.mulf %462, %466 : vector<2x32xf32>
    %469 = arith.addf %467, %468 : vector<2x32xf32>
    %470 = math.tanh %469 : vector<2x32xf32>
    %471 = arith.mulf %464, %470 : vector<2x32xf32>
    %472 = vector.extract_strided_slice %336 {offsets = [14, 0], sizes = [2, 128], strides = [1, 1]} : vector<16x256xf32> to vector<2x128xf32>
    %cst_91 = arith.constant dense<0.000000e+00> : vector<2x128xf32>
    %473 = tpu.matmul %471, %338, %cst_91 {dimension_numbers = #tpu.dot_dimension_numbers<[1], [0], [0], [1], [0, 0, 1, 1], [], []>} : vector<2x32xf32>, vector<32x128xf32>, vector<2x128xf32> -> vector<2x128xf32>
    %474 = arith.addf %472, %473 : vector<2x128xf32>
    %475 = vector.extract_strided_slice %474 {offsets = [0, 0], sizes = [2, 96], strides = [1, 1]} : vector<2x128xf32> to vector<2x96xf32>
    %476 = arith.negf %475 : vector<2x96xf32>
    %477 = math.exp %476 : vector<2x96xf32>
    %cst_92 = arith.constant 1.000000e+00 : f32
    %478 = vector.broadcast %cst_92 : f32 to vector<2x96xf32>
    %479 = arith.addf %478, %477 : vector<2x96xf32>
    %480 = arith.divf %478, %479 : vector<2x96xf32>
    %481 = vector.extract_strided_slice %480 {offsets = [0, 0], sizes = [2, 32], strides = [1, 1]} : vector<2x96xf32> to vector<2x32xf32>
    %482 = vector.extract_strided_slice %480 {offsets = [0, 32], sizes = [2, 32], strides = [1, 1]} : vector<2x96xf32> to vector<2x32xf32>
    %483 = vector.extract_strided_slice %480 {offsets = [0, 64], sizes = [2, 32], strides = [1, 1]} : vector<2x96xf32> to vector<2x32xf32>
    %484 = vector.extract_strided_slice %474 {offsets = [0, 96], sizes = [2, 32], strides = [1, 1]} : vector<2x128xf32> to vector<2x32xf32>
    %485 = math.tanh %484 : vector<2x32xf32>
    %486 = arith.mulf %482, %469 : vector<2x32xf32>
    %487 = arith.mulf %481, %485 : vector<2x32xf32>
    %488 = arith.addf %486, %487 : vector<2x32xf32>
    %489 = math.tanh %488 : vector<2x32xf32>
    %490 = arith.mulf %483, %489 : vector<2x32xf32>
    %491 = vector.extract_strided_slice %336 {offsets = [14, 128], sizes = [2, 128], strides = [1, 1]} : vector<16x256xf32> to vector<2x128xf32>
    %c1_93 = arith.constant 1 : index
    %c0_94 = arith.constant 0 : index
    %c0_95 = arith.constant 0 : index
    %492 = vector.load %arg5[%c1_93, %c0_94, %c0_95] : memref<2x32x128xf32, #tpu.memory_space<vmem>>, vector<1x32x128xf32>
    %493 = vector.shape_cast %492 : vector<1x32x128xf32> to vector<32x128xf32>
    %cst_96 = arith.constant dense<0.000000e+00> : vector<2x128xf32>
    %494 = tpu.matmul %1, %493, %cst_96 {dimension_numbers = #tpu.dot_dimension_numbers<[1], [0], [0], [1], [0, 0, 1, 1], [], []>} : vector<2x32xf32>, vector<32x128xf32>, vector<2x128xf32> -> vector<2x128xf32>
    %495 = arith.addf %491, %494 : vector<2x128xf32>
    %496 = vector.extract_strided_slice %495 {offsets = [0, 0], sizes = [2, 96], strides = [1, 1]} : vector<2x128xf32> to vector<2x96xf32>
    %497 = arith.negf %496 : vector<2x96xf32>
    %498 = math.exp %497 : vector<2x96xf32>
    %cst_97 = arith.constant 1.000000e+00 : f32
    %499 = vector.broadcast %cst_97 : f32 to vector<2x96xf32>
    %500 = arith.addf %499, %498 : vector<2x96xf32>
    %501 = arith.divf %499, %500 : vector<2x96xf32>
    %502 = vector.extract_strided_slice %501 {offsets = [0, 0], sizes = [2, 32], strides = [1, 1]} : vector<2x96xf32> to vector<2x32xf32>
    %503 = vector.extract_strided_slice %501 {offsets = [0, 32], sizes = [2, 32], strides = [1, 1]} : vector<2x96xf32> to vector<2x32xf32>
    %504 = vector.extract_strided_slice %501 {offsets = [0, 64], sizes = [2, 32], strides = [1, 1]} : vector<2x96xf32> to vector<2x32xf32>
    %505 = vector.extract_strided_slice %495 {offsets = [0, 96], sizes = [2, 32], strides = [1, 1]} : vector<2x128xf32> to vector<2x32xf32>
    %506 = math.tanh %505 : vector<2x32xf32>
    %507 = arith.mulf %503, %1 : vector<2x32xf32>
    %508 = arith.mulf %502, %506 : vector<2x32xf32>
    %509 = arith.addf %507, %508 : vector<2x32xf32>
    %510 = math.tanh %509 : vector<2x32xf32>
    %511 = arith.mulf %504, %510 : vector<2x32xf32>
    %c0_98 = arith.constant 0 : index
    %c0_99 = arith.constant 0 : index
    %512 = vector.load %arg7[%c0_98, %c0_99] : memref<64x1xf32, #tpu.memory_space<vmem>>, vector<32x1xf32>
    %cst_100 = arith.constant dense<0.000000e+00> : vector<2x1xf32>
    %513 = tpu.matmul %490, %512, %cst_100 {dimension_numbers = #tpu.dot_dimension_numbers<[1], [0], [0], [1], [0, 0, 1, 1], [], []>} : vector<2x32xf32>, vector<32x1xf32>, vector<2x1xf32> -> vector<2x1xf32>
    %c32_101 = arith.constant 32 : index
    %c0_102 = arith.constant 0 : index
    %514 = vector.load %arg7[%c32_101, %c0_102] : memref<64x1xf32, #tpu.memory_space<vmem>>, vector<32x1xf32>
    %cst_103 = arith.constant dense<0.000000e+00> : vector<2x1xf32>
    %515 = tpu.matmul %511, %514, %cst_103 {dimension_numbers = #tpu.dot_dimension_numbers<[1], [0], [0], [1], [0, 0, 1, 1], [], []>} : vector<2x32xf32>, vector<32x1xf32>, vector<2x1xf32> -> vector<2x1xf32>
    %516 = arith.addf %513, %515 : vector<2x1xf32>
    %c0_104 = arith.constant 0 : index
    %c0_105 = arith.constant 0 : index
    %517 = vector.load %arg8[%c0_104, %c0_105] : memref<1x1xf32, #tpu.memory_space<vmem>>, vector<1x1xf32>
    %518 = vector.broadcast %517 : vector<1x1xf32> to vector<2x1xf32>
    %519 = arith.addf %516, %518 : vector<2x1xf32>
    %520 = arith.negf %519 : vector<2x1xf32>
    %521 = math.exp %520 : vector<2x1xf32>
    %cst_106 = arith.constant 1.000000e+00 : f32
    %522 = vector.broadcast %cst_106 : f32 to vector<2x1xf32>
    %523 = arith.addf %522, %521 : vector<2x1xf32>
    %524 = arith.divf %522, %523 : vector<2x1xf32>
    %c0_107 = arith.constant 0 : index
    %c0_108 = arith.constant 0 : index
    %525 = vector.load %arg9[%c0_107, %c0_108] : memref<2x1xf32, #tpu.memory_space<vmem>>, vector<2x1xf32>
    tpu.vector_store %arg9[%c0_107, %c0_108], %524 {strides = array<i32>} : memref<2x1xf32, #tpu.memory_space<vmem>>, vector<2x1xf32>,
    return
  }
}

</mosaic_0001>

<llo_original>
// kernel: net_forward.1
$region0: #{net_forward.1}
  #allocation0 [shape = 'u32[]', space=smem, size = 0x4, offset = 0x4, fixed_abs, tag = 'smem constant byte address 0x4 - core index']
  #allocation1 [shape = 'u32[144,128]{1,0:T(1,128)}', space=vmem, size = 0x12000, scoped, tag = 'internal scratch']
  #allocation2 [shape = 'f32[16,64]{1,0:T(8,128)}', space=vmem, size = 0x2000, scoped, tag = 'scratch operand']
  #allocation3 [shape = 'f32[1,1]{1,0:T(1,128)S(1)}', space=vmem, size = 0x200, scoped, tag = 'scoped memory for net_forward.1']
  %s0 = inlined_call_operand.vmem [shape: f32[16,6], index: 0, kind: input, shape index: {}]
  %s1 = inlined_call_operand.vmem [shape: f32[6,256], index: 1, kind: input, shape index: {}]
  %s2 = inlined_call_operand.vmem [shape: f32[2,32,128], index: 2, kind: input, shape index: {}]
  %s3 = inlined_call_operand.vmem [shape: f32[1,256], index: 3, kind: input, shape index: {}]
  %s4 = inlined_call_operand.hbm [shape: f32[64,256], index: 4, kind: input, shape index: {}]
  %s5 = inlined_call_operand.hbm [shape: f32[2,32,128], index: 5, kind: input, shape index: {}]
  %s6 = inlined_call_operand.vmem [shape: f32[1,256], index: 6, kind: input, shape index: {}]
  %s7 = inlined_call_operand.vmem [shape: f32[64,1], index: 7, kind: input, shape index: {}]
  %s8 = inlined_call_operand.<no memory space> [shape: f32[1,1], index: 8, kind: input, shape index: {}]
  %s9 = inlined_call_operand.vmem [shape: f32[2,1], index: 9, kind: output, shape index: {}]
  %s10 = sld [smem:[#allocation0]]
  $region54: #{net_forward.1} parent=0
    _
  %s12 = ssub.s32 1, %s10
  %s13 = scalar_select 0, %s12, %s10
  %v14 = vstv %s8
  %15 = vst [vmem:[#allocation3] sm:$0x1] %v14
  $region1: #{net_forward.1} parent=0
    #allocation4 [shape = 'u8[65536]{0}', space=vmem, size = 0x10000, scoped, tag = 'input window, operand 4, single buffered']
    #allocation5 [shape = 's32[1]{0}', space=sflag, size = 0x4, scoped, tag = 'scoped memory for net_forward.1']
    #allocation6 [shape = 'u8[32768]{0}', space=vmem, size = 0x8000, scoped, tag = 'input window, operand 5, single buffered']
    #allocation7 [shape = 's32[1]{0}', space=sflag, size = 0x4, scoped, tag = 'scoped memory for net_forward.1']
    %16 = vsyncpa [#allocation5], 0
    %17 = vsyncpa [#allocation7], 0
    // Predicated region
    $region2: #{net_forward.1} parent=1 // pred_check
      _
    $region3: #{net_forward.1} parent=1 // pred_check_branch
      %19 = sbr.rel (0) target = $region5
    $region4: #{net_forward.1} parent=1 // pred_region
      _
    $region5: #{net_forward.1} parent=1 // pred_fallthru
      _
    // Predicated region
    $region6: #{net_forward.1} parent=1 // pred_check
      _
    $region7: #{net_forward.1} parent=1 // pred_check_branch
      %21 = sbr.rel (0) target = $region9
    $region8: #{net_forward.1} parent=1 // pred_region
      _
    $region9: #{net_forward.1} parent=1 // pred_fallthru
      _
    // Predicated region
    $region10: #{net_forward.1} parent=1 // pred_check
      _
    $region11: #{net_forward.1} parent=1 // pred_check_branch
      %23 = sbr.rel (0) target = $region13
    $region12: #{net_forward.1} parent=1 // pred_region
      _
    $region13: #{net_forward.1} parent=1 // pred_fallthru
      _
    // Predicated region
    $region14: #{net_forward.1} parent=1 // pred_check
      _
    $region15: #{net_forward.1} parent=1 // pred_check_branch
      %25 = sbr.rel (0) target = $region17
    $region16: #{net_forward.1} parent=1 // pred_region
      _
    $region17: #{net_forward.1} parent=1 // pred_fallthru
      _
    // Predicated region
    $region18: #{net_forward.1} parent=1 // pred_check
      _
    $region19: #{net_forward.1} parent=1 // pred_check_branch
      %27 = sbr.rel (0) target = $region21
    $region20: #{net_forward.1} parent=1 // pred_region
      %s29 = ssub.s32 2048, 2048
      %30 = vsyncadd [#allocation5], %s29
      %s31 = sshll.u32 [#allocation4], 4
      %s32 = int_to_ptr.vmem [resolvable:$true] %s31
      %37 = dma.hbm_to_vmem [thread:$0]  %s4, 2048, %s32, [#allocation5], 256, 256, 16
    $region21: #{net_forward.1} parent=1 // pred_fallthru
      _
    // Predicated region
    $region22: #{net_forward.1} parent=1 // pred_check
      _
    $region23: #{net_forward.1} parent=1 // pred_check_branch
      %39 = sbr.rel (0) target = $region25
    $region24: #{net_forward.1} parent=1 // pred_region
      %s41 = ssub.s32 1024, 1024
      %42 = vsyncadd [#allocation7], %s41
      %s43 = sshll.u32 [#allocation6], 4
      %s44 = int_to_ptr.vmem [resolvable:$true] %s43
      %49 = dma.hbm_to_vmem [thread:$0]  %s5, 1024, %s44, [#allocation7], 128, 128, 8
    $region25: #{net_forward.1} parent=1 // pred_fallthru
      _
    // Predicated region
    $region26: #{net_forward.1} parent=1 // pred_check
      _
    $region27: #{net_forward.1} parent=1 // pred_check_branch
      %51 = sbr.rel (0) target = $region29
    $region28: #{net_forward.1} parent=1 // pred_region
      _
    $region29: #{net_forward.1} parent=1 // pred_fallthru
      _
    // Predicated region
    $region30: #{net_forward.1} parent=1 // pred_check
      _
    $region31: #{net_forward.1} parent=1 // pred_check_branch
      %53 = sbr.rel (0) target = $region33
    $region32: #{net_forward.1} parent=1 // pred_region
      _
    $region33: #{net_forward.1} parent=1 // pred_fallthru
      _
    // Predicated region
    $region34: #{net_forward.1} parent=1 // pred_check
      _
    $region35: #{net_forward.1} parent=1 // pred_check_branch
      %55 = sbr.rel (0) target = $region37
    $region36: #{net_forward.1} parent=1 // pred_region
      _
    $region37: #{net_forward.1} parent=1 // pred_fallthru
      _
    // Predicated region
    $region38: #{net_forward.1} parent=1 // pred_check
      _
    $region39: #{net_forward.1} parent=1 // pred_check_branch
      %57 = sbr.rel (0) target = $region41
    $region40: #{net_forward.1} parent=1 // pred_region
      %58 = dma.done [#allocation5], 2048
    $region41: #{net_forward.1} parent=1 // pred_fallthru
      _
    // Predicated region
    $region42: #{net_forward.1} parent=1 // pred_check
      _
    $region43: #{net_forward.1} parent=1 // pred_check_branch
      %60 = sbr.rel (0) target = $region45
    $region44: #{net_forward.1} parent=1 // pred_region
      %61 = dma.done [#allocation7], 1024
    $region45: #{net_forward.1} parent=1 // pred_fallthru
      _
    %v62 = vld [vmem:[%s0] sm:$0xff]
    %v63 = vld [vmem:[%s0 + $0x8] sm:$0xff]
    %v64 = vld [vmem:[%s1] sm:$0x3f]
    %v65 = vld [vmem:[%s1 + $0x8] sm:$0x3f]
    %v66 = vld [vmem:[%s3] sm:$0x3]
    %v68 = vlaneseq
    %v69 = vshrl.u32 %v68, 7
    %v70 = vsub.s32 0, %v69
    %v71 = vrot.slane %v66, %v70
    %v72 = vlaneseq
    %v73 = vshrl.u32 %v72, 7
    %v74 = vsub.s32 1, %v73
    %v75 = vrot.slane %v66, %v74
    %vm78 = vcmask 48128
    %v80 = vsel %vm78, %v62, 0
    %v83 = vsel %vm78, %v63, 0
    %vm85 = vcmask 1045504
    %v87 = vsel %vm85, %v64, 0
    %v90 = vsel %vm85, %v65, 0
    %92 = vmatprep.subr.mxu0 0.0
    %93 = vmatpush1.msra.mxu0 0.0
    %94 = vmatprep.subr.mxu0 0.0
    %95 = vmatpush1.msra.mxu0 0.0
    %96 = vmatprep.subr.mxu0 0.0
    %97 = vmatpush1.msra.mxu0 0.0
    %98 = vmatprep.subr.mxu0 0.0
    %99 = vmatpush1.msra.mxu0 0.0
    %100 = vmatprep.subr.mxu0 0.0
    %101 = vmatpush1.msra.mxu0 0.0
    %102 = vmatprep.subr.mxu0 0.0
    %103 = vmatpush1.msra.mxu0 0.0
    %104 = vmatprep.subr.mxu0 0.0
    %105 = vmatpush1.msra.mxu0 0.0
    %106 = vmatprep.subr.mxu0 0.0
    %107 = vmatpush1.msra.mxu0 0.0
    %108 = vmatprep.subr.mxu0 0.0
    %109 = vmatpush1.msra.mxu0 0.0
    %110 = vmatprep.subr.mxu0 0.0
    %111 = vmatpush1.msra.mxu0 0.0
    %112 = vmatprep.subr.mxu0 0.0
    %113 = vmatpush1.msra.mxu0 0.0
    %114 = vmatprep.subr.mxu0 0.0
    %115 = vmatpush1.msra.mxu0 0.0
    %116 = vmatprep.subr.mxu0 0.0
    %117 = vmatpush1.msra.mxu0 0.0
    %118 = vmatprep.subr.mxu0 0.0
    %119 = vmatpush1.msra.mxu0 0.0
    %120 = vmatprep.subr.mxu0 0.0
    %121 = vmatpush1.msra.mxu0 0.0
    %122 = vmatprep.subr.mxu0 %v90
    %123 = vmatpush1.msra.mxu0 %v87
    %124 = vmatprep.subr.mxu0 0.0
    %125 = vmatpush2.msra.mxu0 0.0
    %126 = vmatprep.subr.mxu0 0.0
    %127 = vmatpush2.msra.mxu0 0.0
    %128 = vmatprep.subr.mxu0 0.0
    %129 = vmatpush2.msra.mxu0 0.0
    %130 = vmatprep.subr.mxu0 0.0
    %131 = vmatpush2.msra.mxu0 0.0
    %132 = vmatprep.subr.mxu0 0.0
    %133 = vmatpush2.msra.mxu0 0.0
    %134 = vmatprep.subr.mxu0 0.0
    %135 = vmatpush2.msra.mxu0 0.0
    %136 = vmatprep.subr.mxu0 0.0
    %137 = vmatpush2.msra.mxu0 0.0
    %138 = vmatprep.subr.mxu0 0.0
    %139 = vmatpush2.msra.mxu0 0.0
    %140 = vmatprep.subr.mxu0 0.0
    %141 = vmatpush2.msra.mxu0 0.0
    %142 = vmatprep.subr.mxu0 0.0
    %143 = vmatpush2.msra.mxu0 0.0
    %144 = vmatprep.subr.mxu0 0.0
    %145 = vmatpush2.msra.mxu0 0.0
    %146 = vmatprep.subr.mxu0 0.0
    %147 = vmatpush2.msra.mxu0 0.0
    %148 = vmatprep.subr.mxu0 0.0
    %149 = vmatpush2.msra.mxu0 0.0
    %150 = vmatprep.subr.mxu0 0.0
    %151 = vmatpush2.msra.mxu0 0.0
    %152 = vmatprep.subr.mxu0 0.0
    %153 = vmatpush2.msra.mxu0 0.0
    %154 = vmatprep.subr.mxu0 0.0
    %155 = vmatpush2.msra.mxu0 0.0
    %156 = vmatprep.mubr.f32.mxu0 0.0
    %157 = vmatmul.mubr.f32.gmra.mxu0 %v80
    %v158 = vpop.f32.mrf.mxu0
    %v159 = vadd.f32 %v71, %v158
    %v160 = vpop.f32.mrf.mxu0
    %v161 = vadd.f32 %v75, %v160
    %162 = vmatprep.mubr.f32.mxu0 0.0
    %163 = vmatmul.mubr.f32.gmra.mxu0 %v83
    %v164 = vpop.f32.mrf.mxu0
    %v165 = vadd.f32 %v71, %v164
    %v166 = vpop.f32.mrf.mxu0
    %v167 = vadd.f32 %v75, %v166
    %168 = vdwg.mxu0
    %v169 = vld [vmem:[%s2] sm:$0xff]
    %v170 = vld [vmem:[%s2 + $0x8] sm:$0xff]
    %v171 = vld [vmem:[%s2 + $0x10] sm:$0xff]
    %v172 = vld [vmem:[%s2 + $0x18] sm:$0xff]
    %s173 = scalar_lea.vmem %s2, 32
    %v174 = vld [vmem:[%s173] sm:$0xff]
    %v175 = vld [vmem:[%s173 + $0x8] sm:$0xff]
    %v176 = vld [vmem:[%s173 + $0x10] sm:$0xff]
    %v177 = vld [vmem:[%s173 + $0x18] sm:$0xff]
    %vm178 = vcmask 261120
    %v180 = vsel %vm178, 0.0, 0
    %182 = vmatprep.subr.mxu0 0.0
    %183 = vmatpush1.msra.mxu0 0.0
    %184 = vmatprep.subr.mxu0 0.0
    %185 = vmatpush1.msra.mxu0 0.0
    %186 = vmatprep.subr.mxu0 0.0
    %187 = vmatpush1.msra.mxu0 0.0
    %188 = vmatprep.subr.mxu0 0.0
    %189 = vmatpush1.msra.mxu0 0.0
    %190 = vmatprep.subr.mxu0 0.0
    %191 = vmatpush1.msra.mxu0 0.0
    %192 = vmatprep.subr.mxu0 0.0
    %193 = vmatpush1.msra.mxu0 0.0
    %194 = vmatprep.subr.mxu0 0.0
    %195 = vmatpush1.msra.mxu0 0.0
    %196 = vmatprep.subr.mxu0 0.0
    %197 = vmatpush1.msra.mxu0 0.0
    %198 = vmatprep.subr.mxu0 0.0
    %199 = vmatpush1.msra.mxu0 0.0
    %200 = vmatprep.subr.mxu0 0.0
    %201 = vmatpush1.msra.mxu0 0.0
    %202 = vmatprep.subr.mxu0 0.0
    %203 = vmatpush1.msra.mxu0 0.0
    %204 = vmatprep.subr.mxu0 0.0
    %205 = vmatpush1.msra.mxu0 0.0
    %206 = vmatprep.subr.mxu0 0.0
    %207 = vmatpush1.msra.mxu0 %v172
    %208 = vmatprep.subr.mxu0 0.0
    %209 = vmatpush1.msra.mxu0 %v171
    %210 = vmatprep.subr.mxu0 0.0
    %211 = vmatpush1.msra.mxu0 %v170
    %212 = vmatprep.subr.mxu0 0.0
    %213 = vmatpush1.msra.mxu0 %v169
    %214 = vmatprep.subr.mxu0 0.0
    %215 = vmatpush2.msra.mxu0 0.0
    %216 = vmatprep.subr.mxu0 0.0
    %217 = vmatpush2.msra.mxu0 0.0
    %218 = vmatprep.subr.mxu0 0.0
    %219 = vmatpush2.msra.mxu0 0.0
    %220 = vmatprep.subr.mxu0 0.0
    %221 = vmatpush2.msra.mxu0 0.0
    %222 = vmatprep.subr.mxu0 0.0
    %223 = vmatpush2.msra.mxu0 0.0
    %224 = vmatprep.subr.mxu0 0.0
    %225 = vmatpush2.msra.mxu0 0.0
    %226 = vmatprep.subr.mxu0 0.0
    %227 = vmatpush2.msra.mxu0 0.0
    %228 = vmatprep.subr.mxu0 0.0
    %229 = vmatpush2.msra.mxu0 0.0
    %230 = vmatprep.subr.mxu0 0.0
    %231 = vmatpush2.msra.mxu0 0.0
    %232 = vmatprep.subr.mxu0 0.0
    %233 = vmatpush2.msra.mxu0 0.0
    %234 = vmatprep.subr.mxu0 0.0
    %235 = vmatpush2.msra.mxu0 0.0
    %236 = vmatprep.subr.mxu0 0.0
    %237 = vmatpush2.msra.mxu0 0.0
    %238 = vmatprep.subr.mxu0 0.0
    %239 = vmatpush2.msra.mxu0 0.0
    %240 = vmatprep.subr.mxu0 0.0
    %241 = vmatpush2.msra.mxu0 0.0
    %242 = vmatprep.subr.mxu0 0.0
    %243 = vmatpush2.msra.mxu0 0.0
    %244 = vmatprep.subr.mxu0 0.0
    %245 = vmatpush2.msra.mxu0 0.0
    %246 = vmatprep.mubr.f32.mxu0 0.0
    %247 = vmatmul.mubr.f32.gmra.mxu0 %v180
    %v248 = vpop.f32.mrf.mxu0
    %v249 = vadd.f32 0.0, %v248
    %v250 = vpop.f32.mrf.mxu0
    %251 = vdwg.mxu0
    %v252 = vadd.f32 %v159, %v249
    %v253 = vxor.u32 %v252, 2147483648
    %v254 = vmul.f32 %v253, 1.442695
    %v255 = vpow.pop %v254
    %v256 = vadd.f32 %v255, 1.0
    %v257 = vrcp.pop %v256
    %v258 = vmul.f32 1.0, %v257
    %v259 = vtanh.pop %v252
    %v260 = vmul.f32 %v258, 0.0
    %262 = vrot.lane.b32.xlu0 %v259, 32
    %v263 = vpop.permute.xlu0 %262
    %v265 = vmul.f32 %v258, %v263
    %267 = vrot.lane.b32.xlu0 %v265, 32
    %v268 = vpop.permute.xlu0 %267
    %v270 = vadd.f32 %v260, %v268
    %v271 = vtanh.pop %v270
    %273 = vrot.lane.b32.xlu0 %v271, 32
    %v274 = vpop.permute.xlu0 %273
    %v276 = vmul.f32 %v258, %v274
    %278 = vrot.lane.b32.xlu0 %v276, 64
    %v279 = vpop.permute.xlu0 %278
    %vm281 = vcmask 254976
    %282 = vst.msk [vmem:[#allocation2] sm:$0x3] %vm281, %v279
    %v283 = vsel %vm178, %v279, 0
    %285 = vmatprep.subr.mxu0 0.0
    %286 = vmatpush1.msra.mxu0 0.0
    %287 = vmatprep.subr.mxu0 0.0
    %288 = vmatpush1.msra.mxu0 0.0
    %289 = vmatprep.subr.mxu0 0.0
    %290 = vmatpush1.msra.mxu0 0.0
    %291 = vmatprep.subr.mxu0 0.0
    %292 = vmatpush1.msra.mxu0 0.0
    %293 = vmatprep.subr.mxu0 0.0
    %294 = vmatpush1.msra.mxu0 0.0
    %295 = vmatprep.subr.mxu0 0.0
    %296 = vmatpush1.msra.mxu0 0.0
    %297 = vmatprep.subr.mxu0 0.0
    %298 = vmatpush1.msra.mxu0 0.0
    %299 = vmatprep.subr.mxu0 0.0
    %300 = vmatpush1.msra.mxu0 0.0
    %301 = vmatprep.subr.mxu0 0.0
    %302 = vmatpush1.msra.mxu0 0.0
    %303 = vmatprep.subr.mxu0 0.0
    %304 = vmatpush1.msra.mxu0 0.0
    %305 = vmatprep.subr.mxu0 0.0
    %306 = vmatpush1.msra.mxu0 0.0
    %307 = vmatprep.subr.mxu0 0.0
    %308 = vmatpush1.msra.mxu0 0.0
    %309 = vmatprep.subr.mxu0 0.0
    %310 = vmatpush1.msra.mxu0 %v172
    %311 = vmatprep.subr.mxu0 0.0
    %312 = vmatpush1.msra.mxu0 %v171
    %313 = vmatprep.subr.mxu0 0.0
    %314 = vmatpush1.msra.mxu0 %v170
    %315 = vmatprep.subr.mxu0 0.0
    %316 = vmatpush1.msra.mxu0 %v169
    %317 = vmatprep.subr.mxu0 0.0
    %318 = vmatpush2.msra.mxu0 0.0
    %319 = vmatprep.subr.mxu0 0.0
    %320 = vmatpush2.msra.mxu0 0.0
    %321 = vmatprep.subr.mxu0 0.0
    %322 = vmatpush2.msra.mxu0 0.0
    %323 = vmatprep.subr.mxu0 0.0
    %324 = vmatpush2.msra.mxu0 0.0
    %325 = vmatprep.subr.mxu0 0.0
    %326 = vmatpush2.msra.mxu0 0.0
    %327 = vmatprep.subr.mxu0 0.0
    %328 = vmatpush2.msra.mxu0 0.0
    %329 = vmatprep.subr.mxu0 0.0
    %330 = vmatpush2.msra.mxu0 0.0
    %331 = vmatprep.subr.mxu0 0.0
    %332 = vmatpush2.msra.mxu0 0.0
    %333 = vmatprep.subr.mxu0 0.0
    %334 = vmatpush2.msra.mxu0 0.0
    %335 = vmatprep.subr.mxu0 0.0
    %336 = vmatpush2.msra.mxu0 0.0
    %337 = vmatprep.subr.mxu0 0.0
    %338 = vmatpush2.msra.mxu0 0.0
    %339 = vmatprep.subr.mxu0 0.0
    %340 = vmatpush2.msra.mxu0 0.0
    %341 = vmatprep.subr.mxu0 0.0
    %342 = vmatpush2.msra.mxu0 0.0
    %343 = vmatprep.subr.mxu0 0.0
    %344 = vmatpush2.msra.mxu0 0.0
    %345 = vmatprep.subr.mxu0 0.0
    %346 = vmatpush2.msra.mxu0 0.0
    %347 = vmatprep.subr.mxu0 0.0
    %348 = vmatpush2.msra.mxu0 0.0
    %349 = vmatprep.mubr.f32.mxu0 0.0
    %350 = vmatmul.mubr.f32.gmra.mxu0 %v283
    %v351 = vpop.f32.mrf.mxu0
    %v352 = vadd.f32 0.0, %v351
    %v353 = vpop.f32.mrf.mxu0
    %354 = vdwg.mxu0
    %v356 = vrot.slane %v352, 6
    %v358 = vadd.f32 %v159, %v356
    %v359 = vxor.u32 %v358, 2147483648
    %v360 = vmul.f32 %v359, 1.442695
    %v361 = vpow.pop %v360
    %v362 = vadd.f32 %v361, 1.0
    %v363 = vrcp.pop %v362
    %v364 = vmul.f32 1.0, %v363
    %v365 = vtanh.pop %v358
    %v367 = vrot.slane %v270, 6
    %v369 = vmul.f32 %v364, %v367
    %371 = vrot.lane.b32.xlu0 %v365, 32
    %v372 = vpop.permute.xlu0 %371
    %v374 = vmul.f32 %v364, %v372
    %376 = vrot.lane.b32.xlu0 %v374, 32
    %v377 = vpop.permute.xlu0 %376
    %v379 = vadd.f32 %v369, %v377
    %v380 = vtanh.pop %v379
    %382 = vrot.lane.b32.xlu0 %v380, 32
    %v383 = vpop.permute.xlu0 %382
    %v385 = vmul.f32 %v364, %v383
    %387 = vrot.lane.b32.xlu0 %v385, 64
    %v388 = vpop.permute.xlu0 %387
    %vm390 = vcmask 257026
    %391 = vst.msk [vmem:[#allocation2] sm:$0xc] %vm390, %v388
    %v392 = vrot.slane %v385, 2
    %393 = vrot.lane.b32.xlu0 %v392, 64
    %v394 = vpop.permute.xlu0 %393
    %v395 = vsel %vm178, %v394, 0
    %397 = vmatprep.subr.mxu0 0.0
    %398 = vmatpush1.msra.mxu0 0.0
    %399 = vmatprep.subr.mxu0 0.0
    %400 = vmatpush1.msra.mxu0 0.0
    %401 = vmatprep.subr.mxu0 0.0
    %402 = vmatpush1.msra.mxu0 0.0
    %403 = vmatprep.subr.mxu0 0.0
    %404 = vmatpush1.msra.mxu0 0.0
    %405 = vmatprep.subr.mxu0 0.0
    %406 = vmatpush1.msra.mxu0 0.0
    %407 = vmatprep.subr.mxu0 0.0
    %408 = vmatpush1.msra.mxu0 0.0
    %409 = vmatprep.subr.mxu0 0.0
    %410 = vmatpush1.msra.mxu0 0.0
    %411 = vmatprep.subr.mxu0 0.0
    %412 = vmatpush1.msra.mxu0 0.0
    %413 = vmatprep.subr.mxu0 0.0
    %414 = vmatpush1.msra.mxu0 0.0
    %415 = vmatprep.subr.mxu0 0.0
    %416 = vmatpush1.msra.mxu0 0.0
    %417 = vmatprep.subr.mxu0 0.0
    %418 = vmatpush1.msra.mxu0 0.0
    %419 = vmatprep.subr.mxu0 0.0
    %420 = vmatpush1.msra.mxu0 0.0
    %421 = vmatprep.subr.mxu0 0.0
    %422 = vmatpush1.msra.mxu0 %v172
    %423 = vmatprep.subr.mxu0 0.0
    %424 = vmatpush1.msra.mxu0 %v171
    %425 = vmatprep.subr.mxu0 0.0
    %426 = vmatpush1.msra.mxu0 %v170
    %427 = vmatprep.subr.mxu0 0.0
    %428 = vmatpush1.msra.mxu0 %v169
    %429 = vmatprep.subr.mxu0 0.0
    %430 = vmatpush2.msra.mxu0 0.0
    %431 = vmatprep.subr.mxu0 0.0
    %432 = vmatpush2.msra.mxu0 0.0
    %433 = vmatprep.subr.mxu0 0.0
    %434 = vmatpush2.msra.mxu0 0.0
    %435 = vmatprep.subr.mxu0 0.0
    %436 = vmatpush2.msra.mxu0 0.0
    %437 = vmatprep.subr.mxu0 0.0
    %438 = vmatpush2.msra.mxu0 0.0
    %439 = vmatprep.subr.mxu0 0.0
    %440 = vmatpush2.msra.mxu0 0.0
    %441 = vmatprep.subr.mxu0 0.0
    %442 = vmatpush2.msra.mxu0 0.0
    %443 = vmatprep.subr.mxu0 0.0
    %444 = vmatpush2.msra.mxu0 0.0
    %445 = vmatprep.subr.mxu0 0.0
    %446 = vmatpush2.msra.mxu0 0.0
    %447 = vmatprep.subr.mxu0 0.0
    %448 = vmatpush2.msra.mxu0 0.0
    %449 = vmatprep.subr.mxu0 0.0
    %450 = vmatpush2.msra.mxu0 0.0
    %451 = vmatprep.subr.mxu0 0.0
    %452 = vmatpush2.msra.mxu0 0.0
    %453 = vmatprep.subr.mxu0 0.0
    %454 = vmatpush2.msra.mxu0 0.0
    %455 = vmatprep.subr.mxu0 0.0
    %456 = vmatpush2.msra.mxu0 0.0
    %457 = vmatprep.subr.mxu0 0.0
    %458 = vmatpush2.msra.mxu0 0.0
    %459 = vmatprep.subr.mxu0 0.0
    %460 = vmatpush2.msra.mxu0 0.0
    %461 = vmatprep.mubr.f32.mxu0 0.0
    %462 = vmatmul.mubr.f32.gmra.mxu0 %v395
    %v463 = vpop.f32.mrf.mxu0
    %v464 = vadd.f32 0.0, %v463
    %v465 = vpop.f32.mrf.mxu0
    %466 = vdwg.mxu0
    %v468 = vrot.slane %v464, 4
    %v470 = vadd.f32 %v159, %v468
    %v471 = vxor.u32 %v470, 2147483648
    %v472 = vmul.f32 %v471, 1.442695
    %v473 = vpow.pop %v472
    %v474 = vadd.f32 %v473, 1.0
    %v475 = vrcp.pop %v474
    %v476 = vmul.f32 1.0, %v475
    %v477 = vtanh.pop %v470
    %v479 = vrot.slane %v379, 6
    %v481 = vmul.f32 %v476, %v479
    %483 = vrot.lane.b32.xlu0 %v477, 32
    %v484 = vpop.permute.xlu0 %483
    %v486 = vmul.f32 %v476, %v484
    %488 = vrot.lane.b32.xlu0 %v486, 32
    %v489 = vpop.permute.xlu0 %488
    %v491 = vadd.f32 %v481, %v489
    %v492 = vtanh.pop %v491
    %494 = vrot.lane.b32.xlu0 %v492, 32
    %v495 = vpop.permute.xlu0 %494
    %v497 = vmul.f32 %v476, %v495
    %499 = vrot.lane.b32.xlu0 %v497, 64
    %v500 = vpop.permute.xlu0 %499
    %vm502 = vcmask 259076
    %503 = vst.msk [vmem:[#allocation2] sm:$0x30] %vm502, %v500
    %v504 = vrot.slane %v497, 4
    %505 = vrot.lane.b32.xlu0 %v504, 64
    %v506 = vpop.permute.xlu0 %505
    %v507 = vsel %vm178, %v506, 0
    %509 = vmatprep.subr.mxu0 0.0
    %510 = vmatpush1.msra.mxu0 0.0
    %511 = vmatprep.subr.mxu0 0.0
    %512 = vmatpush1.msra.mxu0 0.0
    %513 = vmatprep.subr.mxu0 0.0
    %514 = vmatpush1.msra.mxu0 0.0
    %515 = vmatprep.subr.mxu0 0.0
    %516 = vmatpush1.msra.mxu0 0.0
    %517 = vmatprep.subr.mxu0 0.0
    %518 = vmatpush1.msra.mxu0 0.0
    %519 = vmatprep.subr.mxu0 0.0
    %520 = vmatpush1.msra.mxu0 0.0
    %521 = vmatprep.subr.mxu0 0.0
    %522 = vmatpush1.msra.mxu0 0.0
    %523 = vmatprep.subr.mxu0 0.0
    %524 = vmatpush1.msra.mxu0 0.0
    %525 = vmatprep.subr.mxu0 0.0
    %526 = vmatpush1.msra.mxu0 0.0
    %527 = vmatprep.subr.mxu0 0.0
    %528 = vmatpush1.msra.mxu0 0.0
    %529 = vmatprep.subr.mxu0 0.0
    %530 = vmatpush1.msra.mxu0 0.0
    %531 = vmatprep.subr.mxu0 0.0
    %532 = vmatpush1.msra.mxu0 0.0
    %533 = vmatprep.subr.mxu0 0.0
    %534 = vmatpush1.msra.mxu0 %v172
    %535 = vmatprep.subr.mxu0 0.0
    %536 = vmatpush1.msra.mxu0 %v171
    %537 = vmatprep.subr.mxu0 0.0
    %538 = vmatpush1.msra.mxu0 %v170
    %539 = vmatprep.subr.mxu0 0.0
    %540 = vmatpush1.msra.mxu0 %v169
    %541 = vmatprep.subr.mxu0 0.0
    %542 = vmatpush2.msra.mxu0 0.0
    %543 = vmatprep.subr.mxu0 0.0
    %544 = vmatpush2.msra.mxu0 0.0
    %545 = vmatprep.subr.mxu0 0.0
    %546 = vmatpush2.msra.mxu0 0.0
    %547 = vmatprep.subr.mxu0 0.0
    %548 = vmatpush2.msra.mxu0 0.0
    %549 = vmatprep.subr.mxu0 0.0
    %550 = vmatpush2.msra.mxu0 0.0
    %551 = vmatprep.subr.mxu0 0.0
    %552 = vmatpush2.msra.mxu0 0.0
    %553 = vmatprep.subr.mxu0 0.0
    %554 = vmatpush2.msra.mxu0 0.0
    %555 = vmatprep.subr.mxu0 0.0
    %556 = vmatpush2.msra.mxu0 0.0
    %557 = vmatprep.subr.mxu0 0.0
    %558 = vmatpush2.msra.mxu0 0.0
    %559 = vmatprep.subr.mxu0 0.0
    %560 = vmatpush2.msra.mxu0 0.0
    %561 = vmatprep.subr.mxu0 0.0
    %562 = vmatpush2.msra.mxu0 0.0
    %563 = vmatprep.subr.mxu0 0.0
    %564 = vmatpush2.msra.mxu0 0.0
    %565 = vmatprep.subr.mxu0 0.0
    %566 = vmatpush2.msra.mxu0 0.0
    %567 = vmatprep.subr.mxu0 0.0
    %568 = vmatpush2.msra.mxu0 0.0
    %569 = vmatprep.subr.mxu0 0.0
    %570 = vmatpush2.msra.mxu0 0.0
    %571 = vmatprep.subr.mxu0 0.0
    %572 = vmatpush2.msra.mxu0 0.0
    %573 = vmatprep.mubr.f32.mxu0 0.0
    %574 = vmatmul.mubr.f32.gmra.mxu0 %v507
    %v575 = vpop.f32.mrf.mxu0
    %v576 = vadd.f32 0.0, %v575
    %v577 = vpop.f32.mrf.mxu0
    %578 = vdwg.mxu0
    %v580 = vrot.slane %v576, 2
    %v582 = vadd.f32 %v159, %v580
    %v583 = vxor.u32 %v582, 2147483648
    %v584 = vmul.f32 %v583, 1.442695
    %v585 = vpow.pop %v584
    %v586 = vadd.f32 %v585, 1.0
    %v587 = vrcp.pop %v586
    %v588 = vmul.f32 1.0, %v587
    %v589 = vtanh.pop %v582
    %v591 = vrot.slane %v491, 6
    %v593 = vmul.f32 %v588, %v591
    %595 = vrot.lane.b32.xlu0 %v589, 32
    %v596 = vpop.permute.xlu0 %595
    %v598 = vmul.f32 %v588, %v596
    %600 = vrot.lane.b32.xlu0 %v598, 32
    %v601 = vpop.permute.xlu0 %600
    %v603 = vadd.f32 %v593, %v601
    %v604 = vtanh.pop %v603
    %606 = vrot.lane.b32.xlu0 %v604, 32
    %v607 = vpop.permute.xlu0 %606
    %v609 = vmul.f32 %v588, %v607
    %611 = vrot.lane.b32.xlu0 %v609, 64
    %v612 = vpop.permute.xlu0 %611
    %vm614 = vcmask 261126
    %615 = vst.msk [vmem:[#allocation2] sm:$0xc0] %vm614, %v612
    %v616 = vrot.slane %v609, 6
    %617 = vrot.lane.b32.xlu0 %v616, 64
    %v618 = vpop.permute.xlu0 %617
    %v619 = vsel %vm178, %v618, 0
    %621 = vmatprep.subr.mxu0 0.0
    %622 = vmatpush1.msra.mxu0 0.0
    %623 = vmatprep.subr.mxu0 0.0
    %624 = vmatpush1.msra.mxu0 0.0
    %625 = vmatprep.subr.mxu0 0.0
    %626 = vmatpush1.msra.mxu0 0.0
    %627 = vmatprep.subr.mxu0 0.0
    %628 = vmatpush1.msra.mxu0 0.0
    %629 = vmatprep.subr.mxu0 0.0
    %630 = vmatpush1.msra.mxu0 0.0
    %631 = vmatprep.subr.mxu0 0.0
    %632 = vmatpush1.msra.mxu0 0.0
    %633 = vmatprep.subr.mxu0 0.0
    %634 = vmatpush1.msra.mxu0 0.0
    %635 = vmatprep.subr.mxu0 0.0
    %636 = vmatpush1.msra.mxu0 0.0
    %637 = vmatprep.subr.mxu0 0.0
    %638 = vmatpush1.msra.mxu0 0.0
    %639 = vmatprep.subr.mxu0 0.0
    %640 = vmatpush1.msra.mxu0 0.0
    %641 = vmatprep.subr.mxu0 0.0
    %642 = vmatpush1.msra.mxu0 0.0
    %643 = vmatprep.subr.mxu0 0.0
    %644 = vmatpush1.msra.mxu0 0.0
    %645 = vmatprep.subr.mxu0 0.0
    %646 = vmatpush1.msra.mxu0 %v172
    %647 = vmatprep.subr.mxu0 0.0
    %648 = vmatpush1.msra.mxu0 %v171
    %649 = vmatprep.subr.mxu0 0.0
    %650 = vmatpush1.msra.mxu0 %v170
    %651 = vmatprep.subr.mxu0 0.0
    %652 = vmatpush1.msra.mxu0 %v169
    %653 = vmatprep.subr.mxu0 0.0
    %654 = vmatpush2.msra.mxu0 0.0
    %655 = vmatprep.subr.mxu0 0.0
    %656 = vmatpush2.msra.mxu0 0.0
    %657 = vmatprep.subr.mxu0 0.0
    %658 = vmatpush2.msra.mxu0 0.0
    %659 = vmatprep.subr.mxu0 0.0
    %660 = vmatpush2.msra.mxu0 0.0
    %661 = vmatprep.subr.mxu0 0.0
    %662 = vmatpush2.msra.mxu0 0.0
    %663 = vmatprep.subr.mxu0 0.0
    %664 = vmatpush2.msra.mxu0 0.0
    %665 = vmatprep.subr.mxu0 0.0
    %666 = vmatpush2.msra.mxu0 0.0
    %667 = vmatprep.subr.mxu0 0.0
    %668 = vmatpush2.msra.mxu0 0.0
    %669 = vmatprep.subr.mxu0 0.0
    %670 = vmatpush2.msra.mxu0 0.0
    %671 = vmatprep.subr.mxu0 0.0
    %672 = vmatpush2.msra.mxu0 0.0
    %673 = vmatprep.subr.mxu0 0.0
    %674 = vmatpush2.msra.mxu0 0.0
    %675 = vmatprep.subr.mxu0 0.0
    %676 = vmatpush2.msra.mxu0 0.0
    %677 = vmatprep.subr.mxu0 0.0
    %678 = vmatpush2.msra.mxu0 0.0
    %679 = vmatprep.subr.mxu0 0.0
    %680 = vmatpush2.msra.mxu0 0.0
    %681 = vmatprep.subr.mxu0 0.0
    %682 = vmatpush2.msra.mxu0 0.0
    %683 = vmatprep.subr.mxu0 0.0
    %684 = vmatpush2.msra.mxu0 0.0
    %685 = vmatprep.mubr.f32.mxu0 0.0
    %686 = vmatmul.mubr.f32.gmra.mxu0 %v619
    %v687 = vpop.f32.mrf.mxu0
    %v688 = vadd.f32 0.0, %v687
    %v689 = vpop.f32.mrf.mxu0
    %690 = vdwg.mxu0
    %v691 = vadd.f32 %v165, %v688
    %v692 = vxor.u32 %v691, 2147483648
    %v693 = vmul.f32 %v692, 1.442695
    %v694 = vpow.pop %v693
    %v695 = vadd.f32 %v694, 1.0
    %v696 = vrcp.pop %v695
    %v697 = vmul.f32 1.0, %v696
    %v698 = vtanh.pop %v691
    %v700 = vrot.slane %v603, 6
    %v702 = vmul.f32 %v697, %v700
    %704 = vrot.lane.b32.xlu0 %v698, 32
    %v705 = vpop.permute.xlu0 %704
    %v707 = vmul.f32 %v697, %v705
    %709 = vrot.lane.b32.xlu0 %v707, 32
    %v710 = vpop.permute.xlu0 %709
    %v712 = vadd.f32 %v702, %v710
    %v713 = vtanh.pop %v712
    %715 = vrot.lane.b32.xlu0 %v713, 32
    %v716 = vpop.permute.xlu0 %715
    %v718 = vmul.f32 %v697, %v716
    %720 = vrot.lane.b32.xlu0 %v718, 64
    %v721 = vpop.permute.xlu0 %720
    %723 = vst.msk [vmem:[#allocation2 + $0x8] sm:$0x3] %vm281, %v721
    %v724 = vsel %vm178, %v721, 0
    %726 = vmatprep.subr.mxu0 0.0
    %727 = vmatpush1.msra.mxu0 0.0
    %728 = vmatprep.subr.mxu0 0.0
    %729 = vmatpush1.msra.mxu0 0.0
    %730 = vmatprep.subr.mxu0 0.0
    %731 = vmatpush1.msra.mxu0 0.0
    %732 = vmatprep.subr.mxu0 0.0
    %733 = vmatpush1.msra.mxu0 0.0
    %734 = vmatprep.subr.mxu0 0.0
    %735 = vmatpush1.msra.mxu0 0.0
    %736 = vmatprep.subr.mxu0 0.0
    %737 = vmatpush1.msra.mxu0 0.0
    %738 = vmatprep.subr.mxu0 0.0
    %739 = vmatpush1.msra.mxu0 0.0
    %740 = vmatprep.subr.mxu0 0.0
    %741 = vmatpush1.msra.mxu0 0.0
    %742 = vmatprep.subr.mxu0 0.0
    %743 = vmatpush1.msra.mxu0 0.0
    %744 = vmatprep.subr.mxu0 0.0
    %745 = vmatpush1.msra.mxu0 0.0
    %746 = vmatprep.subr.mxu0 0.0
    %747 = vmatpush1.msra.mxu0 0.0
    %748 = vmatprep.subr.mxu0 0.0
    %749 = vmatpush1.msra.mxu0 0.0
    %750 = vmatprep.subr.mxu0 0.0
    %751 = vmatpush1.msra.mxu0 %v172
    %752 = vmatprep.subr.mxu0 0.0
    %753 = vmatpush1.msra.mxu0 %v171
    %754 = vmatprep.subr.mxu0 0.0
    %755 = vmatpush1.msra.mxu0 %v170
    %756 = vmatprep.subr.mxu0 0.0
    %757 = vmatpush1.msra.mxu0 %v169
    %758 = vmatprep.subr.mxu0 0.0
    %759 = vmatpush2.msra.mxu0 0.0
    %760 = vmatprep.subr.mxu0 0.0
    %761 = vmatpush2.msra.mxu0 0.0
    %762 = vmatprep.subr.mxu0 0.0
    %763 = vmatpush2.msra.mxu0 0.0
    %764 = vmatprep.subr.mxu0 0.0
    %765 = vmatpush2.msra.mxu0 0.0
    %766 = vmatprep.subr.mxu0 0.0
    %767 = vmatpush2.msra.mxu0 0.0
    %768 = vmatprep.subr.mxu0 0.0
    %769 = vmatpush2.msra.mxu0 0.0
    %770 = vmatprep.subr.mxu0 0.0
    %771 = vmatpush2.msra.mxu0 0.0
    %772 = vmatprep.subr.mxu0 0.0
    %773 = vmatpush2.msra.mxu0 0.0
    %774 = vmatprep.subr.mxu0 0.0
    %775 = vmatpush2.msra.mxu0 0.0
    %776 = vmatprep.subr.mxu0 0.0
    %777 = vmatpush2.msra.mxu0 0.0
    %778 = vmatprep.subr.mxu0 0.0
    %779 = vmatpush2.msra.mxu0 0.0
    %780 = vmatprep.subr.mxu0 0.0
    %781 = vmatpush2.msra.mxu0 0.0
    %782 = vmatprep.subr.mxu0 0.0
    %783 = vmatpush2.msra.mxu0 0.0
    %784 = vmatprep.subr.mxu0 0.0
    %785 = vmatpush2.msra.mxu0 0.0
    %786 = vmatprep.subr.mxu0 0.0
    %787 = vmatpush2.msra.mxu0 0.0
    %788 = vmatprep.subr.mxu0 0.0
    %789 = vmatpush2.msra.mxu0 0.0
    %790 = vmatprep.mubr.f32.mxu0 0.0
    %791 = vmatmul.mubr.f32.gmra.mxu0 %v724
    %v792 = vpop.f32.mrf.mxu0
    %v793 = vadd.f32 0.0, %v792
    %v794 = vpop.f32.mrf.mxu0
    %795 = vdwg.mxu0
    %v797 = vrot.slane %v793, 6
    %v799 = vadd.f32 %v165, %v797
    %v800 = vxor.u32 %v799, 2147483648
    %v801 = vmul.f32 %v800, 1.442695
    %v802 = vpow.pop %v801
    %v803 = vadd.f32 %v802, 1.0
    %v804 = vrcp.pop %v803
    %v805 = vmul.f32 1.0, %v804
    %v806 = vtanh.pop %v799
    %v808 = vrot.slane %v712, 6
    %v810 = vmul.f32 %v805, %v808
    %812 = vrot.lane.b32.xlu0 %v806, 32
    %v813 = vpop.permute.xlu0 %812
    %v815 = vmul.f32 %v805, %v813
    %817 = vrot.lane.b32.xlu0 %v815, 32
    %v818 = vpop.permute.xlu0 %817
    %v820 = vadd.f32 %v810, %v818
    %v821 = vtanh.pop %v820
    %823 = vrot.lane.b32.xlu0 %v821, 32
    %v824 = vpop.permute.xlu0 %823
    %v826 = vmul.f32 %v805, %v824
    %828 = vrot.lane.b32.xlu0 %v826, 64
    %v829 = vpop.permute.xlu0 %828
    %831 = vst.msk [vmem:[#allocation2 + $0x8] sm:$0xc] %vm390, %v829
    %v832 = vrot.slane %v826, 2
    %833 = vrot.lane.b32.xlu0 %v832, 64
    %v834 = vpop.permute.xlu0 %833
    %v835 = vsel %vm178, %v834, 0
    %837 = vmatprep.subr.mxu0 0.0
    %838 = vmatpush1.msra.mxu0 0.0
    %839 = vmatprep.subr.mxu0 0.0
    %840 = vmatpush1.msra.mxu0 0.0
    %841 = vmatprep.subr.mxu0 0.0
    %842 = vmatpush1.msra.mxu0 0.0
    %843 = vmatprep.subr.mxu0 0.0
    %844 = vmatpush1.msra.mxu0 0.0
    %845 = vmatprep.subr.mxu0 0.0
    %846 = vmatpush1.msra.mxu0 0.0
    %847 = vmatprep.subr.mxu0 0.0
    %848 = vmatpush1.msra.mxu0 0.0
    %849 = vmatprep.subr.mxu0 0.0
    %850 = vmatpush1.msra.mxu0 0.0
    %851 = vmatprep.subr.mxu0 0.0
    %852 = vmatpush1.msra.mxu0 0.0
    %853 = vmatprep.subr.mxu0 0.0
    %854 = vmatpush1.msra.mxu0 0.0
    %855 = vmatprep.subr.mxu0 0.0
    %856 = vmatpush1.msra.mxu0 0.0
    %857 = vmatprep.subr.mxu0 0.0
    %858 = vmatpush1.msra.mxu0 0.0
    %859 = vmatprep.subr.mxu0 0.0
    %860 = vmatpush1.msra.mxu0 0.0
    %861 = vmatprep.subr.mxu0 0.0
    %862 = vmatpush1.msra.mxu0 %v172
    %863 = vmatprep.subr.mxu0 0.0
    %864 = vmatpush1.msra.mxu0 %v171
    %865 = vmatprep.subr.mxu0 0.0
    %866 = vmatpush1.msra.mxu0 %v170
    %867 = vmatprep.subr.mxu0 0.0
    %868 = vmatpush1.msra.mxu0 %v169
    %869 = vmatprep.subr.mxu0 0.0
    %870 = vmatpush2.msra.mxu0 0.0
    %871 = vmatprep.subr.mxu0 0.0
    %872 = vmatpush2.msra.mxu0 0.0
    %873 = vmatprep.subr.mxu0 0.0
    %874 = vmatpush2.msra.mxu0 0.0
    %875 = vmatprep.subr.mxu0 0.0
    %876 = vmatpush2.msra.mxu0 0.0
    %877 = vmatprep.subr.mxu0 0.0
    %878 = vmatpush2.msra.mxu0 0.0
    %879 = vmatprep.subr.mxu0 0.0
    %880 = vmatpush2.msra.mxu0 0.0
    %881 = vmatprep.subr.mxu0 0.0
    %882 = vmatpush2.msra.mxu0 0.0
    %883 = vmatprep.subr.mxu0 0.0
    %884 = vmatpush2.msra.mxu0 0.0
    %885 = vmatprep.subr.mxu0 0.0
    %886 = vmatpush2.msra.mxu0 0.0
    %887 = vmatprep.subr.mxu0 0.0
    %888 = vmatpush2.msra.mxu0 0.0
    %889 = vmatprep.subr.mxu0 0.0
    %890 = vmatpush2.msra.mxu0 0.0
    %891 = vmatprep.subr.mxu0 0.0
    %892 = vmatpush2.msra.mxu0 0.0
    %893 = vmatprep.subr.mxu0 0.0
    %894 = vmatpush2.msra.mxu0 0.0
    %895 = vmatprep.subr.mxu0 0.0
    %896 = vmatpush2.msra.mxu0 0.0
    %897 = vmatprep.subr.mxu0 0.0
    %898 = vmatpush2.msra.mxu0 0.0
    %899 = vmatprep.subr.mxu0 0.0
    %900 = vmatpush2.msra.mxu0 0.0
    %901 = vmatprep.mubr.f32.mxu0 0.0
    %902 = vmatmul.mubr.f32.gmra.mxu0 %v835
    %v903 = vpop.f32.mrf.mxu0
    %v904 = vadd.f32 0.0, %v903
    %v905 = vpop.f32.mrf.mxu0
    %906 = vdwg.mxu0
    %v908 = vrot.slane %v904, 4
    %v910 = vadd.f32 %v165, %v908
    %v911 = vxor.u32 %v910, 2147483648
    %v912 = vmul.f32 %v911, 1.442695
    %v913 = vpow.pop %v912
    %v914 = vadd.f32 %v913, 1.0
    %v915 = vrcp.pop %v914
    %v916 = vmul.f32 1.0, %v915
    %v917 = vtanh.pop %v910
    %v919 = vrot.slane %v820, 6
    %v921 = vmul.f32 %v916, %v919
    %923 = vrot.lane.b32.xlu0 %v917, 32
    %v924 = vpop.permute.xlu0 %923
    %v926 = vmul.f32 %v916, %v924
    %928 = vrot.lane.b32.xlu0 %v926, 32
    %v929 = vpop.permute.xlu0 %928
    %v931 = vadd.f32 %v921, %v929
    %v932 = vtanh.pop %v931
    %934 = vrot.lane.b32.xlu0 %v932, 32
    %v935 = vpop.permute.xlu0 %934
    %v937 = vmul.f32 %v916, %v935
    %939 = vrot.lane.b32.xlu0 %v937, 64
    %v940 = vpop.permute.xlu0 %939
    %942 = vst.msk [vmem:[#allocation2 + $0x8] sm:$0x30] %vm502, %v940
    %v943 = vrot.slane %v937, 4
    %944 = vrot.lane.b32.xlu0 %v943, 64
    %v945 = vpop.permute.xlu0 %944
    %v946 = vsel %vm178, %v945, 0
    %948 = vmatprep.subr.mxu0 0.0
    %949 = vmatpush1.msra.mxu0 0.0
    %950 = vmatprep.subr.mxu0 0.0
    %951 = vmatpush1.msra.mxu0 0.0
    %952 = vmatprep.subr.mxu0 0.0
    %953 = vmatpush1.msra.mxu0 0.0
    %954 = vmatprep.subr.mxu0 0.0
    %955 = vmatpush1.msra.mxu0 0.0
    %956 = vmatprep.subr.mxu0 0.0
    %957 = vmatpush1.msra.mxu0 0.0
    %958 = vmatprep.subr.mxu0 0.0
    %959 = vmatpush1.msra.mxu0 0.0
    %960 = vmatprep.subr.mxu0 0.0
    %961 = vmatpush1.msra.mxu0 0.0
    %962 = vmatprep.subr.mxu0 0.0
    %963 = vmatpush1.msra.mxu0 0.0
    %964 = vmatprep.subr.mxu0 0.0
    %965 = vmatpush1.msra.mxu0 0.0
    %966 = vmatprep.subr.mxu0 0.0
    %967 = vmatpush1.msra.mxu0 0.0
    %968 = vmatprep.subr.mxu0 0.0
    %969 = vmatpush1.msra.mxu0 0.0
    %970 = vmatprep.subr.mxu0 0.0
    %971 = vmatpush1.msra.mxu0 0.0
    %972 = vmatprep.subr.mxu0 0.0
    %973 = vmatpush1.msra.mxu0 %v172
    %974 = vmatprep.subr.mxu0 0.0
    %975 = vmatpush1.msra.mxu0 %v171
    %976 = vmatprep.subr.mxu0 0.0
    %977 = vmatpush1.msra.mxu0 %v170
    %978 = vmatprep.subr.mxu0 0.0
    %979 = vmatpush1.msra.mxu0 %v169
    %980 = vmatprep.subr.mxu0 0.0
    %981 = vmatpush2.msra.mxu0 0.0
    %982 = vmatprep.subr.mxu0 0.0
    %983 = vmatpush2.msra.mxu0 0.0
    %984 = vmatprep.subr.mxu0 0.0
    %985 = vmatpush2.msra.mxu0 0.0
    %986 = vmatprep.subr.mxu0 0.0
    %987 = vmatpush2.msra.mxu0 0.0
    %988 = vmatprep.subr.mxu0 0.0
    %989 = vmatpush2.msra.mxu0 0.0
    %990 = vmatprep.subr.mxu0 0.0
    %991 = vmatpush2.msra.mxu0 0.0
    %992 = vmatprep.subr.mxu0 0.0
    %993 = vmatpush2.msra.mxu0 0.0
    %994 = vmatprep.subr.mxu0 0.0
    %995 = vmatpush2.msra.mxu0 0.0
    %996 = vmatprep.subr.mxu0 0.0
    %997 = vmatpush2.msra.mxu0 0.0
    %998 = vmatprep.subr.mxu0 0.0
    %999 = vmatpush2.msra.mxu0 0.0
    %1000 = vmatprep.subr.mxu0 0.0
    %1001 = vmatpush2.msra.mxu0 0.0
    %1002 = vmatprep.subr.mxu0 0.0
    %1003 = vmatpush2.msra.mxu0 0.0
    %1004 = vmatprep.subr.mxu0 0.0
    %1005 = vmatpush2.msra.mxu0 0.0
    %1006 = vmatprep.subr.mxu0 0.0
    %1007 = vmatpush2.msra.mxu0 0.0
    %1008 = vmatprep.subr.mxu0 0.0
    %1009 = vmatpush2.msra.mxu0 0.0
    %1010 = vmatprep.subr.mxu0 0.0
    %1011 = vmatpush2.msra.mxu0 0.0
    %1012 = vmatprep.mubr.f32.mxu0 0.0
    %1013 = vmatmul.mubr.f32.gmra.mxu0 %v946
    %v1014 = vpop.f32.mrf.mxu0
    %v1015 = vadd.f32 0.0, %v1014
    %v1016 = vpop.f32.mrf.mxu0
    %1017 = vdwg.mxu0
    %v1019 = vrot.slane %v1015, 2
    %v1021 = vadd.f32 %v165, %v1019
    %v1022 = vxor.u32 %v1021, 2147483648
    %v1023 = vmul.f32 %v1022, 1.442695
    %v1024 = vpow.pop %v1023
    %v1025 = vadd.f32 %v1024, 1.0
    %v1026 = vrcp.pop %v1025
    %v1027 = vmul.f32 1.0, %v1026
    %v1028 = vtanh.pop %v1021
    %v1030 = vrot.slane %v931, 6
    %v1032 = vmul.f32 %v1027, %v1030
    %1034 = vrot.lane.b32.xlu0 %v1028, 32
    %v1035 = vpop.permute.xlu0 %1034
    %v1037 = vmul.f32 %v1027, %v1035
    %1039 = vrot.lane.b32.xlu0 %v1037, 32
    %v1040 = vpop.permute.xlu0 %1039
    %v1042 = vadd.f32 %v1032, %v1040
    %v1043 = vtanh.pop %v1042
    %1045 = vrot.lane.b32.xlu0 %v1043, 32
    %v1046 = vpop.permute.xlu0 %1045
    %v1048 = vmul.f32 %v1027, %v1046
    %1050 = vrot.lane.b32.xlu0 %v1048, 64
    %v1051 = vpop.permute.xlu0 %1050
    %1053 = vst.msk [vmem:[#allocation2 + $0x8] sm:$0xc0] %vm614, %v1051
    %1054 = vmatprep.subr.mxu0 0.0
    %1055 = vmatpush1.msra.mxu0 0.0
    %1056 = vmatprep.subr.mxu0 0.0
    %1057 = vmatpush1.msra.mxu0 0.0
    %1058 = vmatprep.subr.mxu0 0.0
    %1059 = vmatpush1.msra.mxu0 0.0
    %1060 = vmatprep.subr.mxu0 0.0
    %1061 = vmatpush1.msra.mxu0 0.0
    %1062 = vmatprep.subr.mxu0 0.0
    %1063 = vmatpush1.msra.mxu0 0.0
    %1064 = vmatprep.subr.mxu0 0.0
    %1065 = vmatpush1.msra.mxu0 0.0
    %1066 = vmatprep.subr.mxu0 0.0
    %1067 = vmatpush1.msra.mxu0 0.0
    %1068 = vmatprep.subr.mxu0 0.0
    %1069 = vmatpush1.msra.mxu0 0.0
    %1070 = vmatprep.subr.mxu0 0.0
    %1071 = vmatpush1.msra.mxu0 0.0
    %1072 = vmatprep.subr.mxu0 0.0
    %1073 = vmatpush1.msra.mxu0 0.0
    %1074 = vmatprep.subr.mxu0 0.0
    %1075 = vmatpush1.msra.mxu0 0.0
    %1076 = vmatprep.subr.mxu0 0.0
    %1077 = vmatpush1.msra.mxu0 0.0
    %1078 = vmatprep.subr.mxu0 0.0
    %1079 = vmatpush1.msra.mxu0 %v177
    %1080 = vmatprep.subr.mxu0 0.0
    %1081 = vmatpush1.msra.mxu0 %v176
    %1082 = vmatprep.subr.mxu0 0.0
    %1083 = vmatpush1.msra.mxu0 %v175
    %1084 = vmatprep.subr.mxu0 0.0
    %1085 = vmatpush1.msra.mxu0 %v174
    %1086 = vmatprep.subr.mxu0 0.0
    %1087 = vmatpush2.msra.mxu0 0.0
    %1088 = vmatprep.subr.mxu0 0.0
    %1089 = vmatpush2.msra.mxu0 0.0
    %1090 = vmatprep.subr.mxu0 0.0
    %1091 = vmatpush2.msra.mxu0 0.0
    %1092 = vmatprep.subr.mxu0 0.0
    %1093 = vmatpush2.msra.mxu0 0.0
    %1094 = vmatprep.subr.mxu0 0.0
    %1095 = vmatpush2.msra.mxu0 0.0
    %1096 = vmatprep.subr.mxu0 0.0
    %1097 = vmatpush2.msra.mxu0 0.0
    %1098 = vmatprep.subr.mxu0 0.0
    %1099 = vmatpush2.msra.mxu0 0.0
    %1100 = vmatprep.subr.mxu0 0.0
    %1101 = vmatpush2.msra.mxu0 0.0
    %1102 = vmatprep.subr.mxu0 0.0
    %1103 = vmatpush2.msra.mxu0 0.0
    %1104 = vmatprep.subr.mxu0 0.0
    %1105 = vmatpush2.msra.mxu0 0.0
    %1106 = vmatprep.subr.mxu0 0.0
    %1107 = vmatpush2.msra.mxu0 0.0
    %1108 = vmatprep.subr.mxu0 0.0
    %1109 = vmatpush2.msra.mxu0 0.0
    %1110 = vmatprep.subr.mxu0 0.0
    %1111 = vmatpush2.msra.mxu0 0.0
    %1112 = vmatprep.subr.mxu0 0.0
    %1113 = vmatpush2.msra.mxu0 0.0
    %1114 = vmatprep.subr.mxu0 0.0
    %1115 = vmatpush2.msra.mxu0 0.0
    %1116 = vmatprep.subr.mxu0 0.0
    %1117 = vmatpush2.msra.mxu0 0.0
    %1118 = vmatprep.mubr.f32.mxu0 0.0
    %1119 = vmatmul.mubr.f32.gmra.mxu0 %v180
    %v1120 = vpop.f32.mrf.mxu0
    %v1121 = vadd.f32 0.0, %v1120
    %v1122 = vpop.f32.mrf.mxu0
    %1123 = vdwg.mxu0
    %v1125 = vrot.slane %v1121, 2
    %v1127 = vadd.f32 %v167, %v1125
    %v1128 = vxor.u32 %v1127, 2147483648
    %v1129 = vmul.f32 %v1128, 1.442695
    %v1130 = vpow.pop %v1129
    %v1131 = vadd.f32 %v1130, 1.0
    %v1132 = vrcp.pop %v1131
    %v1133 = vmul.f32 1.0, %v1132
    %v1134 = vtanh.pop %v1127
    %v1135 = vmul.f32 %v1133, 0.0
    %1137 = vrot.lane.b32.xlu0 %v1134, 32
    %v1138 = vpop.permute.xlu0 %1137
    %v1140 = vmul.f32 %v1133, %v1138
    %1142 = vrot.lane.b32.xlu0 %v1140, 32
    %v1143 = vpop.permute.xlu0 %1142
    %v1145 = vadd.f32 %v1135, %v1143
    %v1146 = vtanh.pop %v1145
    %1148 = vrot.lane.b32.xlu0 %v1146, 32
    %v1149 = vpop.permute.xlu0 %1148
    %v1151 = vmul.f32 %v1133, %v1149
    %1153 = vrot.lane.b32.xlu0 %v1151, 96
    %v1154 = vpop.permute.xlu0 %1153
    %vm1156 = vcmask 523526
    %1157 = vst.msk [vmem:[#allocation2 + $0x8] sm:$0xc0] %vm1156, %v1154
    %v1158 = vrot.slane %v1151, 6
    %1159 = vrot.lane.b32.xlu0 %v1158, 64
    %v1160 = vpop.permute.xlu0 %1159
    %v1161 = vsel %vm178, %v1160, 0
    %1163 = vmatprep.subr.mxu0 0.0
    %1164 = vmatpush1.msra.mxu0 0.0
    %1165 = vmatprep.subr.mxu0 0.0
    %1166 = vmatpush1.msra.mxu0 0.0
    %1167 = vmatprep.subr.mxu0 0.0
    %1168 = vmatpush1.msra.mxu0 0.0
    %1169 = vmatprep.subr.mxu0 0.0
    %1170 = vmatpush1.msra.mxu0 0.0
    %1171 = vmatprep.subr.mxu0 0.0
    %1172 = vmatpush1.msra.mxu0 0.0
    %1173 = vmatprep.subr.mxu0 0.0
    %1174 = vmatpush1.msra.mxu0 0.0
    %1175 = vmatprep.subr.mxu0 0.0
    %1176 = vmatpush1.msra.mxu0 0.0
    %1177 = vmatprep.subr.mxu0 0.0
    %1178 = vmatpush1.msra.mxu0 0.0
    %1179 = vmatprep.subr.mxu0 0.0
    %1180 = vmatpush1.msra.mxu0 0.0
    %1181 = vmatprep.subr.mxu0 0.0
    %1182 = vmatpush1.msra.mxu0 0.0
    %1183 = vmatprep.subr.mxu0 0.0
    %1184 = vmatpush1.msra.mxu0 0.0
    %1185 = vmatprep.subr.mxu0 0.0
    %1186 = vmatpush1.msra.mxu0 0.0
    %1187 = vmatprep.subr.mxu0 0.0
    %1188 = vmatpush1.msra.mxu0 %v177
    %1189 = vmatprep.subr.mxu0 0.0
    %1190 = vmatpush1.msra.mxu0 %v176
    %1191 = vmatprep.subr.mxu0 0.0
    %1192 = vmatpush1.msra.mxu0 %v175
    %1193 = vmatprep.subr.mxu0 0.0
    %1194 = vmatpush1.msra.mxu0 %v174
    %1195 = vmatprep.subr.mxu0 0.0
    %1196 = vmatpush2.msra.mxu0 0.0
    %1197 = vmatprep.subr.mxu0 0.0
    %1198 = vmatpush2.msra.mxu0 0.0
    %1199 = vmatprep.subr.mxu0 0.0
    %1200 = vmatpush2.msra.mxu0 0.0
    %1201 = vmatprep.subr.mxu0 0.0
    %1202 = vmatpush2.msra.mxu0 0.0
    %1203 = vmatprep.subr.mxu0 0.0
    %1204 = vmatpush2.msra.mxu0 0.0
    %1205 = vmatprep.subr.mxu0 0.0
    %1206 = vmatpush2.msra.mxu0 0.0
    %1207 = vmatprep.subr.mxu0 0.0
    %1208 = vmatpush2.msra.mxu0 0.0
    %1209 = vmatprep.subr.mxu0 0.0
    %1210 = vmatpush2.msra.mxu0 0.0
    %1211 = vmatprep.subr.mxu0 0.0
    %1212 = vmatpush2.msra.mxu0 0.0
    %1213 = vmatprep.subr.mxu0 0.0
    %1214 = vmatpush2.msra.mxu0 0.0
    %1215 = vmatprep.subr.mxu0 0.0
    %1216 = vmatpush2.msra.mxu0 0.0
    %1217 = vmatprep.subr.mxu0 0.0
    %1218 = vmatpush2.msra.mxu0 0.0
    %1219 = vmatprep.subr.mxu0 0.0
    %1220 = vmatpush2.msra.mxu0 0.0
    %1221 = vmatprep.subr.mxu0 0.0
    %1222 = vmatpush2.msra.mxu0 0.0
    %1223 = vmatprep.subr.mxu0 0.0
    %1224 = vmatpush2.msra.mxu0 0.0
    %1225 = vmatprep.subr.mxu0 0.0
    %1226 = vmatpush2.msra.mxu0 0.0
    %1227 = vmatprep.mubr.f32.mxu0 0.0
    %1228 = vmatmul.mubr.f32.gmra.mxu0 %v1161
    %v1229 = vpop.f32.mrf.mxu0
    %v1230 = vadd.f32 0.0, %v1229
    %v1231 = vpop.f32.mrf.mxu0
    %1232 = vdwg.mxu0
    %v1234 = vrot.slane %v1230, 4
    %v1236 = vadd.f32 %v167, %v1234
    %v1237 = vxor.u32 %v1236, 2147483648
    %v1238 = vmul.f32 %v1237, 1.442695
    %v1239 = vpow.pop %v1238
    %v1240 = vadd.f32 %v1239, 1.0
    %v1241 = vrcp.pop %v1240
    %v1242 = vmul.f32 1.0, %v1241
    %v1243 = vtanh.pop %v1236
    %v1245 = vrot.slane %v1145, 2
    %v1247 = vmul.f32 %v1242, %v1245
    %1249 = vrot.lane.b32.xlu0 %v1243, 32
    %v1250 = vpop.permute.xlu0 %1249
    %v1252 = vmul.f32 %v1242, %v1250
    %1254 = vrot.lane.b32.xlu0 %v1252, 32
    %v1255 = vpop.permute.xlu0 %1254
    %v1257 = vadd.f32 %v1247, %v1255
    %v1258 = vtanh.pop %v1257
    %1260 = vrot.lane.b32.xlu0 %v1258, 32
    %v1261 = vpop.permute.xlu0 %1260
    %v1263 = vmul.f32 %v1242, %v1261
    %1265 = vrot.lane.b32.xlu0 %v1263, 96
    %v1266 = vpop.permute.xlu0 %1265
    %vm1268 = vcmask 521476
    %1269 = vst.msk [vmem:[#allocation2 + $0x8] sm:$0x30] %vm1268, %v1266
    %v1270 = vrot.slane %v1263, 4
    %1271 = vrot.lane.b32.xlu0 %v1270, 64
    %v1272 = vpop.permute.xlu0 %1271
    %v1273 = vsel %vm178, %v1272, 0
    %1275 = vmatprep.subr.mxu0 0.0
    %1276 = vmatpush1.msra.mxu0 0.0
    %1277 = vmatprep.subr.mxu0 0.0
    %1278 = vmatpush1.msra.mxu0 0.0
    %1279 = vmatprep.subr.mxu0 0.0
    %1280 = vmatpush1.msra.mxu0 0.0
    %1281 = vmatprep.subr.mxu0 0.0
    %1282 = vmatpush1.msra.mxu0 0.0
    %1283 = vmatprep.subr.mxu0 0.0
    %1284 = vmatpush1.msra.mxu0 0.0
    %1285 = vmatprep.subr.mxu0 0.0
    %1286 = vmatpush1.msra.mxu0 0.0
    %1287 = vmatprep.subr.mxu0 0.0
    %1288 = vmatpush1.msra.mxu0 0.0
    %1289 = vmatprep.subr.mxu0 0.0
    %1290 = vmatpush1.msra.mxu0 0.0
    %1291 = vmatprep.subr.mxu0 0.0
    %1292 = vmatpush1.msra.mxu0 0.0
    %1293 = vmatprep.subr.mxu0 0.0
    %1294 = vmatpush1.msra.mxu0 0.0
    %1295 = vmatprep.subr.mxu0 0.0
    %1296 = vmatpush1.msra.mxu0 0.0
    %1297 = vmatprep.subr.mxu0 0.0
    %1298 = vmatpush1.msra.mxu0 0.0
    %1299 = vmatprep.subr.mxu0 0.0
    %1300 = vmatpush1.msra.mxu0 %v177
    %1301 = vmatprep.subr.mxu0 0.0
    %1302 = vmatpush1.msra.mxu0 %v176
    %1303 = vmatprep.subr.mxu0 0.0
    %1304 = vmatpush1.msra.mxu0 %v175
    %1305 = vmatprep.subr.mxu0 0.0
    %1306 = vmatpush1.msra.mxu0 %v174
    %1307 = vmatprep.subr.mxu0 0.0
    %1308 = vmatpush2.msra.mxu0 0.0
    %1309 = vmatprep.subr.mxu0 0.0
    %1310 = vmatpush2.msra.mxu0 0.0
    %1311 = vmatprep.subr.mxu0 0.0
    %1312 = vmatpush2.msra.mxu0 0.0
    %1313 = vmatprep.subr.mxu0 0.0
    %1314 = vmatpush2.msra.mxu0 0.0
    %1315 = vmatprep.subr.mxu0 0.0
    %1316 = vmatpush2.msra.mxu0 0.0
    %1317 = vmatprep.subr.mxu0 0.0
    %1318 = vmatpush2.msra.mxu0 0.0
    %1319 = vmatprep.subr.mxu0 0.0
    %1320 = vmatpush2.msra.mxu0 0.0
    %1321 = vmatprep.subr.mxu0 0.0
    %1322 = vmatpush2.msra.mxu0 0.0
    %1323 = vmatprep.subr.mxu0 0.0
    %1324 = vmatpush2.msra.mxu0 0.0
    %1325 = vmatprep.subr.mxu0 0.0
    %1326 = vmatpush2.msra.mxu0 0.0
    %1327 = vmatprep.subr.mxu0 0.0
    %1328 = vmatpush2.msra.mxu0 0.0
    %1329 = vmatprep.subr.mxu0 0.0
    %1330 = vmatpush2.msra.mxu0 0.0
    %1331 = vmatprep.subr.mxu0 0.0
    %1332 = vmatpush2.msra.mxu0 0.0
    %1333 = vmatprep.subr.mxu0 0.0
    %1334 = vmatpush2.msra.mxu0 0.0
    %1335 = vmatprep.subr.mxu0 0.0
    %1336 = vmatpush2.msra.mxu0 0.0
    %1337 = vmatprep.subr.mxu0 0.0
    %1338 = vmatpush2.msra.mxu0 0.0
    %1339 = vmatprep.mubr.f32.mxu0 0.0
    %1340 = vmatmul.mubr.f32.gmra.mxu0 %v1273
    %v1341 = vpop.f32.mrf.mxu0
    %v1342 = vadd.f32 0.0, %v1341
    %v1343 = vpop.f32.mrf.mxu0
    %1344 = vdwg.mxu0
    %v1346 = vrot.slane %v1342, 6
    %v1348 = vadd.f32 %v167, %v1346
    %v1349 = vxor.u32 %v1348, 2147483648
    %v1350 = vmul.f32 %v1349, 1.442695
    %v1351 = vpow.pop %v1350
    %v1352 = vadd.f32 %v1351, 1.0
    %v1353 = vrcp.pop %v1352
    %v1354 = vmul.f32 1.0, %v1353
    %v1355 = vtanh.pop %v1348
    %v1357 = vrot.slane %v1257, 2
    %v1359 = vmul.f32 %v1354, %v1357
    %1361 = vrot.lane.b32.xlu0 %v1355, 32
    %v1362 = vpop.permute.xlu0 %1361
    %v1364 = vmul.f32 %v1354, %v1362
    %1366 = vrot.lane.b32.xlu0 %v1364, 32
    %v1367 = vpop.permute.xlu0 %1366
    %v1369 = vadd.f32 %v1359, %v1367
    %v1370 = vtanh.pop %v1369
    %1372 = vrot.lane.b32.xlu0 %v1370, 32
    %v1373 = vpop.permute.xlu0 %1372
    %v1375 = vmul.f32 %v1354, %v1373
    %1377 = vrot.lane.b32.xlu0 %v1375, 96
    %v1378 = vpop.permute.xlu0 %1377
    %vm1380 = vcmask 519426
    %1381 = vst.msk [vmem:[#allocation2 + $0x8] sm:$0xc] %vm1380, %v1378
    %v1382 = vrot.slane %v1375, 2
    %1383 = vrot.lane.b32.xlu0 %v1382, 64
    %v1384 = vpop.permute.xlu0 %1383
    %v1385 = vsel %vm178, %v1384, 0
    %1387 = vmatprep.subr.mxu0 0.0
    %1388 = vmatpush1.msra.mxu0 0.0
    %1389 = vmatprep.subr.mxu0 0.0
    %1390 = vmatpush1.msra.mxu0 0.0
    %1391 = vmatprep.subr.mxu0 0.0
    %1392 = vmatpush1.msra.mxu0 0.0
    %1393 = vmatprep.subr.mxu0 0.0
    %1394 = vmatpush1.msra.mxu0 0.0
    %1395 = vmatprep.subr.mxu0 0.0
    %1396 = vmatpush1.msra.mxu0 0.0
    %1397 = vmatprep.subr.mxu0 0.0
    %1398 = vmatpush1.msra.mxu0 0.0
    %1399 = vmatprep.subr.mxu0 0.0
    %1400 = vmatpush1.msra.mxu0 0.0
    %1401 = vmatprep.subr.mxu0 0.0
    %1402 = vmatpush1.msra.mxu0 0.0
    %1403 = vmatprep.subr.mxu0 0.0
    %1404 = vmatpush1.msra.mxu0 0.0
    %1405 = vmatprep.subr.mxu0 0.0
    %1406 = vmatpush1.msra.mxu0 0.0
    %1407 = vmatprep.subr.mxu0 0.0
    %1408 = vmatpush1.msra.mxu0 0.0
    %1409 = vmatprep.subr.mxu0 0.0
    %1410 = vmatpush1.msra.mxu0 0.0
    %1411 = vmatprep.subr.mxu0 0.0
    %1412 = vmatpush1.msra.mxu0 %v177
    %1413 = vmatprep.subr.mxu0 0.0
    %1414 = vmatpush1.msra.mxu0 %v176
    %1415 = vmatprep.subr.mxu0 0.0
    %1416 = vmatpush1.msra.mxu0 %v175
    %1417 = vmatprep.subr.mxu0 0.0
    %1418 = vmatpush1.msra.mxu0 %v174
    %1419 = vmatprep.subr.mxu0 0.0
    %1420 = vmatpush2.msra.mxu0 0.0
    %1421 = vmatprep.subr.mxu0 0.0
    %1422 = vmatpush2.msra.mxu0 0.0
    %1423 = vmatprep.subr.mxu0 0.0
    %1424 = vmatpush2.msra.mxu0 0.0
    %1425 = vmatprep.subr.mxu0 0.0
    %1426 = vmatpush2.msra.mxu0 0.0
    %1427 = vmatprep.subr.mxu0 0.0
    %1428 = vmatpush2.msra.mxu0 0.0
    %1429 = vmatprep.subr.mxu0 0.0
    %1430 = vmatpush2.msra.mxu0 0.0
    %1431 = vmatprep.subr.mxu0 0.0
    %1432 = vmatpush2.msra.mxu0 0.0
    %1433 = vmatprep.subr.mxu0 0.0
    %1434 = vmatpush2.msra.mxu0 0.0
    %1435 = vmatprep.subr.mxu0 0.0
    %1436 = vmatpush2.msra.mxu0 0.0
    %1437 = vmatprep.subr.mxu0 0.0
    %1438 = vmatpush2.msra.mxu0 0.0
    %1439 = vmatprep.subr.mxu0 0.0
    %1440 = vmatpush2.msra.mxu0 0.0
    %1441 = vmatprep.subr.mxu0 0.0
    %1442 = vmatpush2.msra.mxu0 0.0
    %1443 = vmatprep.subr.mxu0 0.0
    %1444 = vmatpush2.msra.mxu0 0.0
    %1445 = vmatprep.subr.mxu0 0.0
    %1446 = vmatpush2.msra.mxu0 0.0
    %1447 = vmatprep.subr.mxu0 0.0
    %1448 = vmatpush2.msra.mxu0 0.0
    %1449 = vmatprep.subr.mxu0 0.0
    %1450 = vmatpush2.msra.mxu0 0.0
    %1451 = vmatprep.mubr.f32.mxu0 0.0
    %1452 = vmatmul.mubr.f32.gmra.mxu0 %v1385
    %v1453 = vpop.f32.mrf.mxu0
    %v1454 = vadd.f32 0.0, %v1453
    %v1455 = vpop.f32.mrf.mxu0
    %1456 = vdwg.mxu0
    %v1457 = vadd.f32 %v167, %v1454
    %v1458 = vxor.u32 %v1457, 2147483648
    %v1459 = vmul.f32 %v1458, 1.442695
    %v1460 = vpow.pop %v1459
    %v1461 = vadd.f32 %v1460, 1.0
    %v1462 = vrcp.pop %v1461
    %v1463 = vmul.f32 1.0, %v1462
    %v1464 = vtanh.pop %v1457
    %v1466 = vrot.slane %v1369, 2
    %v1468 = vmul.f32 %v1463, %v1466
    %1470 = vrot.lane.b32.xlu0 %v1464, 32
    %v1471 = vpop.permute.xlu0 %1470
    %v1473 = vmul.f32 %v1463, %v1471
    %1475 = vrot.lane.b32.xlu0 %v1473, 32
    %v1476 = vpop.permute.xlu0 %1475
    %v1478 = vadd.f32 %v1468, %v1476
    %v1479 = vtanh.pop %v1478
    %1481 = vrot.lane.b32.xlu0 %v1479, 32
    %v1482 = vpop.permute.xlu0 %1481
    %v1484 = vmul.f32 %v1463, %v1482
    %1486 = vrot.lane.b32.xlu0 %v1484, 96
    %v1487 = vpop.permute.xlu0 %1486
    %vm1489 = vcmask 517376
    %1490 = vst.msk [vmem:[#allocation2 + $0x8] sm:$0x3] %vm1489, %v1487
    %1491 = vrot.lane.b32.xlu0 %v1484, 64
    %v1492 = vpop.permute.xlu0 %1491
    %v1493 = vsel %vm178, %v1492, 0
    %1495 = vmatprep.subr.mxu0 0.0
    %1496 = vmatpush1.msra.mxu0 0.0
    %1497 = vmatprep.subr.mxu0 0.0
    %1498 = vmatpush1.msra.mxu0 0.0
    %1499 = vmatprep.subr.mxu0 0.0
    %1500 = vmatpush1.msra.mxu0 0.0
    %1501 = vmatprep.subr.mxu0 0.0
    %1502 = vmatpush1.msra.mxu0 0.0
    %1503 = vmatprep.subr.mxu0 0.0
    %1504 = vmatpush1.msra.mxu0 0.0
    %1505 = vmatprep.subr.mxu0 0.0
    %1506 = vmatpush1.msra.mxu0 0.0
    %1507 = vmatprep.subr.mxu0 0.0
    %1508 = vmatpush1.msra.mxu0 0.0
    %1509 = vmatprep.subr.mxu0 0.0
    %1510 = vmatpush1.msra.mxu0 0.0
    %1511 = vmatprep.subr.mxu0 0.0
    %1512 = vmatpush1.msra.mxu0 0.0
    %1513 = vmatprep.subr.mxu0 0.0
    %1514 = vmatpush1.msra.mxu0 0.0
    %1515 = vmatprep.subr.mxu0 0.0
    %1516 = vmatpush1.msra.mxu0 0.0
    %1517 = vmatprep.subr.mxu0 0.0
    %1518 = vmatpush1.msra.mxu0 0.0
    %1519 = vmatprep.subr.mxu0 0.0
    %1520 = vmatpush1.msra.mxu0 %v177
    %1521 = vmatprep.subr.mxu0 0.0
    %1522 = vmatpush1.msra.mxu0 %v176
    %1523 = vmatprep.subr.mxu0 0.0
    %1524 = vmatpush1.msra.mxu0 %v175
    %1525 = vmatprep.subr.mxu0 0.0
    %1526 = vmatpush1.msra.mxu0 %v174
    %1527 = vmatprep.subr.mxu0 0.0
    %1528 = vmatpush2.msra.mxu0 0.0
    %1529 = vmatprep.subr.mxu0 0.0
    %1530 = vmatpush2.msra.mxu0 0.0
    %1531 = vmatprep.subr.mxu0 0.0
    %1532 = vmatpush2.msra.mxu0 0.0
    %1533 = vmatprep.subr.mxu0 0.0
    %1534 = vmatpush2.msra.mxu0 0.0
    %1535 = vmatprep.subr.mxu0 0.0
    %1536 = vmatpush2.msra.mxu0 0.0
    %1537 = vmatprep.subr.mxu0 0.0
    %1538 = vmatpush2.msra.mxu0 0.0
    %1539 = vmatprep.subr.mxu0 0.0
    %1540 = vmatpush2.msra.mxu0 0.0
    %1541 = vmatprep.subr.mxu0 0.0
    %1542 = vmatpush2.msra.mxu0 0.0
    %1543 = vmatprep.subr.mxu0 0.0
    %1544 = vmatpush2.msra.mxu0 0.0
    %1545 = vmatprep.subr.mxu0 0.0
    %1546 = vmatpush2.msra.mxu0 0.0
    %1547 = vmatprep.subr.mxu0 0.0
    %1548 = vmatpush2.msra.mxu0 0.0
    %1549 = vmatprep.subr.mxu0 0.0
    %1550 = vmatpush2.msra.mxu0 0.0
    %1551 = vmatprep.subr.mxu0 0.0
    %1552 = vmatpush2.msra.mxu0 0.0
    %1553 = vmatprep.subr.mxu0 0.0
    %1554 = vmatpush2.msra.mxu0 0.0
    %1555 = vmatprep.subr.mxu0 0.0
    %1556 = vmatpush2.msra.mxu0 0.0
    %1557 = vmatprep.subr.mxu0 0.0
    %1558 = vmatpush2.msra.mxu0 0.0
    %1559 = vmatprep.mubr.f32.mxu0 0.0
    %1560 = vmatmul.mubr.f32.gmra.mxu0 %v1493
    %v1561 = vpop.f32.mrf.mxu0
    %v1562 = vadd.f32 0.0, %v1561
    %v1563 = vpop.f32.mrf.mxu0
    %1564 = vdwg.mxu0
    %v1566 = vrot.slane %v1562, 2
    %v1568 = vadd.f32 %v161, %v1566
    %v1569 = vxor.u32 %v1568, 2147483648
    %v1570 = vmul.f32 %v1569, 1.442695
    %v1571 = vpow.pop %v1570
    %v1572 = vadd.f32 %v1571, 1.0
    %v1573 = vrcp.pop %v1572
    %v1574 = vmul.f32 1.0, %v1573
    %v1575 = vtanh.pop %v1568
    %v1577 = vrot.slane %v1478, 2
    %v1579 = vmul.f32 %v1574, %v1577
    %1581 = vrot.lane.b32.xlu0 %v1575, 32
    %v1582 = vpop.permute.xlu0 %1581
    %v1584 = vmul.f32 %v1574, %v1582
    %1586 = vrot.lane.b32.xlu0 %v1584, 32
    %v1587 = vpop.permute.xlu0 %1586
    %v1589 = vadd.f32 %v1579, %v1587
    %v1590 = vtanh.pop %v1589
    %1592 = vrot.lane.b32.xlu0 %v1590, 32
    %v1593 = vpop.permute.xlu0 %1592
    %v1595 = vmul.f32 %v1574, %v1593
    %1597 = vrot.lane.b32.xlu0 %v1595, 96
    %v1598 = vpop.permute.xlu0 %1597
    %1600 = vst.msk [vmem:[#allocation2] sm:$0xc0] %vm1156, %v1598
    %v1601 = vrot.slane %v1595, 6
    %1602 = vrot.lane.b32.xlu0 %v1601, 64
    %v1603 = vpop.permute.xlu0 %1602
    %v1604 = vsel %vm178, %v1603, 0
    %1606 = vmatprep.subr.mxu0 0.0
    %1607 = vmatpush1.msra.mxu0 0.0
    %1608 = vmatprep.subr.mxu0 0.0
    %1609 = vmatpush1.msra.mxu0 0.0
    %1610 = vmatprep.subr.mxu0 0.0
    %1611 = vmatpush1.msra.mxu0 0.0
    %1612 = vmatprep.subr.mxu0 0.0
    %1613 = vmatpush1.msra.mxu0 0.0
    %1614 = vmatprep.subr.mxu0 0.0
    %1615 = vmatpush1.msra.mxu0 0.0
    %1616 = vmatprep.subr.mxu0 0.0
    %1617 = vmatpush1.msra.mxu0 0.0
    %1618 = vmatprep.subr.mxu0 0.0
    %1619 = vmatpush1.msra.mxu0 0.0
    %1620 = vmatprep.subr.mxu0 0.0
    %1621 = vmatpush1.msra.mxu0 0.0
    %1622 = vmatprep.subr.mxu0 0.0
    %1623 = vmatpush1.msra.mxu0 0.0
    %1624 = vmatprep.subr.mxu0 0.0
    %1625 = vmatpush1.msra.mxu0 0.0
    %1626 = vmatprep.subr.mxu0 0.0
    %1627 = vmatpush1.msra.mxu0 0.0
    %1628 = vmatprep.subr.mxu0 0.0
    %1629 = vmatpush1.msra.mxu0 0.0
    %1630 = vmatprep.subr.mxu0 0.0
    %1631 = vmatpush1.msra.mxu0 %v177
    %1632 = vmatprep.subr.mxu0 0.0
    %1633 = vmatpush1.msra.mxu0 %v176
    %1634 = vmatprep.subr.mxu0 0.0
    %1635 = vmatpush1.msra.mxu0 %v175
    %1636 = vmatprep.subr.mxu0 0.0
    %1637 = vmatpush1.msra.mxu0 %v174
    %1638 = vmatprep.subr.mxu0 0.0
    %1639 = vmatpush2.msra.mxu0 0.0
    %1640 = vmatprep.subr.mxu0 0.0
    %1641 = vmatpush2.msra.mxu0 0.0
    %1642 = vmatprep.subr.mxu0 0.0
    %1643 = vmatpush2.msra.mxu0 0.0
    %1644 = vmatprep.subr.mxu0 0.0
    %1645 = vmatpush2.msra.mxu0 0.0
    %1646 = vmatprep.subr.mxu0 0.0
    %1647 = vmatpush2.msra.mxu0 0.0
    %1648 = vmatprep.subr.mxu0 0.0
    %1649 = vmatpush2.msra.mxu0 0.0
    %1650 = vmatprep.subr.mxu0 0.0
    %1651 = vmatpush2.msra.mxu0 0.0
    %1652 = vmatprep.subr.mxu0 0.0
    %1653 = vmatpush2.msra.mxu0 0.0
    %1654 = vmatprep.subr.mxu0 0.0
    %1655 = vmatpush2.msra.mxu0 0.0
    %1656 = vmatprep.subr.mxu0 0.0
    %1657 = vmatpush2.msra.mxu0 0.0
    %1658 = vmatprep.subr.mxu0 0.0
    %1659 = vmatpush2.msra.mxu0 0.0
    %1660 = vmatprep.subr.mxu0 0.0
    %1661 = vmatpush2.msra.mxu0 0.0
    %1662 = vmatprep.subr.mxu0 0.0
    %1663 = vmatpush2.msra.mxu0 0.0
    %1664 = vmatprep.subr.mxu0 0.0
    %1665 = vmatpush2.msra.mxu0 0.0
    %1666 = vmatprep.subr.mxu0 0.0
    %1667 = vmatpush2.msra.mxu0 0.0
    %1668 = vmatprep.subr.mxu0 0.0
    %1669 = vmatpush2.msra.mxu0 0.0
    %1670 = vmatprep.mubr.f32.mxu0 0.0
    %1671 = vmatmul.mubr.f32.gmra.mxu0 %v1604
    %v1672 = vpop.f32.mrf.mxu0
    %v1673 = vadd.f32 0.0, %v1672
    %v1674 = vpop.f32.mrf.mxu0
    %1675 = vdwg.mxu0
    %v1677 = vrot.slane %v1673, 4
    %v1679 = vadd.f32 %v161, %v1677
    %v1680 = vxor.u32 %v1679, 2147483648
    %v1681 = vmul.f32 %v1680, 1.442695
    %v1682 = vpow.pop %v1681
    %v1683 = vadd.f32 %v1682, 1.0
    %v1684 = vrcp.pop %v1683
    %v1685 = vmul.f32 1.0, %v1684
    %v1686 = vtanh.pop %v1679
    %v1688 = vrot.slane %v1589, 2
    %v1690 = vmul.f32 %v1685, %v1688
    %1692 = vrot.lane.b32.xlu0 %v1686, 32
    %v1693 = vpop.permute.xlu0 %1692
    %v1695 = vmul.f32 %v1685, %v1693
    %1697 = vrot.lane.b32.xlu0 %v1695, 32
    %v1698 = vpop.permute.xlu0 %1697
    %v1700 = vadd.f32 %v1690, %v1698
    %v1701 = vtanh.pop %v1700
    %1703 = vrot.lane.b32.xlu0 %v1701, 32
    %v1704 = vpop.permute.xlu0 %1703
    %v1706 = vmul.f32 %v1685, %v1704
    %1708 = vrot.lane.b32.xlu0 %v1706, 96
    %v1709 = vpop.permute.xlu0 %1708
    %1711 = vst.msk [vmem:[#allocation2] sm:$0x30] %vm1268, %v1709
    %v1712 = vrot.slane %v1706, 4
    %1713 = vrot.lane.b32.xlu0 %v1712, 64
    %v1714 = vpop.permute.xlu0 %1713
    %v1715 = vsel %vm178, %v1714, 0
    %1717 = vmatprep.subr.mxu0 0.0
    %1718 = vmatpush1.msra.mxu0 0.0
    %1719 = vmatprep.subr.mxu0 0.0
    %1720 = vmatpush1.msra.mxu0 0.0
    %1721 = vmatprep.subr.mxu0 0.0
    %1722 = vmatpush1.msra.mxu0 0.0
    %1723 = vmatprep.subr.mxu0 0.0
    %1724 = vmatpush1.msra.mxu0 0.0
    %1725 = vmatprep.subr.mxu0 0.0
    %1726 = vmatpush1.msra.mxu0 0.0
    %1727 = vmatprep.subr.mxu0 0.0
    %1728 = vmatpush1.msra.mxu0 0.0
    %1729 = vmatprep.subr.mxu0 0.0
    %1730 = vmatpush1.msra.mxu0 0.0
    %1731 = vmatprep.subr.mxu0 0.0
    %1732 = vmatpush1.msra.mxu0 0.0
    %1733 = vmatprep.subr.mxu0 0.0
    %1734 = vmatpush1.msra.mxu0 0.0
    %1735 = vmatprep.subr.mxu0 0.0
    %1736 = vmatpush1.msra.mxu0 0.0
    %1737 = vmatprep.subr.mxu0 0.0
    %1738 = vmatpush1.msra.mxu0 0.0
    %1739 = vmatprep.subr.mxu0 0.0
    %1740 = vmatpush1.msra.mxu0 0.0
    %1741 = vmatprep.subr.mxu0 0.0
    %1742 = vmatpush1.msra.mxu0 %v177
    %1743 = vmatprep.subr.mxu0 0.0
    %1744 = vmatpush1.msra.mxu0 %v176
    %1745 = vmatprep.subr.mxu0 0.0
    %1746 = vmatpush1.msra.mxu0 %v175
    %1747 = vmatprep.subr.mxu0 0.0
    %1748 = vmatpush1.msra.mxu0 %v174
    %1749 = vmatprep.subr.mxu0 0.0
    %1750 = vmatpush2.msra.mxu0 0.0
    %1751 = vmatprep.subr.mxu0 0.0
    %1752 = vmatpush2.msra.mxu0 0.0
    %1753 = vmatprep.subr.mxu0 0.0
    %1754 = vmatpush2.msra.mxu0 0.0
    %1755 = vmatprep.subr.mxu0 0.0
    %1756 = vmatpush2.msra.mxu0 0.0
    %1757 = vmatprep.subr.mxu0 0.0
    %1758 = vmatpush2.msra.mxu0 0.0
    %1759 = vmatprep.subr.mxu0 0.0
    %1760 = vmatpush2.msra.mxu0 0.0
    %1761 = vmatprep.subr.mxu0 0.0
    %1762 = vmatpush2.msra.mxu0 0.0
    %1763 = vmatprep.subr.mxu0 0.0
    %1764 = vmatpush2.msra.mxu0 0.0
    %1765 = vmatprep.subr.mxu0 0.0
    %1766 = vmatpush2.msra.mxu0 0.0
    %1767 = vmatprep.subr.mxu0 0.0
    %1768 = vmatpush2.msra.mxu0 0.0
    %1769 = vmatprep.subr.mxu0 0.0
    %1770 = vmatpush2.msra.mxu0 0.0
    %1771 = vmatprep.subr.mxu0 0.0
    %1772 = vmatpush2.msra.mxu0 0.0
    %1773 = vmatprep.subr.mxu0 0.0
    %1774 = vmatpush2.msra.mxu0 0.0
    %1775 = vmatprep.subr.mxu0 0.0
    %1776 = vmatpush2.msra.mxu0 0.0
    %1777 = vmatprep.subr.mxu0 0.0
    %1778 = vmatpush2.msra.mxu0 0.0
    %1779 = vmatprep.subr.mxu0 0.0
    %1780 = vmatpush2.msra.mxu0 0.0
    %1781 = vmatprep.mubr.f32.mxu0 0.0
    %1782 = vmatmul.mubr.f32.gmra.mxu0 %v1715
    %v1783 = vpop.f32.mrf.mxu0
    %v1784 = vadd.f32 0.0, %v1783
    %v1785 = vpop.f32.mrf.mxu0
    %1786 = vdwg.mxu0
    %v1788 = vrot.slane %v1784, 6
    %v1790 = vadd.f32 %v161, %v1788
    %v1791 = vxor.u32 %v1790, 2147483648
    %v1792 = vmul.f32 %v1791, 1.442695
    %v1793 = vpow.pop %v1792
    %v1794 = vadd.f32 %v1793, 1.0
    %v1795 = vrcp.pop %v1794
    %v1796 = vmul.f32 1.0, %v1795
    %v1797 = vtanh.pop %v1790
    %v1799 = vrot.slane %v1700, 2
    %v1801 = vmul.f32 %v1796, %v1799
    %1803 = vrot.lane.b32.xlu0 %v1797, 32
    %v1804 = vpop.permute.xlu0 %1803
    %v1806 = vmul.f32 %v1796, %v1804
    %1808 = vrot.lane.b32.xlu0 %v1806, 32
    %v1809 = vpop.permute.xlu0 %1808
    %v1811 = vadd.f32 %v1801, %v1809
    %v1812 = vtanh.pop %v1811
    %1814 = vrot.lane.b32.xlu0 %v1812, 32
    %v1815 = vpop.permute.xlu0 %1814
    %v1817 = vmul.f32 %v1796, %v1815
    %1819 = vrot.lane.b32.xlu0 %v1817, 96
    %v1820 = vpop.permute.xlu0 %1819
    %1822 = vst.msk [vmem:[#allocation2] sm:$0xc] %vm1380, %v1820
    %v1823 = vrot.slane %v1817, 2
    %1824 = vrot.lane.b32.xlu0 %v1823, 64
    %v1825 = vpop.permute.xlu0 %1824
    %v1826 = vsel %vm178, %v1825, 0
    %1828 = vmatprep.subr.mxu0 0.0
    %1829 = vmatpush1.msra.mxu0 0.0
    %1830 = vmatprep.subr.mxu0 0.0
    %1831 = vmatpush1.msra.mxu0 0.0
    %1832 = vmatprep.subr.mxu0 0.0
    %1833 = vmatpush1.msra.mxu0 0.0
    %1834 = vmatprep.subr.mxu0 0.0
    %1835 = vmatpush1.msra.mxu0 0.0
    %1836 = vmatprep.subr.mxu0 0.0
    %1837 = vmatpush1.msra.mxu0 0.0
    %1838 = vmatprep.subr.mxu0 0.0
    %1839 = vmatpush1.msra.mxu0 0.0
    %1840 = vmatprep.subr.mxu0 0.0
    %1841 = vmatpush1.msra.mxu0 0.0
    %1842 = vmatprep.subr.mxu0 0.0
    %1843 = vmatpush1.msra.mxu0 0.0
    %1844 = vmatprep.subr.mxu0 0.0
    %1845 = vmatpush1.msra.mxu0 0.0
    %1846 = vmatprep.subr.mxu0 0.0
    %1847 = vmatpush1.msra.mxu0 0.0
    %1848 = vmatprep.subr.mxu0 0.0
    %1849 = vmatpush1.msra.mxu0 0.0
    %1850 = vmatprep.subr.mxu0 0.0
    %1851 = vmatpush1.msra.mxu0 0.0
    %1852 = vmatprep.subr.mxu0 0.0
    %1853 = vmatpush1.msra.mxu0 %v177
    %1854 = vmatprep.subr.mxu0 0.0
    %1855 = vmatpush1.msra.mxu0 %v176
    %1856 = vmatprep.subr.mxu0 0.0
    %1857 = vmatpush1.msra.mxu0 %v175
    %1858 = vmatprep.subr.mxu0 0.0
    %1859 = vmatpush1.msra.mxu0 %v174
    %1860 = vmatprep.subr.mxu0 0.0
    %1861 = vmatpush2.msra.mxu0 0.0
    %1862 = vmatprep.subr.mxu0 0.0
    %1863 = vmatpush2.msra.mxu0 0.0
    %1864 = vmatprep.subr.mxu0 0.0
    %1865 = vmatpush2.msra.mxu0 0.0
    %1866 = vmatprep.subr.mxu0 0.0
    %1867 = vmatpush2.msra.mxu0 0.0
    %1868 = vmatprep.subr.mxu0 0.0
    %1869 = vmatpush2.msra.mxu0 0.0
    %1870 = vmatprep.subr.mxu0 0.0
    %1871 = vmatpush2.msra.mxu0 0.0
    %1872 = vmatprep.subr.mxu0 0.0
    %1873 = vmatpush2.msra.mxu0 0.0
    %1874 = vmatprep.subr.mxu0 0.0
    %1875 = vmatpush2.msra.mxu0 0.0
    %1876 = vmatprep.subr.mxu0 0.0
    %1877 = vmatpush2.msra.mxu0 0.0
    %1878 = vmatprep.subr.mxu0 0.0
    %1879 = vmatpush2.msra.mxu0 0.0
    %1880 = vmatprep.subr.mxu0 0.0
    %1881 = vmatpush2.msra.mxu0 0.0
    %1882 = vmatprep.subr.mxu0 0.0
    %1883 = vmatpush2.msra.mxu0 0.0
    %1884 = vmatprep.subr.mxu0 0.0
    %1885 = vmatpush2.msra.mxu0 0.0
    %1886 = vmatprep.subr.mxu0 0.0
    %1887 = vmatpush2.msra.mxu0 0.0
    %1888 = vmatprep.subr.mxu0 0.0
    %1889 = vmatpush2.msra.mxu0 0.0
    %1890 = vmatprep.subr.mxu0 0.0
    %1891 = vmatpush2.msra.mxu0 0.0
    %1892 = vmatprep.mubr.f32.mxu0 0.0
    %1893 = vmatmul.mubr.f32.gmra.mxu0 %v1826
    %v1894 = vpop.f32.mrf.mxu0
    %v1895 = vadd.f32 0.0, %v1894
    %v1896 = vpop.f32.mrf.mxu0
    %1897 = vdwg.mxu0
    %v1898 = vadd.f32 %v161, %v1895
    %v1899 = vxor.u32 %v1898, 2147483648
    %v1900 = vmul.f32 %v1899, 1.442695
    %v1901 = vpow.pop %v1900
    %v1902 = vadd.f32 %v1901, 1.0
    %v1903 = vrcp.pop %v1902
    %v1904 = vmul.f32 1.0, %v1903
    %v1905 = vtanh.pop %v1898
    %v1907 = vrot.slane %v1811, 2
    %v1909 = vmul.f32 %v1904, %v1907
    %1911 = vrot.lane.b32.xlu0 %v1905, 32
    %v1912 = vpop.permute.xlu0 %1911
    %v1914 = vmul.f32 %v1904, %v1912
    %1916 = vrot.lane.b32.xlu0 %v1914, 32
    %v1917 = vpop.permute.xlu0 %1916
    %v1919 = vadd.f32 %v1909, %v1917
    %v1920 = vtanh.pop %v1919
    %1922 = vrot.lane.b32.xlu0 %v1920, 32
    %v1923 = vpop.permute.xlu0 %1922
    %v1925 = vmul.f32 %v1904, %v1923
    %1927 = vrot.lane.b32.xlu0 %v1925, 96
    %v1928 = vpop.permute.xlu0 %1927
    %1930 = vst.msk [vmem:[#allocation2] sm:$0x3] %vm1489, %v1928
    %v1931 = vld [vmem:[#allocation2] sm:$0xff]
    %v1932 = vld [vmem:[#allocation2 + $0x8] sm:$0xff]
    %v1933 = vld [vmem:[#allocation4] sm:$0xff]
    %v1934 = vld [vmem:[#allocation4 + $0x8] sm:$0xff]
    %v1935 = vld [vmem:[#allocation4 + $0x10] sm:$0xff]
    %v1936 = vld [vmem:[#allocation4 + $0x18] sm:$0xff]
    %v1937 = vld [vmem:[#allocation4 + $0x20] sm:$0xff]
    %v1938 = vld [vmem:[#allocation4 + $0x28] sm:$0xff]
    %v1939 = vld [vmem:[#allocation4 + $0x30] sm:$0xff]
    %v1940 = vld [vmem:[#allocation4 + $0x38] sm:$0xff]
    %v1941 = vld [vmem:[#allocation4 + $0x40] sm:$0xff]
    %v1942 = vld [vmem:[#allocation4 + $0x48] sm:$0xff]
    %v1943 = vld [vmem:[#allocation4 + $0x50] sm:$0xff]
    %v1944 = vld [vmem:[#allocation4 + $0x58] sm:$0xff]
    %v1945 = vld [vmem:[#allocation4 + $0x60] sm:$0xff]
    %v1946 = vld [vmem:[#allocation4 + $0x68] sm:$0xff]
    %v1947 = vld [vmem:[#allocation4 + $0x70] sm:$0xff]
    %v1948 = vld [vmem:[#allocation4 + $0x78] sm:$0xff]
    %v1949 = vld [vmem:[%s6] sm:$0x3]
    %v1951 = vlaneseq
    %v1952 = vshrl.u32 %v1951, 7
    %v1953 = vsub.s32 0, %v1952
    %v1954 = vrot.slane %v1949, %v1953
    %v1955 = vlaneseq
    %v1956 = vshrl.u32 %v1955, 7
    %v1957 = vsub.s32 1, %v1956
    %v1958 = vrot.slane %v1949, %v1957
    %vm1961 = vcmask 523264
    %v1963 = vsel %vm1961, %v1931, 0
    %v1966 = vsel %vm1961, %v1932, 0
    %1968 = vmatprep.subr.mxu0 0.0
    %1969 = vmatpush1.msra.mxu0 0.0
    %1970 = vmatprep.subr.mxu0 0.0
    %1971 = vmatpush1.msra.mxu0 0.0
    %1972 = vmatprep.subr.mxu0 0.0
    %1973 = vmatpush1.msra.mxu0 0.0
    %1974 = vmatprep.subr.mxu0 0.0
    %1975 = vmatpush1.msra.mxu0 0.0
    %1976 = vmatprep.subr.mxu0 0.0
    %1977 = vmatpush1.msra.mxu0 0.0
    %1978 = vmatprep.subr.mxu0 0.0
    %1979 = vmatpush1.msra.mxu0 0.0
    %1980 = vmatprep.subr.mxu0 0.0
    %1981 = vmatpush1.msra.mxu0 0.0
    %1982 = vmatprep.subr.mxu0 0.0
    %1983 = vmatpush1.msra.mxu0 0.0
    %1984 = vmatprep.subr.mxu0 %v1948
    %1985 = vmatpush1.msra.mxu0 %v1947
    %1986 = vmatprep.subr.mxu0 %v1946
    %1987 = vmatpush1.msra.mxu0 %v1945
    %1988 = vmatprep.subr.mxu0 %v1944
    %1989 = vmatpush1.msra.mxu0 %v1943
    %1990 = vmatprep.subr.mxu0 %v1942
    %1991 = vmatpush1.msra.mxu0 %v1941
    %1992 = vmatprep.subr.mxu0 %v1940
    %1993 = vmatpush1.msra.mxu0 %v1939
    %1994 = vmatprep.subr.mxu0 %v1938
    %1995 = vmatpush1.msra.mxu0 %v1937
    %1996 = vmatprep.subr.mxu0 %v1936
    %1997 = vmatpush1.msra.mxu0 %v1935
    %1998 = vmatprep.subr.mxu0 %v1934
    %1999 = vmatpush1.msra.mxu0 %v1933
    %2000 = vmatprep.subr.mxu0 0.0
    %2001 = vmatpush2.msra.mxu0 0.0
    %2002 = vmatprep.subr.mxu0 0.0
    %2003 = vmatpush2.msra.mxu0 0.0
    %2004 = vmatprep.subr.mxu0 0.0
    %2005 = vmatpush2.msra.mxu0 0.0
    %2006 = vmatprep.subr.mxu0 0.0
    %2007 = vmatpush2.msra.mxu0 0.0
    %2008 = vmatprep.subr.mxu0 0.0
    %2009 = vmatpush2.msra.mxu0 0.0
    %2010 = vmatprep.subr.mxu0 0.0
    %2011 = vmatpush2.msra.mxu0 0.0
    %2012 = vmatprep.subr.mxu0 0.0
    %2013 = vmatpush2.msra.mxu0 0.0
    %2014 = vmatprep.subr.mxu0 0.0
    %2015 = vmatpush2.msra.mxu0 0.0
    %2016 = vmatprep.subr.mxu0 0.0
    %2017 = vmatpush2.msra.mxu0 0.0
    %2018 = vmatprep.subr.mxu0 0.0
    %2019 = vmatpush2.msra.mxu0 0.0
    %2020 = vmatprep.subr.mxu0 0.0
    %2021 = vmatpush2.msra.mxu0 0.0
    %2022 = vmatprep.subr.mxu0 0.0
    %2023 = vmatpush2.msra.mxu0 0.0
    %2024 = vmatprep.subr.mxu0 0.0
    %2025 = vmatpush2.msra.mxu0 0.0
    %2026 = vmatprep.subr.mxu0 0.0
    %2027 = vmatpush2.msra.mxu0 0.0
    %2028 = vmatprep.subr.mxu0 0.0
    %2029 = vmatpush2.msra.mxu0 0.0
    %2030 = vmatprep.subr.mxu0 0.0
    %2031 = vmatpush2.msra.mxu0 0.0
    %2032 = vmatprep.mubr.f32.mxu0 0.0
    %2033 = vmatmul.mubr.f32.gmra.mxu0 %v1963
    %v2034 = vpop.f32.mrf.mxu0
    %v2035 = vadd.f32 %v1954, %v2034
    %v2036 = vpop.f32.mrf.mxu0
    %2037 = vmatprep.mubr.f32.mxu0 0.0
    %2038 = vmatmul.mubr.f32.gmra.mxu0 %v1966
    %v2039 = vpop.f32.mrf.mxu0
    %v2040 = vadd.f32 %v1954, %v2039
    %v2041 = vpop.f32.mrf.mxu0
    %v2042 = vadd.f32 %v1958, %v2041
    %2043 = vdwg.mxu0
    %v2044 = vld [vmem:[#allocation6] sm:$0xff]
    %v2045 = vld [vmem:[#allocation6 + $0x8] sm:$0xff]
    %v2046 = vld [vmem:[#allocation6 + $0x10] sm:$0xff]
    %v2047 = vld [vmem:[#allocation6 + $0x18] sm:$0xff]
    %2048 = vmatprep.subr.mxu0 0.0
    %2049 = vmatpush1.msra.mxu0 0.0
    %2050 = vmatprep.subr.mxu0 0.0
    %2051 = vmatpush1.msra.mxu0 0.0
    %2052 = vmatprep.subr.mxu0 0.0
    %2053 = vmatpush1.msra.mxu0 0.0
    %2054 = vmatprep.subr.mxu0 0.0
    %2055 = vmatpush1.msra.mxu0 0.0
    %2056 = vmatprep.subr.mxu0 0.0
    %2057 = vmatpush1.msra.mxu0 0.0
    %2058 = vmatprep.subr.mxu0 0.0
    %2059 = vmatpush1.msra.mxu0 0.0
    %2060 = vmatprep.subr.mxu0 0.0
    %2061 = vmatpush1.msra.mxu0 0.0
    %2062 = vmatprep.subr.mxu0 0.0
    %2063 = vmatpush1.msra.mxu0 0.0
    %2064 = vmatprep.subr.mxu0 0.0
    %2065 = vmatpush1.msra.mxu0 0.0
    %2066 = vmatprep.subr.mxu0 0.0
    %2067 = vmatpush1.msra.mxu0 0.0
    %2068 = vmatprep.subr.mxu0 0.0
    %2069 = vmatpush1.msra.mxu0 0.0
    %2070 = vmatprep.subr.mxu0 0.0
    %2071 = vmatpush1.msra.mxu0 0.0
    %2072 = vmatprep.subr.mxu0 0.0
    %2073 = vmatpush1.msra.mxu0 %v2047
    %2074 = vmatprep.subr.mxu0 0.0
    %2075 = vmatpush1.msra.mxu0 %v2046
    %2076 = vmatprep.subr.mxu0 0.0
    %2077 = vmatpush1.msra.mxu0 %v2045
    %2078 = vmatprep.subr.mxu0 0.0
    %2079 = vmatpush1.msra.mxu0 %v2044
    %2080 = vmatprep.subr.mxu0 0.0
    %2081 = vmatpush2.msra.mxu0 0.0
    %2082 = vmatprep.subr.mxu0 0.0
    %2083 = vmatpush2.msra.mxu0 0.0
    %2084 = vmatprep.subr.mxu0 0.0
    %2085 = vmatpush2.msra.mxu0 0.0
    %2086 = vmatprep.subr.mxu0 0.0
    %2087 = vmatpush2.msra.mxu0 0.0
    %2088 = vmatprep.subr.mxu0 0.0
    %2089 = vmatpush2.msra.mxu0 0.0
    %2090 = vmatprep.subr.mxu0 0.0
    %2091 = vmatpush2.msra.mxu0 0.0
    %2092 = vmatprep.subr.mxu0 0.0
    %2093 = vmatpush2.msra.mxu0 0.0
    %2094 = vmatprep.subr.mxu0 0.0
    %2095 = vmatpush2.msra.mxu0 0.0
    %2096 = vmatprep.subr.mxu0 0.0
    %2097 = vmatpush2.msra.mxu0 0.0
    %2098 = vmatprep.subr.mxu0 0.0
    %2099 = vmatpush2.msra.mxu0 0.0
    %2100 = vmatprep.subr.mxu0 0.0
    %2101 = vmatpush2.msra.mxu0 0.0
    %2102 = vmatprep.subr.mxu0 0.0
    %2103 = vmatpush2.msra.mxu0 0.0
    %2104 = vmatprep.subr.mxu0 0.0
    %2105 = vmatpush2.msra.mxu0 0.0
    %2106 = vmatprep.subr.mxu0 0.0
    %2107 = vmatpush2.msra.mxu0 0.0
    %2108 = vmatprep.subr.mxu0 0.0
    %2109 = vmatpush2.msra.mxu0 0.0
    %2110 = vmatprep.subr.mxu0 0.0
    %2111 = vmatpush2.msra.mxu0 0.0
    %2112 = vmatprep.mubr.f32.mxu0 0.0
    %2113 = vmatmul.mubr.f32.gmra.mxu0 %v180
    %v2114 = vpop.f32.mrf.mxu0
    %v2115 = vadd.f32 0.0, %v2114
    %v2116 = vpop.f32.mrf.mxu0
    %2117 = vdwg.mxu0
    %v2118 = vadd.f32 %v2035, %v2115
    %v2119 = vxor.u32 %v2118, 2147483648
    %v2120 = vmul.f32 %v2119, 1.442695
    %v2121 = vpow.pop %v2120
    %v2122 = vadd.f32 %v2121, 1.0
    %v2123 = vrcp.pop %v2122
    %v2124 = vmul.f32 1.0, %v2123
    %v2125 = vtanh.pop %v2118
    %v2126 = vmul.f32 %v2124, 0.0
    %2128 = vrot.lane.b32.xlu0 %v2125, 32
    %v2129 = vpop.permute.xlu0 %2128
    %v2131 = vmul.f32 %v2124, %v2129
    %2133 = vrot.lane.b32.xlu0 %v2131, 32
    %v2134 = vpop.permute.xlu0 %2133
    %v2136 = vadd.f32 %v2126, %v2134
    %v2137 = vtanh.pop %v2136
    %2139 = vrot.lane.b32.xlu0 %v2137, 32
    %v2140 = vpop.permute.xlu0 %2139
    %v2142 = vmul.f32 %v2124, %v2140
    %2144 = vrot.lane.b32.xlu0 %v2142, 64
    %v2145 = vpop.permute.xlu0 %2144
    %v2146 = vsel %vm178, %v2145, 0
    %2148 = vmatprep.subr.mxu0 0.0
    %2149 = vmatpush1.msra.mxu0 0.0
    %2150 = vmatprep.subr.mxu0 0.0
    %2151 = vmatpush1.msra.mxu0 0.0
    %2152 = vmatprep.subr.mxu0 0.0
    %2153 = vmatpush1.msra.mxu0 0.0
    %2154 = vmatprep.subr.mxu0 0.0
    %2155 = vmatpush1.msra.mxu0 0.0
    %2156 = vmatprep.subr.mxu0 0.0
    %2157 = vmatpush1.msra.mxu0 0.0
    %2158 = vmatprep.subr.mxu0 0.0
    %2159 = vmatpush1.msra.mxu0 0.0
    %2160 = vmatprep.subr.mxu0 0.0
    %2161 = vmatpush1.msra.mxu0 0.0
    %2162 = vmatprep.subr.mxu0 0.0
    %2163 = vmatpush1.msra.mxu0 0.0
    %2164 = vmatprep.subr.mxu0 0.0
    %2165 = vmatpush1.msra.mxu0 0.0
    %2166 = vmatprep.subr.mxu0 0.0
    %2167 = vmatpush1.msra.mxu0 0.0
    %2168 = vmatprep.subr.mxu0 0.0
    %2169 = vmatpush1.msra.mxu0 0.0
    %2170 = vmatprep.subr.mxu0 0.0
    %2171 = vmatpush1.msra.mxu0 0.0
    %2172 = vmatprep.subr.mxu0 0.0
    %2173 = vmatpush1.msra.mxu0 %v2047
    %2174 = vmatprep.subr.mxu0 0.0
    %2175 = vmatpush1.msra.mxu0 %v2046
    %2176 = vmatprep.subr.mxu0 0.0
    %2177 = vmatpush1.msra.mxu0 %v2045
    %2178 = vmatprep.subr.mxu0 0.0
    %2179 = vmatpush1.msra.mxu0 %v2044
    %2180 = vmatprep.subr.mxu0 0.0
    %2181 = vmatpush2.msra.mxu0 0.0
    %2182 = vmatprep.subr.mxu0 0.0
    %2183 = vmatpush2.msra.mxu0 0.0
    %2184 = vmatprep.subr.mxu0 0.0
    %2185 = vmatpush2.msra.mxu0 0.0
    %2186 = vmatprep.subr.mxu0 0.0
    %2187 = vmatpush2.msra.mxu0 0.0
    %2188 = vmatprep.subr.mxu0 0.0
    %2189 = vmatpush2.msra.mxu0 0.0
    %2190 = vmatprep.subr.mxu0 0.0
    %2191 = vmatpush2.msra.mxu0 0.0
    %2192 = vmatprep.subr.mxu0 0.0
    %2193 = vmatpush2.msra.mxu0 0.0
    %2194 = vmatprep.subr.mxu0 0.0
    %2195 = vmatpush2.msra.mxu0 0.0
    %2196 = vmatprep.subr.mxu0 0.0
    %2197 = vmatpush2.msra.mxu0 0.0
    %2198 = vmatprep.subr.mxu0 0.0
    %2199 = vmatpush2.msra.mxu0 0.0
    %2200 = vmatprep.subr.mxu0 0.0
    %2201 = vmatpush2.msra.mxu0 0.0
    %2202 = vmatprep.subr.mxu0 0.0
    %2203 = vmatpush2.msra.mxu0 0.0
    %2204 = vmatprep.subr.mxu0 0.0
    %2205 = vmatpush2.msra.mxu0 0.0
    %2206 = vmatprep.subr.mxu0 0.0
    %2207 = vmatpush2.msra.mxu0 0.0
    %2208 = vmatprep.subr.mxu0 0.0
    %2209 = vmatpush2.msra.mxu0 0.0
    %2210 = vmatprep.subr.mxu0 0.0
    %2211 = vmatpush2.msra.mxu0 0.0
    %2212 = vmatprep.mubr.f32.mxu0 0.0
    %2213 = vmatmul.mubr.f32.gmra.mxu0 %v2146
    %v2214 = vpop.f32.mrf.mxu0
    %v2215 = vadd.f32 0.0, %v2214
    %v2216 = vpop.f32.mrf.mxu0
    %2217 = vdwg.mxu0
    %v2219 = vrot.slane %v2215, 6
    %v2221 = vadd.f32 %v2035, %v2219
    %v2222 = vxor.u32 %v2221, 2147483648
    %v2223 = vmul.f32 %v2222, 1.442695
    %v2224 = vpow.pop %v2223
    %v2225 = vadd.f32 %v2224, 1.0
    %v2226 = vrcp.pop %v2225
    %v2227 = vmul.f32 1.0, %v2226
    %v2228 = vtanh.pop %v2221
    %v2230 = vrot.slane %v2136, 6
    %v2232 = vmul.f32 %v2227, %v2230
    %2234 = vrot.lane.b32.xlu0 %v2228, 32
    %v2235 = vpop.permute.xlu0 %2234
    %v2237 = vmul.f32 %v2227, %v2235
    %2239 = vrot.lane.b32.xlu0 %v2237, 32
    %v2240 = vpop.permute.xlu0 %2239
    %v2242 = vadd.f32 %v2232, %v2240
    %v2243 = vtanh.pop %v2242
    %2245 = vrot.lane.b32.xlu0 %v2243, 32
    %v2246 = vpop.permute.xlu0 %2245
    %v2248 = vmul.f32 %v2227, %v2246
    %v2250 = vrot.slane %v2248, 2
    %2251 = vrot.lane.b32.xlu0 %v2250, 64
    %v2252 = vpop.permute.xlu0 %2251
    %v2253 = vsel %vm178, %v2252, 0
    %2255 = vmatprep.subr.mxu0 0.0
    %2256 = vmatpush1.msra.mxu0 0.0
    %2257 = vmatprep.subr.mxu0 0.0
    %2258 = vmatpush1.msra.mxu0 0.0
    %2259 = vmatprep.subr.mxu0 0.0
    %2260 = vmatpush1.msra.mxu0 0.0
    %2261 = vmatprep.subr.mxu0 0.0
    %2262 = vmatpush1.msra.mxu0 0.0
    %2263 = vmatprep.subr.mxu0 0.0
    %2264 = vmatpush1.msra.mxu0 0.0
    %2265 = vmatprep.subr.mxu0 0.0
    %2266 = vmatpush1.msra.mxu0 0.0
    %2267 = vmatprep.subr.mxu0 0.0
    %2268 = vmatpush1.msra.mxu0 0.0
    %2269 = vmatprep.subr.mxu0 0.0
    %2270 = vmatpush1.msra.mxu0 0.0
    %2271 = vmatprep.subr.mxu0 0.0
    %2272 = vmatpush1.msra.mxu0 0.0
    %2273 = vmatprep.subr.mxu0 0.0
    %2274 = vmatpush1.msra.mxu0 0.0
    %2275 = vmatprep.subr.mxu0 0.0
    %2276 = vmatpush1.msra.mxu0 0.0
    %2277 = vmatprep.subr.mxu0 0.0
    %2278 = vmatpush1.msra.mxu0 0.0
    %2279 = vmatprep.subr.mxu0 0.0
    %2280 = vmatpush1.msra.mxu0 %v2047
    %2281 = vmatprep.subr.mxu0 0.0
    %2282 = vmatpush1.msra.mxu0 %v2046
    %2283 = vmatprep.subr.mxu0 0.0
    %2284 = vmatpush1.msra.mxu0 %v2045
    %2285 = vmatprep.subr.mxu0 0.0
    %2286 = vmatpush1.msra.mxu0 %v2044
    %2287 = vmatprep.subr.mxu0 0.0
    %2288 = vmatpush2.msra.mxu0 0.0
    %2289 = vmatprep.subr.mxu0 0.0
    %2290 = vmatpush2.msra.mxu0 0.0
    %2291 = vmatprep.subr.mxu0 0.0
    %2292 = vmatpush2.msra.mxu0 0.0
    %2293 = vmatprep.subr.mxu0 0.0
    %2294 = vmatpush2.msra.mxu0 0.0
    %2295 = vmatprep.subr.mxu0 0.0
    %2296 = vmatpush2.msra.mxu0 0.0
    %2297 = vmatprep.subr.mxu0 0.0
    %2298 = vmatpush2.msra.mxu0 0.0
    %2299 = vmatprep.subr.mxu0 0.0
    %2300 = vmatpush2.msra.mxu0 0.0
    %2301 = vmatprep.subr.mxu0 0.0
    %2302 = vmatpush2.msra.mxu0 0.0
    %2303 = vmatprep.subr.mxu0 0.0
    %2304 = vmatpush2.msra.mxu0 0.0
    %2305 = vmatprep.subr.mxu0 0.0
    %2306 = vmatpush2.msra.mxu0 0.0
    %2307 = vmatprep.subr.mxu0 0.0
    %2308 = vmatpush2.msra.mxu0 0.0
    %2309 = vmatprep.subr.mxu0 0.0
    %2310 = vmatpush2.msra.mxu0 0.0
    %2311 = vmatprep.subr.mxu0 0.0
    %2312 = vmatpush2.msra.mxu0 0.0
    %2313 = vmatprep.subr.mxu0 0.0
    %2314 = vmatpush2.msra.mxu0 0.0
    %2315 = vmatprep.subr.mxu0 0.0
    %2316 = vmatpush2.msra.mxu0 0.0
    %2317 = vmatprep.subr.mxu0 0.0
    %2318 = vmatpush2.msra.mxu0 0.0
    %2319 = vmatprep.mubr.f32.mxu0 0.0
    %2320 = vmatmul.mubr.f32.gmra.mxu0 %v2253
    %v2321 = vpop.f32.mrf.mxu0
    %v2322 = vadd.f32 0.0, %v2321
    %v2323 = vpop.f32.mrf.mxu0
    %2324 = vdwg.mxu0
    %v2326 = vrot.slane %v2322, 4
    %v2328 = vadd.f32 %v2035, %v2326
    %v2329 = vxor.u32 %v2328, 2147483648
    %v2330 = vmul.f32 %v2329, 1.442695
    %v2331 = vpow.pop %v2330
    %v2332 = vadd.f32 %v2331, 1.0
    %v2333 = vrcp.pop %v2332
    %v2334 = vmul.f32 1.0, %v2333
    %v2335 = vtanh.pop %v2328
    %v2337 = vrot.slane %v2242, 6
    %v2339 = vmul.f32 %v2334, %v2337
    %2341 = vrot.lane.b32.xlu0 %v2335, 32
    %v2342 = vpop.permute.xlu0 %2341
    %v2344 = vmul.f32 %v2334, %v2342
    %2346 = vrot.lane.b32.xlu0 %v2344, 32
    %v2347 = vpop.permute.xlu0 %2346
    %v2349 = vadd.f32 %v2339, %v2347
    %v2350 = vtanh.pop %v2349
    %2352 = vrot.lane.b32.xlu0 %v2350, 32
    %v2353 = vpop.permute.xlu0 %2352
    %v2355 = vmul.f32 %v2334, %v2353
    %v2357 = vrot.slane %v2355, 4
    %2358 = vrot.lane.b32.xlu0 %v2357, 64
    %v2359 = vpop.permute.xlu0 %2358
    %v2360 = vsel %vm178, %v2359, 0
    %2362 = vmatprep.subr.mxu0 0.0
    %2363 = vmatpush1.msra.mxu0 0.0
    %2364 = vmatprep.subr.mxu0 0.0
    %2365 = vmatpush1.msra.mxu0 0.0
    %2366 = vmatprep.subr.mxu0 0.0
    %2367 = vmatpush1.msra.mxu0 0.0
    %2368 = vmatprep.subr.mxu0 0.0
    %2369 = vmatpush1.msra.mxu0 0.0
    %2370 = vmatprep.subr.mxu0 0.0
    %2371 = vmatpush1.msra.mxu0 0.0
    %2372 = vmatprep.subr.mxu0 0.0
    %2373 = vmatpush1.msra.mxu0 0.0
    %2374 = vmatprep.subr.mxu0 0.0
    %2375 = vmatpush1.msra.mxu0 0.0
    %2376 = vmatprep.subr.mxu0 0.0
    %2377 = vmatpush1.msra.mxu0 0.0
    %2378 = vmatprep.subr.mxu0 0.0
    %2379 = vmatpush1.msra.mxu0 0.0
    %2380 = vmatprep.subr.mxu0 0.0
    %2381 = vmatpush1.msra.mxu0 0.0
    %2382 = vmatprep.subr.mxu0 0.0
    %2383 = vmatpush1.msra.mxu0 0.0
    %2384 = vmatprep.subr.mxu0 0.0
    %2385 = vmatpush1.msra.mxu0 0.0
    %2386 = vmatprep.subr.mxu0 0.0
    %2387 = vmatpush1.msra.mxu0 %v2047
    %2388 = vmatprep.subr.mxu0 0.0
    %2389 = vmatpush1.msra.mxu0 %v2046
    %2390 = vmatprep.subr.mxu0 0.0
    %2391 = vmatpush1.msra.mxu0 %v2045
    %2392 = vmatprep.subr.mxu0 0.0
    %2393 = vmatpush1.msra.mxu0 %v2044
    %2394 = vmatprep.subr.mxu0 0.0
    %2395 = vmatpush2.msra.mxu0 0.0
    %2396 = vmatprep.subr.mxu0 0.0
    %2397 = vmatpush2.msra.mxu0 0.0
    %2398 = vmatprep.subr.mxu0 0.0
    %2399 = vmatpush2.msra.mxu0 0.0
    %2400 = vmatprep.subr.mxu0 0.0
    %2401 = vmatpush2.msra.mxu0 0.0
    %2402 = vmatprep.subr.mxu0 0.0
    %2403 = vmatpush2.msra.mxu0 0.0
    %2404 = vmatprep.subr.mxu0 0.0
    %2405 = vmatpush2.msra.mxu0 0.0
    %2406 = vmatprep.subr.mxu0 0.0
    %2407 = vmatpush2.msra.mxu0 0.0
    %2408 = vmatprep.subr.mxu0 0.0
    %2409 = vmatpush2.msra.mxu0 0.0
    %2410 = vmatprep.subr.mxu0 0.0
    %2411 = vmatpush2.msra.mxu0 0.0
    %2412 = vmatprep.subr.mxu0 0.0
    %2413 = vmatpush2.msra.mxu0 0.0
    %2414 = vmatprep.subr.mxu0 0.0
    %2415 = vmatpush2.msra.mxu0 0.0
    %2416 = vmatprep.subr.mxu0 0.0
    %2417 = vmatpush2.msra.mxu0 0.0
    %2418 = vmatprep.subr.mxu0 0.0
    %2419 = vmatpush2.msra.mxu0 0.0
    %2420 = vmatprep.subr.mxu0 0.0
    %2421 = vmatpush2.msra.mxu0 0.0
    %2422 = vmatprep.subr.mxu0 0.0
    %2423 = vmatpush2.msra.mxu0 0.0
    %2424 = vmatprep.subr.mxu0 0.0
    %2425 = vmatpush2.msra.mxu0 0.0
    %2426 = vmatprep.mubr.f32.mxu0 0.0
    %2427 = vmatmul.mubr.f32.gmra.mxu0 %v2360
    %v2428 = vpop.f32.mrf.mxu0
    %v2429 = vadd.f32 0.0, %v2428
    %v2430 = vpop.f32.mrf.mxu0
    %2431 = vdwg.mxu0
    %v2433 = vrot.slane %v2429, 2
    %v2435 = vadd.f32 %v2035, %v2433
    %v2436 = vxor.u32 %v2435, 2147483648
    %v2437 = vmul.f32 %v2436, 1.442695
    %v2438 = vpow.pop %v2437
    %v2439 = vadd.f32 %v2438, 1.0
    %v2440 = vrcp.pop %v2439
    %v2441 = vmul.f32 1.0, %v2440
    %v2442 = vtanh.pop %v2435
    %v2444 = vrot.slane %v2349, 6
    %v2446 = vmul.f32 %v2441, %v2444
    %2448 = vrot.lane.b32.xlu0 %v2442, 32
    %v2449 = vpop.permute.xlu0 %2448
    %v2451 = vmul.f32 %v2441, %v2449
    %2453 = vrot.lane.b32.xlu0 %v2451, 32
    %v2454 = vpop.permute.xlu0 %2453
    %v2456 = vadd.f32 %v2446, %v2454
    %v2457 = vtanh.pop %v2456
    %2459 = vrot.lane.b32.xlu0 %v2457, 32
    %v2460 = vpop.permute.xlu0 %2459
    %v2462 = vmul.f32 %v2441, %v2460
    %v2464 = vrot.slane %v2462, 6
    %2465 = vrot.lane.b32.xlu0 %v2464, 64
    %v2466 = vpop.permute.xlu0 %2465
    %v2467 = vsel %vm178, %v2466, 0
    %2469 = vmatprep.subr.mxu0 0.0
    %2470 = vmatpush1.msra.mxu0 0.0
    %2471 = vmatprep.subr.mxu0 0.0
    %2472 = vmatpush1.msra.mxu0 0.0
    %2473 = vmatprep.subr.mxu0 0.0
    %2474 = vmatpush1.msra.mxu0 0.0
    %2475 = vmatprep.subr.mxu0 0.0
    %2476 = vmatpush1.msra.mxu0 0.0
    %2477 = vmatprep.subr.mxu0 0.0
    %2478 = vmatpush1.msra.mxu0 0.0
    %2479 = vmatprep.subr.mxu0 0.0
    %2480 = vmatpush1.msra.mxu0 0.0
    %2481 = vmatprep.subr.mxu0 0.0
    %2482 = vmatpush1.msra.mxu0 0.0
    %2483 = vmatprep.subr.mxu0 0.0
    %2484 = vmatpush1.msra.mxu0 0.0
    %2485 = vmatprep.subr.mxu0 0.0
    %2486 = vmatpush1.msra.mxu0 0.0
    %2487 = vmatprep.subr.mxu0 0.0
    %2488 = vmatpush1.msra.mxu0 0.0
    %2489 = vmatprep.subr.mxu0 0.0
    %2490 = vmatpush1.msra.mxu0 0.0
    %2491 = vmatprep.subr.mxu0 0.0
    %2492 = vmatpush1.msra.mxu0 0.0
    %2493 = vmatprep.subr.mxu0 0.0
    %2494 = vmatpush1.msra.mxu0 %v2047
    %2495 = vmatprep.subr.mxu0 0.0
    %2496 = vmatpush1.msra.mxu0 %v2046
    %2497 = vmatprep.subr.mxu0 0.0
    %2498 = vmatpush1.msra.mxu0 %v2045
    %2499 = vmatprep.subr.mxu0 0.0
    %2500 = vmatpush1.msra.mxu0 %v2044
    %2501 = vmatprep.subr.mxu0 0.0
    %2502 = vmatpush2.msra.mxu0 0.0
    %2503 = vmatprep.subr.mxu0 0.0
    %2504 = vmatpush2.msra.mxu0 0.0
    %2505 = vmatprep.subr.mxu0 0.0
    %2506 = vmatpush2.msra.mxu0 0.0
    %2507 = vmatprep.subr.mxu0 0.0
    %2508 = vmatpush2.msra.mxu0 0.0
    %2509 = vmatprep.subr.mxu0 0.0
    %2510 = vmatpush2.msra.mxu0 0.0
    %2511 = vmatprep.subr.mxu0 0.0
    %2512 = vmatpush2.msra.mxu0 0.0
    %2513 = vmatprep.subr.mxu0 0.0
    %2514 = vmatpush2.msra.mxu0 0.0
    %2515 = vmatprep.subr.mxu0 0.0
    %2516 = vmatpush2.msra.mxu0 0.0
    %2517 = vmatprep.subr.mxu0 0.0
    %2518 = vmatpush2.msra.mxu0 0.0
    %2519 = vmatprep.subr.mxu0 0.0
    %2520 = vmatpush2.msra.mxu0 0.0
    %2521 = vmatprep.subr.mxu0 0.0
    %2522 = vmatpush2.msra.mxu0 0.0
    %2523 = vmatprep.subr.mxu0 0.0
    %2524 = vmatpush2.msra.mxu0 0.0
    %2525 = vmatprep.subr.mxu0 0.0
    %2526 = vmatpush2.msra.mxu0 0.0
    %2527 = vmatprep.subr.mxu0 0.0
    %2528 = vmatpush2.msra.mxu0 0.0
    %2529 = vmatprep.subr.mxu0 0.0
    %2530 = vmatpush2.msra.mxu0 0.0
    %2531 = vmatprep.subr.mxu0 0.0
    %2532 = vmatpush2.msra.mxu0 0.0
    %2533 = vmatprep.mubr.f32.mxu0 0.0
    %2534 = vmatmul.mubr.f32.gmra.mxu0 %v2467
    %v2535 = vpop.f32.mrf.mxu0
    %v2536 = vadd.f32 0.0, %v2535
    %v2537 = vpop.f32.mrf.mxu0
    %2538 = vdwg.mxu0
    %v2539 = vadd.f32 %v2040, %v2536
    %v2540 = vxor.u32 %v2539, 2147483648
    %v2541 = vmul.f32 %v2540, 1.442695
    %v2542 = vpow.pop %v2541
    %v2543 = vadd.f32 %v2542, 1.0
    %v2544 = vrcp.pop %v2543
    %v2545 = vmul.f32 1.0, %v2544
    %v2546 = vtanh.pop %v2539
    %v2548 = vrot.slane %v2456, 6
    %v2550 = vmul.f32 %v2545, %v2548
    %2552 = vrot.lane.b32.xlu0 %v2546, 32
    %v2553 = vpop.permute.xlu0 %2552
    %v2555 = vmul.f32 %v2545, %v2553
    %2557 = vrot.lane.b32.xlu0 %v2555, 32
    %v2558 = vpop.permute.xlu0 %2557
    %v2560 = vadd.f32 %v2550, %v2558
    %v2561 = vtanh.pop %v2560
    %2563 = vrot.lane.b32.xlu0 %v2561, 32
    %v2564 = vpop.permute.xlu0 %2563
    %v2566 = vmul.f32 %v2545, %v2564
    %2568 = vrot.lane.b32.xlu0 %v2566, 64
    %v2569 = vpop.permute.xlu0 %2568
    %v2570 = vsel %vm178, %v2569, 0
    %2572 = vmatprep.subr.mxu0 0.0
    %2573 = vmatpush1.msra.mxu0 0.0
    %2574 = vmatprep.subr.mxu0 0.0
    %2575 = vmatpush1.msra.mxu0 0.0
    %2576 = vmatprep.subr.mxu0 0.0
    %2577 = vmatpush1.msra.mxu0 0.0
    %2578 = vmatprep.subr.mxu0 0.0
    %2579 = vmatpush1.msra.mxu0 0.0
    %2580 = vmatprep.subr.mxu0 0.0
    %2581 = vmatpush1.msra.mxu0 0.0
    %2582 = vmatprep.subr.mxu0 0.0
    %2583 = vmatpush1.msra.mxu0 0.0
    %2584 = vmatprep.subr.mxu0 0.0
    %2585 = vmatpush1.msra.mxu0 0.0
    %2586 = vmatprep.subr.mxu0 0.0
    %2587 = vmatpush1.msra.mxu0 0.0
    %2588 = vmatprep.subr.mxu0 0.0
    %2589 = vmatpush1.msra.mxu0 0.0
    %2590 = vmatprep.subr.mxu0 0.0
    %2591 = vmatpush1.msra.mxu0 0.0
    %2592 = vmatprep.subr.mxu0 0.0
    %2593 = vmatpush1.msra.mxu0 0.0
    %2594 = vmatprep.subr.mxu0 0.0
    %2595 = vmatpush1.msra.mxu0 0.0
    %2596 = vmatprep.subr.mxu0 0.0
    %2597 = vmatpush1.msra.mxu0 %v2047
    %2598 = vmatprep.subr.mxu0 0.0
    %2599 = vmatpush1.msra.mxu0 %v2046
    %2600 = vmatprep.subr.mxu0 0.0
    %2601 = vmatpush1.msra.mxu0 %v2045
    %2602 = vmatprep.subr.mxu0 0.0
    %2603 = vmatpush1.msra.mxu0 %v2044
    %2604 = vmatprep.subr.mxu0 0.0
    %2605 = vmatpush2.msra.mxu0 0.0
    %2606 = vmatprep.subr.mxu0 0.0
    %2607 = vmatpush2.msra.mxu0 0.0
    %2608 = vmatprep.subr.mxu0 0.0
    %2609 = vmatpush2.msra.mxu0 0.0
    %2610 = vmatprep.subr.mxu0 0.0
    %2611 = vmatpush2.msra.mxu0 0.0
    %2612 = vmatprep.subr.mxu0 0.0
    %2613 = vmatpush2.msra.mxu0 0.0
    %2614 = vmatprep.subr.mxu0 0.0
    %2615 = vmatpush2.msra.mxu0 0.0
    %2616 = vmatprep.subr.mxu0 0.0
    %2617 = vmatpush2.msra.mxu0 0.0
    %2618 = vmatprep.subr.mxu0 0.0
    %2619 = vmatpush2.msra.mxu0 0.0
    %2620 = vmatprep.subr.mxu0 0.0
    %2621 = vmatpush2.msra.mxu0 0.0
    %2622 = vmatprep.subr.mxu0 0.0
    %2623 = vmatpush2.msra.mxu0 0.0
    %2624 = vmatprep.subr.mxu0 0.0
    %2625 = vmatpush2.msra.mxu0 0.0
    %2626 = vmatprep.subr.mxu0 0.0
    %2627 = vmatpush2.msra.mxu0 0.0
    %2628 = vmatprep.subr.mxu0 0.0
    %2629 = vmatpush2.msra.mxu0 0.0
    %2630 = vmatprep.subr.mxu0 0.0
    %2631 = vmatpush2.msra.mxu0 0.0
    %2632 = vmatprep.subr.mxu0 0.0
    %2633 = vmatpush2.msra.mxu0 0.0
    %2634 = vmatprep.subr.mxu0 0.0
    %2635 = vmatpush2.msra.mxu0 0.0
    %2636 = vmatprep.mubr.f32.mxu0 0.0
    %2637 = vmatmul.mubr.f32.gmra.mxu0 %v2570
    %v2638 = vpop.f32.mrf.mxu0
    %v2639 = vadd.f32 0.0, %v2638
    %v2640 = vpop.f32.mrf.mxu0
    %2641 = vdwg.mxu0
    %v2643 = vrot.slane %v2639, 6
    %v2645 = vadd.f32 %v2040, %v2643
    %v2646 = vxor.u32 %v2645, 2147483648
    %v2647 = vmul.f32 %v2646, 1.442695
    %v2648 = vpow.pop %v2647
    %v2649 = vadd.f32 %v2648, 1.0
    %v2650 = vrcp.pop %v2649
    %v2651 = vmul.f32 1.0, %v2650
    %v2652 = vtanh.pop %v2645
    %v2654 = vrot.slane %v2560, 6
    %v2656 = vmul.f32 %v2651, %v2654
    %2658 = vrot.lane.b32.xlu0 %v2652, 32
    %v2659 = vpop.permute.xlu0 %2658
    %v2661 = vmul.f32 %v2651, %v2659
    %2663 = vrot.lane.b32.xlu0 %v2661, 32
    %v2664 = vpop.permute.xlu0 %2663
    %v2666 = vadd.f32 %v2656, %v2664
    %v2667 = vtanh.pop %v2666
    %2669 = vrot.lane.b32.xlu0 %v2667, 32
    %v2670 = vpop.permute.xlu0 %2669
    %v2672 = vmul.f32 %v2651, %v2670
    %v2674 = vrot.slane %v2672, 2
    %2675 = vrot.lane.b32.xlu0 %v2674, 64
    %v2676 = vpop.permute.xlu0 %2675
    %v2677 = vsel %vm178, %v2676, 0
    %2679 = vmatprep.subr.mxu0 0.0
    %2680 = vmatpush1.msra.mxu0 0.0
    %2681 = vmatprep.subr.mxu0 0.0
    %2682 = vmatpush1.msra.mxu0 0.0
    %2683 = vmatprep.subr.mxu0 0.0
    %2684 = vmatpush1.msra.mxu0 0.0
    %2685 = vmatprep.subr.mxu0 0.0
    %2686 = vmatpush1.msra.mxu0 0.0
    %2687 = vmatprep.subr.mxu0 0.0
    %2688 = vmatpush1.msra.mxu0 0.0
    %2689 = vmatprep.subr.mxu0 0.0
    %2690 = vmatpush1.msra.mxu0 0.0
    %2691 = vmatprep.subr.mxu0 0.0
    %2692 = vmatpush1.msra.mxu0 0.0
    %2693 = vmatprep.subr.mxu0 0.0
    %2694 = vmatpush1.msra.mxu0 0.0
    %2695 = vmatprep.subr.mxu0 0.0
    %2696 = vmatpush1.msra.mxu0 0.0
    %2697 = vmatprep.subr.mxu0 0.0
    %2698 = vmatpush1.msra.mxu0 0.0
    %2699 = vmatprep.subr.mxu0 0.0
    %2700 = vmatpush1.msra.mxu0 0.0
    %2701 = vmatprep.subr.mxu0 0.0
    %2702 = vmatpush1.msra.mxu0 0.0
    %2703 = vmatprep.subr.mxu0 0.0
    %2704 = vmatpush1.msra.mxu0 %v2047
    %2705 = vmatprep.subr.mxu0 0.0
    %2706 = vmatpush1.msra.mxu0 %v2046
    %2707 = vmatprep.subr.mxu0 0.0
    %2708 = vmatpush1.msra.mxu0 %v2045
    %2709 = vmatprep.subr.mxu0 0.0
    %2710 = vmatpush1.msra.mxu0 %v2044
    %2711 = vmatprep.subr.mxu0 0.0
    %2712 = vmatpush2.msra.mxu0 0.0
    %2713 = vmatprep.subr.mxu0 0.0
    %2714 = vmatpush2.msra.mxu0 0.0
    %2715 = vmatprep.subr.mxu0 0.0
    %2716 = vmatpush2.msra.mxu0 0.0
    %2717 = vmatprep.subr.mxu0 0.0
    %2718 = vmatpush2.msra.mxu0 0.0
    %2719 = vmatprep.subr.mxu0 0.0
    %2720 = vmatpush2.msra.mxu0 0.0
    %2721 = vmatprep.subr.mxu0 0.0
    %2722 = vmatpush2.msra.mxu0 0.0
    %2723 = vmatprep.subr.mxu0 0.0
    %2724 = vmatpush2.msra.mxu0 0.0
    %2725 = vmatprep.subr.mxu0 0.0
    %2726 = vmatpush2.msra.mxu0 0.0
    %2727 = vmatprep.subr.mxu0 0.0
    %2728 = vmatpush2.msra.mxu0 0.0
    %2729 = vmatprep.subr.mxu0 0.0
    %2730 = vmatpush2.msra.mxu0 0.0
    %2731 = vmatprep.subr.mxu0 0.0
    %2732 = vmatpush2.msra.mxu0 0.0
    %2733 = vmatprep.subr.mxu0 0.0
    %2734 = vmatpush2.msra.mxu0 0.0
    %2735 = vmatprep.subr.mxu0 0.0
    %2736 = vmatpush2.msra.mxu0 0.0
    %2737 = vmatprep.subr.mxu0 0.0
    %2738 = vmatpush2.msra.mxu0 0.0
    %2739 = vmatprep.subr.mxu0 0.0
    %2740 = vmatpush2.msra.mxu0 0.0
    %2741 = vmatprep.subr.mxu0 0.0
    %2742 = vmatpush2.msra.mxu0 0.0
    %2743 = vmatprep.mubr.f32.mxu0 0.0
    %2744 = vmatmul.mubr.f32.gmra.mxu0 %v2677
    %v2745 = vpop.f32.mrf.mxu0
    %v2746 = vadd.f32 0.0, %v2745
    %v2747 = vpop.f32.mrf.mxu0
    %2748 = vdwg.mxu0
    %v2750 = vrot.slane %v2746, 4
    %v2752 = vadd.f32 %v2040, %v2750
    %v2753 = vxor.u32 %v2752, 2147483648
    %v2754 = vmul.f32 %v2753, 1.442695
    %v2755 = vpow.pop %v2754
    %v2756 = vadd.f32 %v2755, 1.0
    %v2757 = vrcp.pop %v2756
    %v2758 = vmul.f32 1.0, %v2757
    %v2759 = vtanh.pop %v2752
    %v2761 = vrot.slane %v2666, 6
    %v2763 = vmul.f32 %v2758, %v2761
    %2765 = vrot.lane.b32.xlu0 %v2759, 32
    %v2766 = vpop.permute.xlu0 %2765
    %v2768 = vmul.f32 %v2758, %v2766
    %2770 = vrot.lane.b32.xlu0 %v2768, 32
    %v2771 = vpop.permute.xlu0 %2770
    %v2773 = vadd.f32 %v2763, %v2771
    %v2774 = vtanh.pop %v2773
    %2776 = vrot.lane.b32.xlu0 %v2774, 32
    %v2777 = vpop.permute.xlu0 %2776
    %v2779 = vmul.f32 %v2758, %v2777
    %v2781 = vrot.slane %v2779, 4
    %2782 = vrot.lane.b32.xlu0 %v2781, 64
    %v2783 = vpop.permute.xlu0 %2782
    %v2784 = vsel %vm178, %v2783, 0
    %2786 = vmatprep.subr.mxu0 0.0
    %2787 = vmatpush1.msra.mxu0 0.0
    %2788 = vmatprep.subr.mxu0 0.0
    %2789 = vmatpush1.msra.mxu0 0.0
    %2790 = vmatprep.subr.mxu0 0.0
    %2791 = vmatpush1.msra.mxu0 0.0
    %2792 = vmatprep.subr.mxu0 0.0
    %2793 = vmatpush1.msra.mxu0 0.0
    %2794 = vmatprep.subr.mxu0 0.0
    %2795 = vmatpush1.msra.mxu0 0.0
    %2796 = vmatprep.subr.mxu0 0.0
    %2797 = vmatpush1.msra.mxu0 0.0
    %2798 = vmatprep.subr.mxu0 0.0
    %2799 = vmatpush1.msra.mxu0 0.0
    %2800 = vmatprep.subr.mxu0 0.0
    %2801 = vmatpush1.msra.mxu0 0.0
    %2802 = vmatprep.subr.mxu0 0.0
    %2803 = vmatpush1.msra.mxu0 0.0
    %2804 = vmatprep.subr.mxu0 0.0
    %2805 = vmatpush1.msra.mxu0 0.0
    %2806 = vmatprep.subr.mxu0 0.0
    %2807 = vmatpush1.msra.mxu0 0.0
    %2808 = vmatprep.subr.mxu0 0.0
    %2809 = vmatpush1.msra.mxu0 0.0
    %2810 = vmatprep.subr.mxu0 0.0
    %2811 = vmatpush1.msra.mxu0 %v2047
    %2812 = vmatprep.subr.mxu0 0.0
    %2813 = vmatpush1.msra.mxu0 %v2046
    %2814 = vmatprep.subr.mxu0 0.0
    %2815 = vmatpush1.msra.mxu0 %v2045
    %2816 = vmatprep.subr.mxu0 0.0
    %2817 = vmatpush1.msra.mxu0 %v2044
    %2818 = vmatprep.subr.mxu0 0.0
    %2819 = vmatpush2.msra.mxu0 0.0
    %2820 = vmatprep.subr.mxu0 0.0
    %2821 = vmatpush2.msra.mxu0 0.0
    %2822 = vmatprep.subr.mxu0 0.0
    %2823 = vmatpush2.msra.mxu0 0.0
    %2824 = vmatprep.subr.mxu0 0.0
    %2825 = vmatpush2.msra.mxu0 0.0
    %2826 = vmatprep.subr.mxu0 0.0
    %2827 = vmatpush2.msra.mxu0 0.0
    %2828 = vmatprep.subr.mxu0 0.0
    %2829 = vmatpush2.msra.mxu0 0.0
    %2830 = vmatprep.subr.mxu0 0.0
    %2831 = vmatpush2.msra.mxu0 0.0
    %2832 = vmatprep.subr.mxu0 0.0
    %2833 = vmatpush2.msra.mxu0 0.0
    %2834 = vmatprep.subr.mxu0 0.0
    %2835 = vmatpush2.msra.mxu0 0.0
    %2836 = vmatprep.subr.mxu0 0.0
    %2837 = vmatpush2.msra.mxu0 0.0
    %2838 = vmatprep.subr.mxu0 0.0
    %2839 = vmatpush2.msra.mxu0 0.0
    %2840 = vmatprep.subr.mxu0 0.0
    %2841 = vmatpush2.msra.mxu0 0.0
    %2842 = vmatprep.subr.mxu0 0.0
    %2843 = vmatpush2.msra.mxu0 0.0
    %2844 = vmatprep.subr.mxu0 0.0
    %2845 = vmatpush2.msra.mxu0 0.0
    %2846 = vmatprep.subr.mxu0 0.0
    %2847 = vmatpush2.msra.mxu0 0.0
    %2848 = vmatprep.subr.mxu0 0.0
    %2849 = vmatpush2.msra.mxu0 0.0
    %2850 = vmatprep.mubr.f32.mxu0 0.0
    %2851 = vmatmul.mubr.f32.gmra.mxu0 %v2784
    %v2852 = vpop.f32.mrf.mxu0
    %v2853 = vadd.f32 0.0, %v2852
    %v2854 = vpop.f32.mrf.mxu0
    %2855 = vdwg.mxu0
    %v2857 = vrot.slane %v2853, 2
    %v2859 = vadd.f32 %v2040, %v2857
    %v2860 = vxor.u32 %v2859, 2147483648
    %v2861 = vmul.f32 %v2860, 1.442695
    %v2862 = vpow.pop %v2861
    %v2863 = vadd.f32 %v2862, 1.0
    %v2864 = vrcp.pop %v2863
    %v2865 = vmul.f32 1.0, %v2864
    %v2866 = vtanh.pop %v2859
    %v2868 = vrot.slane %v2773, 6
    %v2870 = vmul.f32 %v2865, %v2868
    %2872 = vrot.lane.b32.xlu0 %v2866, 32
    %v2873 = vpop.permute.xlu0 %2872
    %v2875 = vmul.f32 %v2865, %v2873
    %2877 = vrot.lane.b32.xlu0 %v2875, 32
    %v2878 = vpop.permute.xlu0 %2877
    %v2880 = vadd.f32 %v2870, %v2878
    %v2881 = vtanh.pop %v2880
    %2883 = vrot.lane.b32.xlu0 %v2881, 32
    %v2884 = vpop.permute.xlu0 %2883
    %v2886 = vmul.f32 %v2865, %v2884
    %s2887 = scalar_lea.vmem [#allocation6], 32
    %v2888 = vld [vmem:[%s2887] sm:$0xff]
    %v2889 = vld [vmem:[%s2887 + $0x8] sm:$0xff]
    %v2890 = vld [vmem:[%s2887 + $0x10] sm:$0xff]
    %v2891 = vld [vmem:[%s2887 + $0x18] sm:$0xff]
    %2892 = vmatprep.subr.mxu0 0.0
    %2893 = vmatpush1.msra.mxu0 0.0
    %2894 = vmatprep.subr.mxu0 0.0
    %2895 = vmatpush1.msra.mxu0 0.0
    %2896 = vmatprep.subr.mxu0 0.0
    %2897 = vmatpush1.msra.mxu0 0.0
    %2898 = vmatprep.subr.mxu0 0.0
    %2899 = vmatpush1.msra.mxu0 0.0
    %2900 = vmatprep.subr.mxu0 0.0
    %2901 = vmatpush1.msra.mxu0 0.0
    %2902 = vmatprep.subr.mxu0 0.0
    %2903 = vmatpush1.msra.mxu0 0.0
    %2904 = vmatprep.subr.mxu0 0.0
    %2905 = vmatpush1.msra.mxu0 0.0
    %2906 = vmatprep.subr.mxu0 0.0
    %2907 = vmatpush1.msra.mxu0 0.0
    %2908 = vmatprep.subr.mxu0 0.0
    %2909 = vmatpush1.msra.mxu0 0.0
    %2910 = vmatprep.subr.mxu0 0.0
    %2911 = vmatpush1.msra.mxu0 0.0
    %2912 = vmatprep.subr.mxu0 0.0
    %2913 = vmatpush1.msra.mxu0 0.0
    %2914 = vmatprep.subr.mxu0 0.0
    %2915 = vmatpush1.msra.mxu0 0.0
    %2916 = vmatprep.subr.mxu0 0.0
    %2917 = vmatpush1.msra.mxu0 %v2891
    %2918 = vmatprep.subr.mxu0 0.0
    %2919 = vmatpush1.msra.mxu0 %v2890
    %2920 = vmatprep.subr.mxu0 0.0
    %2921 = vmatpush1.msra.mxu0 %v2889
    %2922 = vmatprep.subr.mxu0 0.0
    %2923 = vmatpush1.msra.mxu0 %v2888
    %2924 = vmatprep.subr.mxu0 0.0
    %2925 = vmatpush2.msra.mxu0 0.0
    %2926 = vmatprep.subr.mxu0 0.0
    %2927 = vmatpush2.msra.mxu0 0.0
    %2928 = vmatprep.subr.mxu0 0.0
    %2929 = vmatpush2.msra.mxu0 0.0
    %2930 = vmatprep.subr.mxu0 0.0
    %2931 = vmatpush2.msra.mxu0 0.0
    %2932 = vmatprep.subr.mxu0 0.0
    %2933 = vmatpush2.msra.mxu0 0.0
    %2934 = vmatprep.subr.mxu0 0.0
    %2935 = vmatpush2.msra.mxu0 0.0
    %2936 = vmatprep.subr.mxu0 0.0
    %2937 = vmatpush2.msra.mxu0 0.0
    %2938 = vmatprep.subr.mxu0 0.0
    %2939 = vmatpush2.msra.mxu0 0.0
    %2940 = vmatprep.subr.mxu0 0.0
    %2941 = vmatpush2.msra.mxu0 0.0
    %2942 = vmatprep.subr.mxu0 0.0
    %2943 = vmatpush2.msra.mxu0 0.0
    %2944 = vmatprep.subr.mxu0 0.0
    %2945 = vmatpush2.msra.mxu0 0.0
    %2946 = vmatprep.subr.mxu0 0.0
    %2947 = vmatpush2.msra.mxu0 0.0
    %2948 = vmatprep.subr.mxu0 0.0
    %2949 = vmatpush2.msra.mxu0 0.0
    %2950 = vmatprep.subr.mxu0 0.0
    %2951 = vmatpush2.msra.mxu0 0.0
    %2952 = vmatprep.subr.mxu0 0.0
    %2953 = vmatpush2.msra.mxu0 0.0
    %2954 = vmatprep.subr.mxu0 0.0
    %2955 = vmatpush2.msra.mxu0 0.0
    %2956 = vmatprep.mubr.f32.mxu0 0.0
    %2957 = vmatmul.mubr.f32.gmra.mxu0 %v180
    %v2958 = vpop.f32.mrf.mxu0
    %v2959 = vadd.f32 0.0, %v2958
    %v2960 = vpop.f32.mrf.mxu0
    %2961 = vdwg.mxu0
    %v2963 = vrot.slane %v2959, 2
    %v2965 = vadd.f32 %v2042, %v2963
    %v2966 = vxor.u32 %v2965, 2147483648
    %v2967 = vmul.f32 %v2966, 1.442695
    %v2968 = vpow.pop %v2967
    %v2969 = vadd.f32 %v2968, 1.0
    %v2970 = vrcp.pop %v2969
    %v2971 = vmul.f32 1.0, %v2970
    %v2972 = vtanh.pop %v2965
    %v2973 = vmul.f32 %v2971, 0.0
    %2975 = vrot.lane.b32.xlu0 %v2972, 32
    %v2976 = vpop.permute.xlu0 %2975
    %v2978 = vmul.f32 %v2971, %v2976
    %2980 = vrot.lane.b32.xlu0 %v2978, 32
    %v2981 = vpop.permute.xlu0 %2980
    %v2983 = vadd.f32 %v2973, %v2981
    %v2984 = vtanh.pop %v2983
    %2986 = vrot.lane.b32.xlu0 %v2984, 32
    %v2987 = vpop.permute.xlu0 %2986
    %v2989 = vmul.f32 %v2971, %v2987
    %v2990 = vld [vmem:[%s7] sm:$0xff]
    %v2991 = vld [vmem:[%s7 + $0x8] sm:$0xff]
    %v2992 = vld [vmem:[%s7 + $0x10] sm:$0xff]
    %v2993 = vld [vmem:[%s7 + $0x18] sm:$0xff]
    %v2994 = vld [vmem:[%s7 + $0x20] sm:$0xff]
    %v2995 = vld [vmem:[%s7 + $0x28] sm:$0xff]
    %v2996 = vld [vmem:[%s7 + $0x30] sm:$0xff]
    %v2997 = vld [vmem:[%s7 + $0x38] sm:$0xff]
    %v2999 = vrot.slane %v2989, 6
    %3000 = vrot.lane.b32.xlu0 %v2999, 64
    %v3001 = vpop.permute.xlu0 %3000
    %v3002 = vsel %vm178, %v3001, 0
    %3004 = vmatprep.subr.mxu0 0.0
    %3005 = vmatpush1.msra.mxu0 0.0
    %3006 = vmatprep.subr.mxu0 0.0
    %3007 = vmatpush1.msra.mxu0 0.0
    %3008 = vmatprep.subr.mxu0 0.0
    %3009 = vmatpush1.msra.mxu0 0.0
    %3010 = vmatprep.subr.mxu0 0.0
    %3011 = vmatpush1.msra.mxu0 0.0
    %3012 = vmatprep.subr.mxu0 0.0
    %3013 = vmatpush1.msra.mxu0 0.0
    %3014 = vmatprep.subr.mxu0 0.0
    %3015 = vmatpush1.msra.mxu0 0.0
    %3016 = vmatprep.subr.mxu0 0.0
    %3017 = vmatpush1.msra.mxu0 0.0
    %3018 = vmatprep.subr.mxu0 0.0
    %3019 = vmatpush1.msra.mxu0 0.0
    %3020 = vmatprep.subr.mxu0 0.0
    %3021 = vmatpush1.msra.mxu0 0.0
    %3022 = vmatprep.subr.mxu0 0.0
    %3023 = vmatpush1.msra.mxu0 0.0
    %3024 = vmatprep.subr.mxu0 0.0
    %3025 = vmatpush1.msra.mxu0 0.0
    %3026 = vmatprep.subr.mxu0 0.0
    %3027 = vmatpush1.msra.mxu0 0.0
    %3028 = vmatprep.subr.mxu0 0.0
    %3029 = vmatpush1.msra.mxu0 %v2997
    %3030 = vmatprep.subr.mxu0 0.0
    %3031 = vmatpush1.msra.mxu0 %v2996
    %3032 = vmatprep.subr.mxu0 0.0
    %3033 = vmatpush1.msra.mxu0 %v2995
    %3034 = vmatprep.subr.mxu0 0.0
    %3035 = vmatpush1.msra.mxu0 %v2994
    %3036 = vmatprep.subr.mxu0 0.0
    %3037 = vmatpush2.msra.mxu0 0.0
    %3038 = vmatprep.subr.mxu0 0.0
    %3039 = vmatpush2.msra.mxu0 0.0
    %3040 = vmatprep.subr.mxu0 0.0
    %3041 = vmatpush2.msra.mxu0 0.0
    %3042 = vmatprep.subr.mxu0 0.0
    %3043 = vmatpush2.msra.mxu0 0.0
    %3044 = vmatprep.subr.mxu0 0.0
    %3045 = vmatpush2.msra.mxu0 0.0
    %3046 = vmatprep.subr.mxu0 0.0
    %3047 = vmatpush2.msra.mxu0 0.0
    %3048 = vmatprep.subr.mxu0 0.0
    %3049 = vmatpush2.msra.mxu0 0.0
    %3050 = vmatprep.subr.mxu0 0.0
    %3051 = vmatpush2.msra.mxu0 0.0
    %3052 = vmatprep.subr.mxu0 0.0
    %3053 = vmatpush2.msra.mxu0 0.0
    %3054 = vmatprep.subr.mxu0 0.0
    %3055 = vmatpush2.msra.mxu0 0.0
    %3056 = vmatprep.subr.mxu0 0.0
    %3057 = vmatpush2.msra.mxu0 0.0
    %3058 = vmatprep.subr.mxu0 0.0
    %3059 = vmatpush2.msra.mxu0 0.0
    %3060 = vmatprep.subr.mxu0 0.0
    %3061 = vmatpush2.msra.mxu0 0.0
    %3062 = vmatprep.subr.mxu0 0.0
    %3063 = vmatpush2.msra.mxu0 0.0
    %3064 = vmatprep.subr.mxu0 0.0
    %3065 = vmatpush2.msra.mxu0 0.0
    %3066 = vmatprep.subr.mxu0 0.0
    %3067 = vmatpush2.msra.mxu0 0.0
    %3068 = vmatprep.mubr.f32.mxu0 0.0
    %3069 = vmatmul.mubr.f32.gmra.mxu0 %v3002
    %v3070 = vpop.f32.mrf.mxu0
    %v3071 = vadd.f32 0.0, %v3070
    %v3072 = vpop.f32.mrf.mxu0
    %3073 = vdwg.mxu0
    %v3075 = vrot.slane %v2886, 6
    %3076 = vrot.lane.b32.xlu0 %v3075, 64
    %v3077 = vpop.permute.xlu0 %3076
    %v3078 = vsel %vm178, %v3077, 0
    %3080 = vmatprep.subr.mxu0 0.0
    %3081 = vmatpush1.msra.mxu0 0.0
    %3082 = vmatprep.subr.mxu0 0.0
    %3083 = vmatpush1.msra.mxu0 0.0
    %3084 = vmatprep.subr.mxu0 0.0
    %3085 = vmatpush1.msra.mxu0 0.0
    %3086 = vmatprep.subr.mxu0 0.0
    %3087 = vmatpush1.msra.mxu0 0.0
    %3088 = vmatprep.subr.mxu0 0.0
    %3089 = vmatpush1.msra.mxu0 0.0
    %3090 = vmatprep.subr.mxu0 0.0
    %3091 = vmatpush1.msra.mxu0 0.0
    %3092 = vmatprep.subr.mxu0 0.0
    %3093 = vmatpush1.msra.mxu0 0.0
    %3094 = vmatprep.subr.mxu0 0.0
    %3095 = vmatpush1.msra.mxu0 0.0
    %3096 = vmatprep.subr.mxu0 0.0
    %3097 = vmatpush1.msra.mxu0 0.0
    %3098 = vmatprep.subr.mxu0 0.0
    %3099 = vmatpush1.msra.mxu0 0.0
    %3100 = vmatprep.subr.mxu0 0.0
    %3101 = vmatpush1.msra.mxu0 0.0
    %3102 = vmatprep.subr.mxu0 0.0
    %3103 = vmatpush1.msra.mxu0 0.0
    %3104 = vmatprep.subr.mxu0 0.0
    %3105 = vmatpush1.msra.mxu0 %v2993
    %3106 = vmatprep.subr.mxu0 0.0
    %3107 = vmatpush1.msra.mxu0 %v2992
    %3108 = vmatprep.subr.mxu0 0.0
    %3109 = vmatpush1.msra.mxu0 %v2991
    %3110 = vmatprep.subr.mxu0 0.0
    %3111 = vmatpush1.msra.mxu0 %v2990
    %3112 = vmatprep.subr.mxu0 0.0
    %3113 = vmatpush2.msra.mxu0 0.0
    %3114 = vmatprep.subr.mxu0 0.0
    %3115 = vmatpush2.msra.mxu0 0.0
    %3116 = vmatprep.subr.mxu0 0.0
    %3117 = vmatpush2.msra.mxu0 0.0
    %3118 = vmatprep.subr.mxu0 0.0
    %3119 = vmatpush2.msra.mxu0 0.0
    %3120 = vmatprep.subr.mxu0 0.0
    %3121 = vmatpush2.msra.mxu0 0.0
    %3122 = vmatprep.subr.mxu0 0.0
    %3123 = vmatpush2.msra.mxu0 0.0
    %3124 = vmatprep.subr.mxu0 0.0
    %3125 = vmatpush2.msra.mxu0 0.0
    %3126 = vmatprep.subr.mxu0 0.0
    %3127 = vmatpush2.msra.mxu0 0.0
    %3128 = vmatprep.subr.mxu0 0.0
    %3129 = vmatpush2.msra.mxu0 0.0
    %3130 = vmatprep.subr.mxu0 0.0
    %3131 = vmatpush2.msra.mxu0 0.0
    %3132 = vmatprep.subr.mxu0 0.0
    %3133 = vmatpush2.msra.mxu0 0.0
    %3134 = vmatprep.subr.mxu0 0.0
    %3135 = vmatpush2.msra.mxu0 0.0
    %3136 = vmatprep.subr.mxu0 0.0
    %3137 = vmatpush2.msra.mxu0 0.0
    %3138 = vmatprep.subr.mxu0 0.0
    %3139 = vmatpush2.msra.mxu0 0.0
    %3140 = vmatprep.subr.mxu0 0.0
    %3141 = vmatpush2.msra.mxu0 0.0
    %3142 = vmatprep.subr.mxu0 0.0
    %3143 = vmatpush2.msra.mxu0 0.0
    %3144 = vmatprep.mubr.f32.mxu0 0.0
    %3145 = vmatmul.mubr.f32.gmra.mxu0 %v3078
    %v3146 = vpop.f32.mrf.mxu0
    %v3147 = vadd.f32 %v3071, %v3146
    %v3148 = vpop.f32.mrf.mxu0
    %3149 = vdwg.mxu0
    %v3150 = vld [vmem:[#allocation3] sm:$0x1]
    %v3152 = vlaneseq
    %v3153 = vshrl.u32 %v3152, 7
    %v3154 = vsub.s32 0, %v3153
    %v3155 = vrot.slane %v3150, %v3154
    %v3157 = vadd.f32 %v3147, %v3155
    %v3158 = vxor.u32 %v3157, 2147483648
    %v3159 = vmul.f32 %v3158, 1.442695
    %v3160 = vpow.pop %v3159
    %v3161 = vadd.f32 %v3160, 1.0
    %v3162 = vrcp.pop %v3161
    %v3163 = vmul.f32 1.0, %v3162
    %vm3164 = vcmask 1024
    %3165 = vst.msk [vmem:[%s9] sm:$0x3] %vm3164, %v3163
    // Predicated region
    $region46: #{net_forward.1} parent=1 // pred_check
      _
    $region47: #{net_forward.1} parent=1 // pred_check_branch
      %3167 = sbr.rel (0) target = $region49
    $region48: #{net_forward.1} parent=1 // pred_region
      _
    $region49: #{net_forward.1} parent=1 // pred_fallthru
      _
    // Predicated region
    $region50: #{net_forward.1} parent=1 // pred_check
      _
    $region51: #{net_forward.1} parent=1 // pred_check_branch
      %3169 = sbr.rel (0) target = $region53
    $region52: #{net_forward.1} parent=1 // pred_region
      _
    $region53: #{net_forward.1} parent=1 // pred_fallthru
      _
    %3170 = vsyncpa [#allocation5], 1
    %3171 = vsyncpa [#allocation7], 1

</llo_original>
